<compile_context>
chip_gen: v7x
topology: tpu7x:2x2x1
jax: 0.10.0
libtpu: 0.0.40
codegen_flags: <defaults>
</compile_context>

<pallas_src>
import functools
import math

import jax
import jax.numpy as jnp
from jax.experimental import pallas as pl
from jax.experimental.pallas import tpu as pltpu

LANE = 128


def _round_up(v, m):
    return (v + m - 1) // m * m


# ---------------------------------------------------------------------------
# Kernel 1: per-channel sum / sum-of-squares (fused single pass over row tiles)
# ---------------------------------------------------------------------------
def _bn_stats_kernel(x_ref, sum_ref, sq_ref):
    @pl.when(pl.program_id(0) == 0)
    def _init():
        sum_ref[...] = jnp.zeros_like(sum_ref)
        sq_ref[...] = jnp.zeros_like(sq_ref)

    x = x_ref[...].astype(jnp.float32)
    sum_ref[...] += jnp.sum(x, axis=0, keepdims=True)
    sq_ref[...] += jnp.sum(x * x, axis=0, keepdims=True)


def _channel_stats(x2d, true_count, tile_rows=512):
    """Per-channel mean and biased variance of a (rows, C) array."""
    rows, chans = x2d.shape
    tr = min(tile_rows, _round_up(rows, 8))
    rows_pad = _round_up(rows, tr)
    if rows_pad != rows:
        # Zero rows do not perturb sum / sum-of-squares; the true count is used below.
        x2d = jnp.pad(x2d, ((0, rows_pad - rows), (0, 0)))

    s, sq = pl.pallas_call(
        _bn_stats_kernel,
        out_shape=(
            jax.ShapeDtypeStruct((1, chans), jnp.float32),
            jax.ShapeDtypeStruct((1, chans), jnp.float32),
        ),
        grid_spec=pltpu.PrefetchScalarGridSpec(
            num_scalar_prefetch=0,
            grid=(rows_pad // tr,),
            in_specs=[pl.BlockSpec((tr, chans), lambda i: (i, 0))],
            out_specs=(
                pl.BlockSpec((1, chans), lambda i: (0, 0)),
                pl.BlockSpec((1, chans), lambda i: (0, 0)),
            ),
        ),
        compiler_params=pltpu.CompilerParams(
            dimension_semantics=("arbitrary",)),
    )(x2d)

    mean = s / true_count
    var = jnp.maximum(sq / true_count - mean * mean, 0.0)  # clamp: no NaN from cancellation
    return mean, var


# ---------------------------------------------------------------------------
# Kernel 2: fused  (x * scale + shift) -> ReLU -> valid Conv2d (stride s)
# ---------------------------------------------------------------------------
def _bn_relu_conv_kernel(x_ref, scale_ref, shift_ref, w_ref, b_ref, o_ref,
                         xn_ref, *, ksize, stride, out_h, out_w):
    # x_ref:     (1, H, W, C)     one image (NHWC, C padded to a lane multiple)
    # scale_ref: (1, C) f32       gamma * rsqrt(var + eps)
    # shift_ref: (1, C) f32       beta  - mean * scale
    # w_ref:     (K*K, C, C) f32  conv taps in HWIO, flattened over (kh, kw)
    # b_ref:     (1, C) f32       conv bias
    # o_ref:     (1, OH, OW, C)   one output image
    # xn_ref:    (H, W, C) f32    scratch holding relu(batchnorm(x))
    x = x_ref[0].astype(jnp.float32)
    xn_ref[...] = jnp.maximum(x * scale_ref[0] + shift_ref[0], 0.0)
    bias = b_ref[...]
    chans = bias.shape[-1]

    def row_body(oh, carry):
        acc = jnp.zeros((out_w, chans), jnp.float32)
        for kh in range(ksize):
            for kw in range(ksize):
                if stride == 1:
                    cols = pl.ds(kw, out_w)
                else:
                    # TODO(synk): stride > 1 uses strided pl.ds loads; only stride=1
                    # (feature=3) is exercised in this script.
                    cols = pl.ds(kw, out_w, stride=stride)
                row = xn_ref[oh * stride + kh, cols, :]           # (OW, C)
                acc = acc + jnp.dot(row, w_ref[kh * ksize + kw],
                                    preferred_element_type=jnp.float32)
        o_ref[0, oh, :, :] = (acc + bias).astype(o_ref.dtype)
        return carry

    jax.lax.fori_loop(0, out_h, row_body, 0)


def _bn_relu_conv_block(x_nhwc, gamma, beta, w_taps, bias, *, ksize, stride, eps):
    n, h, w, c = x_nhwc.shape
    out_h = (h - ksize) // stride + 1
    out_w = (w - ksize) // stride + 1

    mean, var = _channel_stats(x_nhwc.reshape(-1, c), float(n * h * w))
    scale = gamma * jax.lax.rsqrt(var + eps)      # rsqrt: no divide anywhere downstream
    shift = beta - mean * scale

    kernel = functools.partial(_bn_relu_conv_kernel, ksize=ksize, stride=stride,
                               out_h=out_h, out_w=out_w)
    return pl.pallas_call(
        kernel,
        out_shape=jax.ShapeDtypeStruct((n, out_h, out_w, c), x_nhwc.dtype),
        grid_spec=pltpu.PrefetchScalarGridSpec(
            num_scalar_prefetch=0,
            grid=(n,),
            in_specs=[
                pl.BlockSpec((1, h, w, c), lambda i: (i, 0, 0, 0)),
                pl.BlockSpec((1, c), lambda i: (0, 0)),
                pl.BlockSpec((1, c), lambda i: (0, 0)),
                pl.BlockSpec((ksize * ksize, c, c), lambda i: (0, 0, 0)),
                pl.BlockSpec((1, c), lambda i: (0, 0)),
            ],
            out_specs=pl.BlockSpec((1, out_h, out_w, c), lambda i: (i, 0, 0, 0)),
            scratch_shapes=[pltpu.VMEM((h, w, c), jnp.float32)],
        ),
        compiler_params=pltpu.CompilerParams(
            dimension_semantics=("parallel",)),
    )(x_nhwc, scale, shift, w_taps, bias)


# ---------------------------------------------------------------------------
# Wrapper: full RConv forward (NCHW in / NCHW out, PyTorch parameter layouts)
# ---------------------------------------------------------------------------
@functools.partial(jax.jit, static_argnames=("feature", "eps"))
def rconv_forward(x, w1, b1, w2, b2, gamma1, beta1, gamma2, beta2,
                  *, feature, eps=1e-5):
    assert feature % 2 == 1 and feature >= 3
    stride = (feature - 1) // 2

    n, c, h, w = x.shape
    cp = _round_up(c, LANE)

    def pad_vec(v, fill):
        v = v.astype(jnp.float32)
        return jnp.pad(v, (0, cp - c), constant_values=fill).reshape(1, cp)

    def pad_weight(wt):
        # OIHW -> HWIO, zero-pad in/out channels, flatten the K*K taps.
        whwio = jnp.transpose(wt.astype(jnp.float32), (2, 3, 1, 0))
        whwio = jnp.pad(whwio, ((0, 0), (0, 0), (0, cp - c), (0, cp - c)))
        return whwio.reshape(feature * feature, cp, cp)

    x_nhwc = jnp.pad(jnp.transpose(x, (0, 2, 3, 1)),
                     ((0, 0), (0, 0), (0, 0), (0, cp - c)))

    y = _bn_relu_conv_block(x_nhwc, pad_vec(gamma1, 1.0), pad_vec(beta1, 0.0),
                            pad_weight(w1), pad_vec(b1, 0.0),
                            ksize=feature, stride=stride, eps=eps)
    y = _bn_relu_conv_block(y, pad_vec(gamma2, 1.0), pad_vec(beta2, 0.0),
                            pad_weight(w2), pad_vec(b2, 0.0),
                            ksize=feature, stride=stride, eps=eps)

    return jnp.transpose(y[..., :c], (0, 3, 1, 2))


# ---------------------------------------------------------------------------
# Reference (plain JAX) + self-test
# ---------------------------------------------------------------------------
def _reference_rconv(x, w1, b1, w2, b2, feature, eps=1e-5):
    stride = (feature - 1) // 2

    def bn(t):
        m = jnp.mean(t, axis=(0, 2, 3), keepdims=True)
        v = jnp.mean((t - m) ** 2, axis=(0, 2, 3), keepdims=True)
        return (t - m) / jnp.sqrt(v + eps)

    def conv(t, wt, bt):
        y = jax.lax.conv_general_dilated(
            t, wt, window_strides=(stride, stride), padding="VALID",
            dimension_numbers=("NCHW", "OIHW", "NCHW"),
            precision=jax.lax.Precision.HIGHEST)
        return y + bt.reshape(1, -1, 1, 1)

    t = conv(jnp.maximum(bn(x), 0.0), w1, b1)
    t = conv(jnp.maximum(bn(t), 0.0), w2, b2)
    return t


if __name__ == "__main__":
    filtre, feature = 4, 3            # RConv(filtre=4, feature=3): 3x3 conv, stride 1
    batch, height, width = 2, 16, 16

    key = jax.random.PRNGKey(0)
    kx, kw1, kb1, kw2, kb2 = jax.random.split(key, 5)
    x = jax.random.normal(kx, (batch, filtre, height, width), dtype=jnp.float32)

    bound = 1.0 / math.sqrt(filtre * feature * feature)
    w1 = jax.random.uniform(kw1, (filtre, filtre, feature, feature), jnp.float32, -bound, bound)
    b1 = jax.random.uniform(kb1, (filtre,), jnp.float32, -bound, bound)
    w2 = jax.random.uniform(kw2, (filtre, filtre, feature, feature), jnp.float32, -bound, bound)
    b2 = jax.random.uniform(kb2, (filtre,), jnp.float32, -bound, bound)
    gamma = jnp.ones((filtre,), jnp.float32)    # BatchNorm2d default affine params
    beta = jnp.zeros((filtre,), jnp.float32)

    out = rconv_forward(x, w1, b1, w2, b2, gamma, beta, gamma, beta, feature=feature)
    out = jax.block_until_ready(out)

    ref = _reference_rconv(x, w1, b1, w2, b2, feature)
    assert out.shape == ref.shape, (out.shape, ref.shape)
    assert jnp.allclose(out, ref, atol=2e-2, rtol=2e-2), (
        "mismatch vs reference, max abs err = %e"
        % float(jnp.max(jnp.abs(out - ref))))
    print("KERNEL_OK")
</pallas_src>

<mosaic_0001>
module attributes {stable_mosaic.version = 11 : i64} {
  func.func @_bn_stats_kernel(%arg0: i32, %arg1: memref<512x128xf32, #tpu.memory_space<vmem>>, %arg2: memref<1x128xf32, #tpu.memory_space<vmem>>, %arg3: memref<1x128xf32, #tpu.memory_space<vmem>>) attributes {dimension_semantics = [#tpu.dimension_semantics<arbitrary>], iteration_bounds = array<i64: 1>, scalar_prefetch = 0 : i64, scratch_operands = 0 : i64, tpu.core_type = #tpu.core_type<tc>, window_params = [{transform_indices = @transform_0, window_bounds = array<i64: 512, 128>}, {pipeline_mode = #tpu.pipeline_mode<synchronous>, transform_indices = @transform_1, window_bounds = array<i64: 1, 128>}, {pipeline_mode = #tpu.pipeline_mode<synchronous>, transform_indices = @transform_2, window_bounds = array<i64: 1, 128>}]} {
    %c0_i32 = arith.constant 0 : i32
    %0 = arith.cmpi eq, %arg0, %c0_i32 : i32
    %1 = arith.extui %0 : i1 to i32
    %c0_i32_0 = arith.constant 0 : i32
    %2 = arith.cmpi ne, %1, %c0_i32_0 : i32
    scf.if %2 {
      %cst_11 = arith.constant 0.000000e+00 : f32
      %15 = vector.broadcast %cst_11 : f32 to vector<1x128xf32>
      %c0_12 = arith.constant 0 : index
      %c0_13 = arith.constant 0 : index
      %16 = vector.load %arg2[%c0_12, %c0_13] : memref<1x128xf32, #tpu.memory_space<vmem>>, vector<1x128xf32>
      tpu.vector_store %arg2[%c0_12, %c0_13], %15 {strides = array<i32>} : memref<1x128xf32, #tpu.memory_space<vmem>>, vector<1x128xf32>,
      %cst_14 = arith.constant 0.000000e+00 : f32
      %17 = vector.broadcast %cst_14 : f32 to vector<1x128xf32>
      %c0_15 = arith.constant 0 : index
      %c0_16 = arith.constant 0 : index
      %18 = vector.load %arg3[%c0_15, %c0_16] : memref<1x128xf32, #tpu.memory_space<vmem>>, vector<1x128xf32>
      tpu.vector_store %arg3[%c0_15, %c0_16], %17 {strides = array<i32>} : memref<1x128xf32, #tpu.memory_space<vmem>>, vector<1x128xf32>,
    } else {
    }
    %c0 = arith.constant 0 : index
    %c0_1 = arith.constant 0 : index
    %3 = vector.load %arg1[%c0, %c0_1] : memref<512x128xf32, #tpu.memory_space<vmem>>, vector<512x128xf32>
    %c0_2 = arith.constant 0 : index
    %c0_3 = arith.constant 0 : index
    %4 = vector.load %arg2[%c0_2, %c0_3] : memref<1x128xf32, #tpu.memory_space<vmem>>, vector<1x128xf32>
    %cst = arith.constant dense<0.000000e+00> : vector<128xf32>
    %5 = vector.multi_reduction <add>, %3, %cst [0] : vector<512x128xf32> to vector<128xf32>
    %6 = vector.shape_cast %5 : vector<128xf32> to vector<1x128xf32>
    %7 = arith.addf %4, %6 : vector<1x128xf32>
    %c0_4 = arith.constant 0 : index
    %c0_5 = arith.constant 0 : index
    %8 = vector.load %arg2[%c0_4, %c0_5] : memref<1x128xf32, #tpu.memory_space<vmem>>, vector<1x128xf32>
    tpu.vector_store %arg2[%c0_4, %c0_5], %7 {strides = array<i32>} : memref<1x128xf32, #tpu.memory_space<vmem>>, vector<1x128xf32>,
    %c0_6 = arith.constant 0 : index
    %c0_7 = arith.constant 0 : index
    %9 = vector.load %arg3[%c0_6, %c0_7] : memref<1x128xf32, #tpu.memory_space<vmem>>, vector<1x128xf32>
    %10 = arith.mulf %3, %3 : vector<512x128xf32>
    %cst_8 = arith.constant dense<0.000000e+00> : vector<128xf32>
    %11 = vector.multi_reduction <add>, %10, %cst_8 [0] : vector<512x128xf32> to vector<128xf32>
    %12 = vector.shape_cast %11 : vector<128xf32> to vector<1x128xf32>
    %13 = arith.addf %9, %12 : vector<1x128xf32>
    %c0_9 = arith.constant 0 : index
    %c0_10 = arith.constant 0 : index
    %14 = vector.load %arg3[%c0_9, %c0_10] : memref<1x128xf32, #tpu.memory_space<vmem>>, vector<1x128xf32>
    tpu.vector_store %arg3[%c0_9, %c0_10], %13 {strides = array<i32>} : memref<1x128xf32, #tpu.memory_space<vmem>>, vector<1x128xf32>,
    return
  }
  func.func @transform_0(%arg0: i32) -> (i32, i32) {
    %c0_i32 = arith.constant 0 : i32
    %c0_i32_0 = arith.constant 0 : i32
    return %arg0, %c0_i32 : i32, i32
  }
  func.func @transform_1(%arg0: i32) -> (i32, i32) {
    %c0_i32 = arith.constant 0 : i32
    %c0_i32_0 = arith.constant 0 : i32
    %c0_i32_1 = arith.constant 0 : i32
    return %c0_i32, %c0_i32_0 : i32, i32
  }
  func.func @transform_2(%arg0: i32) -> (i32, i32) {
    %c0_i32 = arith.constant 0 : i32
    %c0_i32_0 = arith.constant 0 : i32
    %c0_i32_1 = arith.constant 0 : i32
    return %c0_i32, %c0_i32_0 : i32, i32
  }
}

module attributes {stable_mosaic.version = 11 : i64} {
  func.func @_bn_relu_conv_kernel(%arg0: i32, %arg1: memref<1x16x16x128xf32, #tpu.memory_space<vmem>>, %arg2: memref<1x128xf32, #tpu.memory_space<vmem>>, %arg3: memref<1x128xf32, #tpu.memory_space<vmem>>, %arg4: memref<9x128x128xf32, #tpu.memory_space<vmem>>, %arg5: memref<1x128xf32, #tpu.memory_space<vmem>>, %arg6: memref<1x14x14x128xf32, #tpu.memory_space<vmem>>, %arg7: memref<16x16x128xf32, #tpu.memory_space<vmem>>) attributes {dimension_semantics = [#tpu.dimension_semantics<parallel>], iteration_bounds = array<i64: 2>, scalar_prefetch = 0 : i64, scratch_operands = 1 : i64, tpu.core_type = #tpu.core_type<tc>, window_params = [{transform_indices = @transform_0, window_bounds = array<i64: 1, 16, 16, 128>}, {pipeline_mode = #tpu.pipeline_mode<synchronous>, transform_indices = @transform_1, window_bounds = array<i64: 1, 128>}, {pipeline_mode = #tpu.pipeline_mode<synchronous>, transform_indices = @transform_2, window_bounds = array<i64: 1, 128>}, {pipeline_mode = #tpu.pipeline_mode<synchronous>, transform_indices = @transform_3, window_bounds = array<i64: 9, 128, 128>}, {pipeline_mode = #tpu.pipeline_mode<synchronous>, transform_indices = @transform_4, window_bounds = array<i64: 1, 128>}, {transform_indices = @transform_5, window_bounds = array<i64: 1, 14, 14, 128>}]} {
    %c0 = arith.constant 0 : index
    %c0_0 = arith.constant 0 : index
    %c0_1 = arith.constant 0 : index
    %c0_2 = arith.constant 0 : index
    %0 = vector.load %arg1[%c0, %c0_0, %c0_1, %c0_2] : memref<1x16x16x128xf32, #tpu.memory_space<vmem>>, vector<1x16x16x128xf32>
    %1 = vector.shape_cast %0 : vector<1x16x16x128xf32> to vector<16x16x128xf32>
    %c0_3 = arith.constant 0 : index
    %c0_4 = arith.constant 0 : index
    %2 = vector.load %arg2[%c0_3, %c0_4] : memref<1x128xf32, #tpu.memory_space<vmem>>, vector<1x128xf32>
    %3 = vector.shape_cast %2 : vector<1x128xf32> to vector<128xf32>
    %4 = vector.shape_cast %3 : vector<128xf32> to vector<1x1x128xf32>
    %5 = vector.broadcast %4 : vector<1x1x128xf32> to vector<16x16x128xf32>
    %6 = arith.mulf %1, %5 : vector<16x16x128xf32>
    %c0_5 = arith.constant 0 : index
    %c0_6 = arith.constant 0 : index
    %7 = vector.load %arg3[%c0_5, %c0_6] : memref<1x128xf32, #tpu.memory_space<vmem>>, vector<1x128xf32>
    %8 = vector.shape_cast %7 : vector<1x128xf32> to vector<128xf32>
    %9 = vector.shape_cast %8 : vector<128xf32> to vector<1x1x128xf32>
    %10 = vector.broadcast %9 : vector<1x1x128xf32> to vector<16x16x128xf32>
    %11 = arith.addf %6, %10 : vector<16x16x128xf32>
    %cst = arith.constant 0.000000e+00 : f32
    %12 = vector.broadcast %cst : f32 to vector<16x16x128xf32>
    %13 = arith.maximumf %11, %12 : vector<16x16x128xf32>
    %c0_7 = arith.constant 0 : index
    %c0_8 = arith.constant 0 : index
    %c0_9 = arith.constant 0 : index
    %14 = vector.load %arg7[%c0_7, %c0_8, %c0_9] : memref<16x16x128xf32, #tpu.memory_space<vmem>>, vector<16x16x128xf32>
    tpu.vector_store %arg7[%c0_7, %c0_8, %c0_9], %13 {strides = array<i32>} : memref<16x16x128xf32, #tpu.memory_space<vmem>>, vector<16x16x128xf32>,
    %c0_10 = arith.constant 0 : index
    %c0_11 = arith.constant 0 : index
    %15 = vector.load %arg5[%c0_10, %c0_11] : memref<1x128xf32, #tpu.memory_space<vmem>>, vector<1x128xf32>
    %c0_i32 = arith.constant 0 : i32
    %c14_i32 = arith.constant 14 : i32
    %16 = arith.addi %c0_i32, %c14_i32 : i32
    %c1_i32 = arith.constant 1 : i32
    scf.for %arg8 = %c0_i32 to %16 step %c1_i32  : i32 {
      %cst_13 = arith.constant 0.000000e+00 : f32
      %17 = vector.broadcast %cst_13 : f32 to vector<14x128xf32>
      %c1_i32_14 = arith.constant 1 : i32
      %18 = arith.muli %arg8, %c1_i32_14 : i32
      %c0_i32_15 = arith.constant 0 : i32
      %19 = arith.addi %18, %c0_i32_15 : i32
      %20 = arith.index_cast %19 : i32 to index
      %c0_16 = arith.constant 0 : index
      %c0_17 = arith.constant 0 : index
      %21 = vector.load %arg7[%20, %c0_16, %c0_17] : memref<16x16x128xf32, #tpu.memory_space<vmem>>, vector<1x14x128xf32>
      %22 = vector.shape_cast %21 : vector<1x14x128xf32> to vector<14x128xf32>
      %c0_18 = arith.constant 0 : index
      %c0_19 = arith.constant 0 : index
      %c0_20 = arith.constant 0 : index
      %23 = vector.load %arg4[%c0_18, %c0_19, %c0_20] : memref<9x128x128xf32, #tpu.memory_space<vmem>>, vector<1x128x128xf32>
      %24 = vector.shape_cast %23 : vector<1x128x128xf32> to vector<128x128xf32>
      %cst_21 = arith.constant dense<0.000000e+00> : vector<14x128xf32>
      %25 = tpu.matmul %22, %24, %cst_21 {dimension_numbers = #tpu.dot_dimension_numbers<[1], [0], [0], [1], [0, 0, 1, 1], [], []>} : vector<14x128xf32>, vector<128x128xf32>, vector<14x128xf32> -> vector<14x128xf32>
      %26 = arith.addf %17, %25 : vector<14x128xf32>
      %c1_i32_22 = arith.constant 1 : i32
      %27 = arith.muli %arg8, %c1_i32_22 : i32
      %c0_i32_23 = arith.constant 0 : i32
      %28 = arith.addi %27, %c0_i32_23 : i32
      %29 = arith.index_cast %28 : i32 to index
      %c1 = arith.constant 1 : index
      %c0_24 = arith.constant 0 : index
      %30 = vector.load %arg7[%29, %c1, %c0_24] : memref<16x16x128xf32, #tpu.memory_space<vmem>>, vector<1x14x128xf32>
      %31 = vector.shape_cast %30 : vector<1x14x128xf32> to vector<14x128xf32>
      %c1_25 = arith.constant 1 : index
      %c0_26 = arith.constant 0 : index
      %c0_27 = arith.constant 0 : index
      %32 = vector.load %arg4[%c1_25, %c0_26, %c0_27] : memref<9x128x128xf32, #tpu.memory_space<vmem>>, vector<1x128x128xf32>
      %33 = vector.shape_cast %32 : vector<1x128x128xf32> to vector<128x128xf32>
      %cst_28 = arith.constant dense<0.000000e+00> : vector<14x128xf32>
      %34 = tpu.matmul %31, %33, %cst_28 {dimension_numbers = #tpu.dot_dimension_numbers<[1], [0], [0], [1], [0, 0, 1, 1], [], []>} : vector<14x128xf32>, vector<128x128xf32>, vector<14x128xf32> -> vector<14x128xf32>
      %35 = arith.addf %26, %34 : vector<14x128xf32>
      %c1_i32_29 = arith.constant 1 : i32
      %36 = arith.muli %arg8, %c1_i32_29 : i32
      %c0_i32_30 = arith.constant 0 : i32
      %37 = arith.addi %36, %c0_i32_30 : i32
      %38 = arith.index_cast %37 : i32 to index
      %c2 = arith.constant 2 : index
      %c0_31 = arith.constant 0 : index
      %39 = vector.load %arg7[%38, %c2, %c0_31] : memref<16x16x128xf32, #tpu.memory_space<vmem>>, vector<1x14x128xf32>
      %40 = vector.shape_cast %39 : vector<1x14x128xf32> to vector<14x128xf32>
      %c2_32 = arith.constant 2 : index
      %c0_33 = arith.constant 0 : index
      %c0_34 = arith.constant 0 : index
      %41 = vector.load %arg4[%c2_32, %c0_33, %c0_34] : memref<9x128x128xf32, #tpu.memory_space<vmem>>, vector<1x128x128xf32>
      %42 = vector.shape_cast %41 : vector<1x128x128xf32> to vector<128x128xf32>
      %cst_35 = arith.constant dense<0.000000e+00> : vector<14x128xf32>
      %43 = tpu.matmul %40, %42, %cst_35 {dimension_numbers = #tpu.dot_dimension_numbers<[1], [0], [0], [1], [0, 0, 1, 1], [], []>} : vector<14x128xf32>, vector<128x128xf32>, vector<14x128xf32> -> vector<14x128xf32>
      %44 = arith.addf %35, %43 : vector<14x128xf32>
      %c1_i32_36 = arith.constant 1 : i32
      %45 = arith.muli %arg8, %c1_i32_36 : i32
      %c1_i32_37 = arith.constant 1 : i32
      %46 = arith.addi %45, %c1_i32_37 : i32
      %47 = arith.index_cast %46 : i32 to index
      %c0_38 = arith.constant 0 : index
      %c0_39 = arith.constant 0 : index
      %48 = vector.load %arg7[%47, %c0_38, %c0_39] : memref<16x16x128xf32, #tpu.memory_space<vmem>>, vector<1x14x128xf32>
      %49 = vector.shape_cast %48 : vector<1x14x128xf32> to vector<14x128xf32>
      %c3 = arith.constant 3 : index
      %c0_40 = arith.constant 0 : index
      %c0_41 = arith.constant 0 : index
      %50 = vector.load %arg4[%c3, %c0_40, %c0_41] : memref<9x128x128xf32, #tpu.memory_space<vmem>>, vector<1x128x128xf32>
      %51 = vector.shape_cast %50 : vector<1x128x128xf32> to vector<128x128xf32>
      %cst_42 = arith.constant dense<0.000000e+00> : vector<14x128xf32>
      %52 = tpu.matmul %49, %51, %cst_42 {dimension_numbers = #tpu.dot_dimension_numbers<[1], [0], [0], [1], [0, 0, 1, 1], [], []>} : vector<14x128xf32>, vector<128x128xf32>, vector<14x128xf32> -> vector<14x128xf32>
      %53 = arith.addf %44, %52 : vector<14x128xf32>
      %c1_i32_43 = arith.constant 1 : i32
      %54 = arith.muli %arg8, %c1_i32_43 : i32
      %c1_i32_44 = arith.constant 1 : i32
      %55 = arith.addi %54, %c1_i32_44 : i32
      %56 = arith.index_cast %55 : i32 to index
      %c1_45 = arith.constant 1 : index
      %c0_46 = arith.constant 0 : index
      %57 = vector.load %arg7[%56, %c1_45, %c0_46] : memref<16x16x128xf32, #tpu.memory_space<vmem>>, vector<1x14x128xf32>
      %58 = vector.shape_cast %57 : vector<1x14x128xf32> to vector<14x128xf32>
      %c4 = arith.constant 4 : index
      %c0_47 = arith.constant 0 : index
      %c0_48 = arith.constant 0 : index
      %59 = vector.load %arg4[%c4, %c0_47, %c0_48] : memref<9x128x128xf32, #tpu.memory_space<vmem>>, vector<1x128x128xf32>
      %60 = vector.shape_cast %59 : vector<1x128x128xf32> to vector<128x128xf32>
      %cst_49 = arith.constant dense<0.000000e+00> : vector<14x128xf32>
      %61 = tpu.matmul %58, %60, %cst_49 {dimension_numbers = #tpu.dot_dimension_numbers<[1], [0], [0], [1], [0, 0, 1, 1], [], []>} : vector<14x128xf32>, vector<128x128xf32>, vector<14x128xf32> -> vector<14x128xf32>
      %62 = arith.addf %53, %61 : vector<14x128xf32>
      %c1_i32_50 = arith.constant 1 : i32
      %63 = arith.muli %arg8, %c1_i32_50 : i32
      %c1_i32_51 = arith.constant 1 : i32
      %64 = arith.addi %63, %c1_i32_51 : i32
      %65 = arith.index_cast %64 : i32 to index
      %c2_52 = arith.constant 2 : index
      %c0_53 = arith.constant 0 : index
      %66 = vector.load %arg7[%65, %c2_52, %c0_53] : memref<16x16x128xf32, #tpu.memory_space<vmem>>, vector<1x14x128xf32>
      %67 = vector.shape_cast %66 : vector<1x14x128xf32> to vector<14x128xf32>
      %c5 = arith.constant 5 : index
      %c0_54 = arith.constant 0 : index
      %c0_55 = arith.constant 0 : index
      %68 = vector.load %arg4[%c5, %c0_54, %c0_55] : memref<9x128x128xf32, #tpu.memory_space<vmem>>, vector<1x128x128xf32>
      %69 = vector.shape_cast %68 : vector<1x128x128xf32> to vector<128x128xf32>
      %cst_56 = arith.constant dense<0.000000e+00> : vector<14x128xf32>
      %70 = tpu.matmul %67, %69, %cst_56 {dimension_numbers = #tpu.dot_dimension_numbers<[1], [0], [0], [1], [0, 0, 1, 1], [], []>} : vector<14x128xf32>, vector<128x128xf32>, vector<14x128xf32> -> vector<14x128xf32>
      %71 = arith.addf %62, %70 : vector<14x128xf32>
      %c1_i32_57 = arith.constant 1 : i32
      %72 = arith.muli %arg8, %c1_i32_57 : i32
      %c2_i32 = arith.constant 2 : i32
      %73 = arith.addi %72, %c2_i32 : i32
      %74 = arith.index_cast %73 : i32 to index
      %c0_58 = arith.constant 0 : index
      %c0_59 = arith.constant 0 : index
      %75 = vector.load %arg7[%74, %c0_58, %c0_59] : memref<16x16x128xf32, #tpu.memory_space<vmem>>, vector<1x14x128xf32>
      %76 = vector.shape_cast %75 : vector<1x14x128xf32> to vector<14x128xf32>
      %c6 = arith.constant 6 : index
      %c0_60 = arith.constant 0 : index
      %c0_61 = arith.constant 0 : index
      %77 = vector.load %arg4[%c6, %c0_60, %c0_61] : memref<9x128x128xf32, #tpu.memory_space<vmem>>, vector<1x128x128xf32>
      %78 = vector.shape_cast %77 : vector<1x128x128xf32> to vector<128x128xf32>
      %cst_62 = arith.constant dense<0.000000e+00> : vector<14x128xf32>
      %79 = tpu.matmul %76, %78, %cst_62 {dimension_numbers = #tpu.dot_dimension_numbers<[1], [0], [0], [1], [0, 0, 1, 1], [], []>} : vector<14x128xf32>, vector<128x128xf32>, vector<14x128xf32> -> vector<14x128xf32>
      %80 = arith.addf %71, %79 : vector<14x128xf32>
      %c1_i32_63 = arith.constant 1 : i32
      %81 = arith.muli %arg8, %c1_i32_63 : i32
      %c2_i32_64 = arith.constant 2 : i32
      %82 = arith.addi %81, %c2_i32_64 : i32
      %83 = arith.index_cast %82 : i32 to index
      %c1_65 = arith.constant 1 : index
      %c0_66 = arith.constant 0 : index
      %84 = vector.load %arg7[%83, %c1_65, %c0_66] : memref<16x16x128xf32, #tpu.memory_space<vmem>>, vector<1x14x128xf32>
      %85 = vector.shape_cast %84 : vector<1x14x128xf32> to vector<14x128xf32>
      %c7 = arith.constant 7 : index
      %c0_67 = arith.constant 0 : index
      %c0_68 = arith.constant 0 : index
      %86 = vector.load %arg4[%c7, %c0_67, %c0_68] : memref<9x128x128xf32, #tpu.memory_space<vmem>>, vector<1x128x128xf32>
      %87 = vector.shape_cast %86 : vector<1x128x128xf32> to vector<128x128xf32>
      %cst_69 = arith.constant dense<0.000000e+00> : vector<14x128xf32>
      %88 = tpu.matmul %85, %87, %cst_69 {dimension_numbers = #tpu.dot_dimension_numbers<[1], [0], [0], [1], [0, 0, 1, 1], [], []>} : vector<14x128xf32>, vector<128x128xf32>, vector<14x128xf32> -> vector<14x128xf32>
      %89 = arith.addf %80, %88 : vector<14x128xf32>
      %c1_i32_70 = arith.constant 1 : i32
      %90 = arith.muli %arg8, %c1_i32_70 : i32
      %c2_i32_71 = arith.constant 2 : i32
      %91 = arith.addi %90, %c2_i32_71 : i32
      %92 = arith.index_cast %91 : i32 to index
      %c2_72 = arith.constant 2 : index
      %c0_73 = arith.constant 0 : index
      %93 = vector.load %arg7[%92, %c2_72, %c0_73] : memref<16x16x128xf32, #tpu.memory_space<vmem>>, vector<1x14x128xf32>
      %94 = vector.shape_cast %93 : vector<1x14x128xf32> to vector<14x128xf32>
      %c8 = arith.constant 8 : index
      %c0_74 = arith.constant 0 : index
      %c0_75 = arith.constant 0 : index
      %95 = vector.load %arg4[%c8, %c0_74, %c0_75] : memref<9x128x128xf32, #tpu.memory_space<vmem>>, vector<1x128x128xf32>
      %96 = vector.shape_cast %95 : vector<1x128x128xf32> to vector<128x128xf32>
      %cst_76 = arith.constant dense<0.000000e+00> : vector<14x128xf32>
      %97 = tpu.matmul %94, %96, %cst_76 {dimension_numbers = #tpu.dot_dimension_numbers<[1], [0], [0], [1], [0, 0, 1, 1], [], []>} : vector<14x128xf32>, vector<128x128xf32>, vector<14x128xf32> -> vector<14x128xf32>
      %98 = arith.addf %89, %97 : vector<14x128xf32>
      %99 = vector.broadcast %15 : vector<1x128xf32> to vector<14x128xf32>
      %100 = arith.addf %98, %99 : vector<14x128xf32>
      %c0_77 = arith.constant 0 : index
      %101 = arith.index_cast %arg8 : i32 to index
      %c0_78 = arith.constant 0 : index
      %c0_79 = arith.constant 0 : index
      %102 = vector.load %arg6[%c0_77, %101, %c0_78, %c0_79] : memref<1x14x14x128xf32, #tpu.memory_space<vmem>>, vector<1x1x14x128xf32>
      %103 = vector.shape_cast %102 : vector<1x1x14x128xf32> to vector<14x128xf32>
      %104 = vector.shape_cast %100 : vector<14x128xf32> to vector<1x1x14x128xf32>
      tpu.vector_store %arg6[%c0_77, %101, %c0_78, %c0_79], %104 {strides = array<i32>} : memref<1x14x14x128xf32, #tpu.memory_space<vmem>>, vector<1x1x14x128xf32>,
    }
    %c14_i32_12 = arith.constant 14 : i32
    return
  }
  func.func @transform_0(%arg0: i32) -> (i32, i32, i32, i32) {
    %c0_i32 = arith.constant 0 : i32
    %c0_i32_0 = arith.constant 0 : i32
    %c0_i32_1 = arith.constant 0 : i32
    %c0_i32_2 = arith.constant 0 : i32
    return %arg0, %c0_i32, %c0_i32_0, %c0_i32_1 : i32, i32, i32, i32
  }
  func.func @transform_1(%arg0: i32) -> (i32, i32) {
    %c0_i32 = arith.constant 0 : i32
    %c0_i32_0 = arith.constant 0 : i32
    %c0_i32_1 = arith.constant 0 : i32
    return %c0_i32, %c0_i32_0 : i32, i32
  }
  func.func @transform_2(%arg0: i32) -> (i32, i32) {
    %c0_i32 = arith.constant 0 : i32
    %c0_i32_0 = arith.constant 0 : i32
    %c0_i32_1 = arith.constant 0 : i32
    return %c0_i32, %c0_i32_0 : i32, i32
  }
  func.func @transform_3(%arg0: i32) -> (i32, i32, i32) {
    %c0_i32 = arith.constant 0 : i32
    %c0_i32_0 = arith.constant 0 : i32
    %c0_i32_1 = arith.constant 0 : i32
    %c0_i32_2 = arith.constant 0 : i32
    return %c0_i32, %c0_i32_0, %c0_i32_1 : i32, i32, i32
  }
  func.func @transform_4(%arg0: i32) -> (i32, i32) {
    %c0_i32 = arith.constant 0 : i32
    %c0_i32_0 = arith.constant 0 : i32
    %c0_i32_1 = arith.constant 0 : i32
    return %c0_i32, %c0_i32_0 : i32, i32
  }
  func.func @transform_5(%arg0: i32) -> (i32, i32, i32, i32) {
    %c0_i32 = arith.constant 0 : i32
    %c0_i32_0 = arith.constant 0 : i32
    %c0_i32_1 = arith.constant 0 : i32
    %c0_i32_2 = arith.constant 0 : i32
    return %arg0, %c0_i32, %c0_i32_0, %c0_i32_1 : i32, i32, i32, i32
  }
}

module attributes {stable_mosaic.version = 11 : i64} {
  func.func @_bn_stats_kernel(%arg0: i32, %arg1: memref<392x128xf32, #tpu.memory_space<vmem>>, %arg2: memref<1x128xf32, #tpu.memory_space<vmem>>, %arg3: memref<1x128xf32, #tpu.memory_space<vmem>>) attributes {dimension_semantics = [#tpu.dimension_semantics<arbitrary>], iteration_bounds = array<i64: 1>, scalar_prefetch = 0 : i64, scratch_operands = 0 : i64, tpu.core_type = #tpu.core_type<tc>, window_params = [{transform_indices = @transform_0, window_bounds = array<i64: 392, 128>}, {pipeline_mode = #tpu.pipeline_mode<synchronous>, transform_indices = @transform_1, window_bounds = array<i64: 1, 128>}, {pipeline_mode = #tpu.pipeline_mode<synchronous>, transform_indices = @transform_2, window_bounds = array<i64: 1, 128>}]} {
    %c0_i32 = arith.constant 0 : i32
    %0 = arith.cmpi eq, %arg0, %c0_i32 : i32
    %1 = arith.extui %0 : i1 to i32
    %c0_i32_0 = arith.constant 0 : i32
    %2 = arith.cmpi ne, %1, %c0_i32_0 : i32
    scf.if %2 {
      %cst_11 = arith.constant 0.000000e+00 : f32
      %15 = vector.broadcast %cst_11 : f32 to vector<1x128xf32>
      %c0_12 = arith.constant 0 : index
      %c0_13 = arith.constant 0 : index
      %16 = vector.load %arg2[%c0_12, %c0_13] : memref<1x128xf32, #tpu.memory_space<vmem>>, vector<1x128xf32>
      tpu.vector_store %arg2[%c0_12, %c0_13], %15 {strides = array<i32>} : memref<1x128xf32, #tpu.memory_space<vmem>>, vector<1x128xf32>,
      %cst_14 = arith.constant 0.000000e+00 : f32
      %17 = vector.broadcast %cst_14 : f32 to vector<1x128xf32>
      %c0_15 = arith.constant 0 : index
      %c0_16 = arith.constant 0 : index
      %18 = vector.load %arg3[%c0_15, %c0_16] : memref<1x128xf32, #tpu.memory_space<vmem>>, vector<1x128xf32>
      tpu.vector_store %arg3[%c0_15, %c0_16], %17 {strides = array<i32>} : memref<1x128xf32, #tpu.memory_space<vmem>>, vector<1x128xf32>,
    } else {
    }
    %c0 = arith.constant 0 : index
    %c0_1 = arith.constant 0 : index
    %3 = vector.load %arg1[%c0, %c0_1] : memref<392x128xf32, #tpu.memory_space<vmem>>, vector<392x128xf32>
    %c0_2 = arith.constant 0 : index
    %c0_3 = arith.constant 0 : index
    %4 = vector.load %arg2[%c0_2, %c0_3] : memref<1x128xf32, #tpu.memory_space<vmem>>, vector<1x128xf32>
    %cst = arith.constant dense<0.000000e+00> : vector<128xf32>
    %5 = vector.multi_reduction <add>, %3, %cst [0] : vector<392x128xf32> to vector<128xf32>
    %6 = vector.shape_cast %5 : vector<128xf32> to vector<1x128xf32>
    %7 = arith.addf %4, %6 : vector<1x128xf32>
    %c0_4 = arith.constant 0 : index
    %c0_5 = arith.constant 0 : index
    %8 = vector.load %arg2[%c0_4, %c0_5] : memref<1x128xf32, #tpu.memory_space<vmem>>, vector<1x128xf32>
    tpu.vector_store %arg2[%c0_4, %c0_5], %7 {strides = array<i32>} : memref<1x128xf32, #tpu.memory_space<vmem>>, vector<1x128xf32>,
    %c0_6 = arith.constant 0 : index
    %c0_7 = arith.constant 0 : index
    %9 = vector.load %arg3[%c0_6, %c0_7] : memref<1x128xf32, #tpu.memory_space<vmem>>, vector<1x128xf32>
    %10 = arith.mulf %3, %3 : vector<392x128xf32>
    %cst_8 = arith.constant dense<0.000000e+00> : vector<128xf32>
    %11 = vector.multi_reduction <add>, %10, %cst_8 [0] : vector<392x128xf32> to vector<128xf32>
    %12 = vector.shape_cast %11 : vector<128xf32> to vector<1x128xf32>
    %13 = arith.addf %9, %12 : vector<1x128xf32>
    %c0_9 = arith.constant 0 : index
    %c0_10 = arith.constant 0 : index
    %14 = vector.load %arg3[%c0_9, %c0_10] : memref<1x128xf32, #tpu.memory_space<vmem>>, vector<1x128xf32>
    tpu.vector_store %arg3[%c0_9, %c0_10], %13 {strides = array<i32>} : memref<1x128xf32, #tpu.memory_space<vmem>>, vector<1x128xf32>,
    return
  }
  func.func @transform_0(%arg0: i32) -> (i32, i32) {
    %c0_i32 = arith.constant 0 : i32
    %c0_i32_0 = arith.constant 0 : i32
    return %arg0, %c0_i32 : i32, i32
  }
  func.func @transform_1(%arg0: i32) -> (i32, i32) {
    %c0_i32 = arith.constant 0 : i32
    %c0_i32_0 = arith.constant 0 : i32
    %c0_i32_1 = arith.constant 0 : i32
    return %c0_i32, %c0_i32_0 : i32, i32
  }
  func.func @transform_2(%arg0: i32) -> (i32, i32) {
    %c0_i32 = arith.constant 0 : i32
    %c0_i32_0 = arith.constant 0 : i32
    %c0_i32_1 = arith.constant 0 : i32
    return %c0_i32, %c0_i32_0 : i32, i32
  }
}

module attributes {stable_mosaic.version = 11 : i64} {
  func.func @_bn_relu_conv_kernel(%arg0: i32, %arg1: memref<1x14x14x128xf32, #tpu.memory_space<vmem>>, %arg2: memref<1x128xf32, #tpu.memory_space<vmem>>, %arg3: memref<1x128xf32, #tpu.memory_space<vmem>>, %arg4: memref<9x128x128xf32, #tpu.memory_space<vmem>>, %arg5: memref<1x128xf32, #tpu.memory_space<vmem>>, %arg6: memref<1x12x12x128xf32, #tpu.memory_space<vmem>>, %arg7: memref<14x14x128xf32, #tpu.memory_space<vmem>>) attributes {dimension_semantics = [#tpu.dimension_semantics<parallel>], iteration_bounds = array<i64: 2>, scalar_prefetch = 0 : i64, scratch_operands = 1 : i64, tpu.core_type = #tpu.core_type<tc>, window_params = [{transform_indices = @transform_0, window_bounds = array<i64: 1, 14, 14, 128>}, {pipeline_mode = #tpu.pipeline_mode<synchronous>, transform_indices = @transform_1, window_bounds = array<i64: 1, 128>}, {pipeline_mode = #tpu.pipeline_mode<synchronous>, transform_indices = @transform_2, window_bounds = array<i64: 1, 128>}, {pipeline_mode = #tpu.pipeline_mode<synchronous>, transform_indices = @transform_3, window_bounds = array<i64: 9, 128, 128>}, {pipeline_mode = #tpu.pipeline_mode<synchronous>, transform_indices = @transform_4, window_bounds = array<i64: 1, 128>}, {transform_indices = @transform_5, window_bounds = array<i64: 1, 12, 12, 128>}]} {
    %c0 = arith.constant 0 : index
    %c0_0 = arith.constant 0 : index
    %c0_1 = arith.constant 0 : index
    %c0_2 = arith.constant 0 : index
    %0 = vector.load %arg1[%c0, %c0_0, %c0_1, %c0_2] : memref<1x14x14x128xf32, #tpu.memory_space<vmem>>, vector<1x14x14x128xf32>
    %1 = vector.shape_cast %0 : vector<1x14x14x128xf32> to vector<14x14x128xf32>
    %c0_3 = arith.constant 0 : index
    %c0_4 = arith.constant 0 : index
    %2 = vector.load %arg2[%c0_3, %c0_4] : memref<1x128xf32, #tpu.memory_space<vmem>>, vector<1x128xf32>
    %3 = vector.shape_cast %2 : vector<1x128xf32> to vector<128xf32>
    %4 = vector.shape_cast %3 : vector<128xf32> to vector<1x1x128xf32>
    %5 = vector.broadcast %4 : vector<1x1x128xf32> to vector<14x14x128xf32>
    %6 = arith.mulf %1, %5 : vector<14x14x128xf32>
    %c0_5 = arith.constant 0 : index
    %c0_6 = arith.constant 0 : index
    %7 = vector.load %arg3[%c0_5, %c0_6] : memref<1x128xf32, #tpu.memory_space<vmem>>, vector<1x128xf32>
    %8 = vector.shape_cast %7 : vector<1x128xf32> to vector<128xf32>
    %9 = vector.shape_cast %8 : vector<128xf32> to vector<1x1x128xf32>
    %10 = vector.broadcast %9 : vector<1x1x128xf32> to vector<14x14x128xf32>
    %11 = arith.addf %6, %10 : vector<14x14x128xf32>
    %cst = arith.constant 0.000000e+00 : f32
    %12 = vector.broadcast %cst : f32 to vector<14x14x128xf32>
    %13 = arith.maximumf %11, %12 : vector<14x14x128xf32>
    %c0_7 = arith.constant 0 : index
    %c0_8 = arith.constant 0 : index
    %c0_9 = arith.constant 0 : index
    %14 = vector.load %arg7[%c0_7, %c0_8, %c0_9] : memref<14x14x128xf32, #tpu.memory_space<vmem>>, vector<14x14x128xf32>
    tpu.vector_store %arg7[%c0_7, %c0_8, %c0_9], %13 {strides = array<i32>} : memref<14x14x128xf32, #tpu.memory_space<vmem>>, vector<14x14x128xf32>,
    %c0_10 = arith.constant 0 : index
    %c0_11 = arith.constant 0 : index
    %15 = vector.load %arg5[%c0_10, %c0_11] : memref<1x128xf32, #tpu.memory_space<vmem>>, vector<1x128xf32>
    %c0_i32 = arith.constant 0 : i32
    %c12_i32 = arith.constant 12 : i32
    %16 = arith.addi %c0_i32, %c12_i32 : i32
    %c1_i32 = arith.constant 1 : i32
    scf.for %arg8 = %c0_i32 to %16 step %c1_i32  : i32 {
      %cst_13 = arith.constant 0.000000e+00 : f32
      %17 = vector.broadcast %cst_13 : f32 to vector<12x128xf32>
      %c1_i32_14 = arith.constant 1 : i32
      %18 = arith.muli %arg8, %c1_i32_14 : i32
      %c0_i32_15 = arith.constant 0 : i32
      %19 = arith.addi %18, %c0_i32_15 : i32
      %20 = arith.index_cast %19 : i32 to index
      %c0_16 = arith.constant 0 : index
      %c0_17 = arith.constant 0 : index
      %21 = vector.load %arg7[%20, %c0_16, %c0_17] : memref<14x14x128xf32, #tpu.memory_space<vmem>>, vector<1x12x128xf32>
      %22 = vector.shape_cast %21 : vector<1x12x128xf32> to vector<12x128xf32>
      %c0_18 = arith.constant 0 : index
      %c0_19 = arith.constant 0 : index
      %c0_20 = arith.constant 0 : index
      %23 = vector.load %arg4[%c0_18, %c0_19, %c0_20] : memref<9x128x128xf32, #tpu.memory_space<vmem>>, vector<1x128x128xf32>
      %24 = vector.shape_cast %23 : vector<1x128x128xf32> to vector<128x128xf32>
      %cst_21 = arith.constant dense<0.000000e+00> : vector<12x128xf32>
      %25 = tpu.matmul %22, %24, %cst_21 {dimension_numbers = #tpu.dot_dimension_numbers<[1], [0], [0], [1], [0, 0, 1, 1], [], []>} : vector<12x128xf32>, vector<128x128xf32>, vector<12x128xf32> -> vector<12x128xf32>
      %26 = arith.addf %17, %25 : vector<12x128xf32>
      %c1_i32_22 = arith.constant 1 : i32
      %27 = arith.muli %arg8, %c1_i32_22 : i32
      %c0_i32_23 = arith.constant 0 : i32
      %28 = arith.addi %27, %c0_i32_23 : i32
      %29 = arith.index_cast %28 : i32 to index
      %c1 = arith.constant 1 : index
      %c0_24 = arith.constant 0 : index
      %30 = vector.load %arg7[%29, %c1, %c0_24] : memref<14x14x128xf32, #tpu.memory_space<vmem>>, vector<1x12x128xf32>
      %31 = vector.shape_cast %30 : vector<1x12x128xf32> to vector<12x128xf32>
      %c1_25 = arith.constant 1 : index
      %c0_26 = arith.constant 0 : index
      %c0_27 = arith.constant 0 : index
      %32 = vector.load %arg4[%c1_25, %c0_26, %c0_27] : memref<9x128x128xf32, #tpu.memory_space<vmem>>, vector<1x128x128xf32>
      %33 = vector.shape_cast %32 : vector<1x128x128xf32> to vector<128x128xf32>
      %cst_28 = arith.constant dense<0.000000e+00> : vector<12x128xf32>
      %34 = tpu.matmul %31, %33, %cst_28 {dimension_numbers = #tpu.dot_dimension_numbers<[1], [0], [0], [1], [0, 0, 1, 1], [], []>} : vector<12x128xf32>, vector<128x128xf32>, vector<12x128xf32> -> vector<12x128xf32>
      %35 = arith.addf %26, %34 : vector<12x128xf32>
      %c1_i32_29 = arith.constant 1 : i32
      %36 = arith.muli %arg8, %c1_i32_29 : i32
      %c0_i32_30 = arith.constant 0 : i32
      %37 = arith.addi %36, %c0_i32_30 : i32
      %38 = arith.index_cast %37 : i32 to index
      %c2 = arith.constant 2 : index
      %c0_31 = arith.constant 0 : index
      %39 = vector.load %arg7[%38, %c2, %c0_31] : memref<14x14x128xf32, #tpu.memory_space<vmem>>, vector<1x12x128xf32>
      %40 = vector.shape_cast %39 : vector<1x12x128xf32> to vector<12x128xf32>
      %c2_32 = arith.constant 2 : index
      %c0_33 = arith.constant 0 : index
      %c0_34 = arith.constant 0 : index
      %41 = vector.load %arg4[%c2_32, %c0_33, %c0_34] : memref<9x128x128xf32, #tpu.memory_space<vmem>>, vector<1x128x128xf32>
      %42 = vector.shape_cast %41 : vector<1x128x128xf32> to vector<128x128xf32>
      %cst_35 = arith.constant dense<0.000000e+00> : vector<12x128xf32>
      %43 = tpu.matmul %40, %42, %cst_35 {dimension_numbers = #tpu.dot_dimension_numbers<[1], [0], [0], [1], [0, 0, 1, 1], [], []>} : vector<12x128xf32>, vector<128x128xf32>, vector<12x128xf32> -> vector<12x128xf32>
      %44 = arith.addf %35, %43 : vector<12x128xf32>
      %c1_i32_36 = arith.constant 1 : i32
      %45 = arith.muli %arg8, %c1_i32_36 : i32
      %c1_i32_37 = arith.constant 1 : i32
      %46 = arith.addi %45, %c1_i32_37 : i32
      %47 = arith.index_cast %46 : i32 to index
      %c0_38 = arith.constant 0 : index
      %c0_39 = arith.constant 0 : index
      %48 = vector.load %arg7[%47, %c0_38, %c0_39] : memref<14x14x128xf32, #tpu.memory_space<vmem>>, vector<1x12x128xf32>
      %49 = vector.shape_cast %48 : vector<1x12x128xf32> to vector<12x128xf32>
      %c3 = arith.constant 3 : index
      %c0_40 = arith.constant 0 : index
      %c0_41 = arith.constant 0 : index
      %50 = vector.load %arg4[%c3, %c0_40, %c0_41] : memref<9x128x128xf32, #tpu.memory_space<vmem>>, vector<1x128x128xf32>
      %51 = vector.shape_cast %50 : vector<1x128x128xf32> to vector<128x128xf32>
      %cst_42 = arith.constant dense<0.000000e+00> : vector<12x128xf32>
      %52 = tpu.matmul %49, %51, %cst_42 {dimension_numbers = #tpu.dot_dimension_numbers<[1], [0], [0], [1], [0, 0, 1, 1], [], []>} : vector<12x128xf32>, vector<128x128xf32>, vector<12x128xf32> -> vector<12x128xf32>
      %53 = arith.addf %44, %52 : vector<12x128xf32>
      %c1_i32_43 = arith.constant 1 : i32
      %54 = arith.muli %arg8, %c1_i32_43 : i32
      %c1_i32_44 = arith.constant 1 : i32
      %55 = arith.addi %54, %c1_i32_44 : i32
      %56 = arith.index_cast %55 : i32 to index
      %c1_45 = arith.constant 1 : index
      %c0_46 = arith.constant 0 : index
      %57 = vector.load %arg7[%56, %c1_45, %c0_46] : memref<14x14x128xf32, #tpu.memory_space<vmem>>, vector<1x12x128xf32>
      %58 = vector.shape_cast %57 : vector<1x12x128xf32> to vector<12x128xf32>
      %c4 = arith.constant 4 : index
      %c0_47 = arith.constant 0 : index
      %c0_48 = arith.constant 0 : index
      %59 = vector.load %arg4[%c4, %c0_47, %c0_48] : memref<9x128x128xf32, #tpu.memory_space<vmem>>, vector<1x128x128xf32>
      %60 = vector.shape_cast %59 : vector<1x128x128xf32> to vector<128x128xf32>
      %cst_49 = arith.constant dense<0.000000e+00> : vector<12x128xf32>
      %61 = tpu.matmul %58, %60, %cst_49 {dimension_numbers = #tpu.dot_dimension_numbers<[1], [0], [0], [1], [0, 0, 1, 1], [], []>} : vector<12x128xf32>, vector<128x128xf32>, vector<12x128xf32> -> vector<12x128xf32>
      %62 = arith.addf %53, %61 : vector<12x128xf32>
      %c1_i32_50 = arith.constant 1 : i32
      %63 = arith.muli %arg8, %c1_i32_50 : i32
      %c1_i32_51 = arith.constant 1 : i32
      %64 = arith.addi %63, %c1_i32_51 : i32
      %65 = arith.index_cast %64 : i32 to index
      %c2_52 = arith.constant 2 : index
      %c0_53 = arith.constant 0 : index
      %66 = vector.load %arg7[%65, %c2_52, %c0_53] : memref<14x14x128xf32, #tpu.memory_space<vmem>>, vector<1x12x128xf32>
      %67 = vector.shape_cast %66 : vector<1x12x128xf32> to vector<12x128xf32>
      %c5 = arith.constant 5 : index
      %c0_54 = arith.constant 0 : index
      %c0_55 = arith.constant 0 : index
      %68 = vector.load %arg4[%c5, %c0_54, %c0_55] : memref<9x128x128xf32, #tpu.memory_space<vmem>>, vector<1x128x128xf32>
      %69 = vector.shape_cast %68 : vector<1x128x128xf32> to vector<128x128xf32>
      %cst_56 = arith.constant dense<0.000000e+00> : vector<12x128xf32>
      %70 = tpu.matmul %67, %69, %cst_56 {dimension_numbers = #tpu.dot_dimension_numbers<[1], [0], [0], [1], [0, 0, 1, 1], [], []>} : vector<12x128xf32>, vector<128x128xf32>, vector<12x128xf32> -> vector<12x128xf32>
      %71 = arith.addf %62, %70 : vector<12x128xf32>
      %c1_i32_57 = arith.constant 1 : i32
      %72 = arith.muli %arg8, %c1_i32_57 : i32
      %c2_i32 = arith.constant 2 : i32
      %73 = arith.addi %72, %c2_i32 : i32
      %74 = arith.index_cast %73 : i32 to index
      %c0_58 = arith.constant 0 : index
      %c0_59 = arith.constant 0 : index
      %75 = vector.load %arg7[%74, %c0_58, %c0_59] : memref<14x14x128xf32, #tpu.memory_space<vmem>>, vector<1x12x128xf32>
      %76 = vector.shape_cast %75 : vector<1x12x128xf32> to vector<12x128xf32>
      %c6 = arith.constant 6 : index
      %c0_60 = arith.constant 0 : index
      %c0_61 = arith.constant 0 : index
      %77 = vector.load %arg4[%c6, %c0_60, %c0_61] : memref<9x128x128xf32, #tpu.memory_space<vmem>>, vector<1x128x128xf32>
      %78 = vector.shape_cast %77 : vector<1x128x128xf32> to vector<128x128xf32>
      %cst_62 = arith.constant dense<0.000000e+00> : vector<12x128xf32>
      %79 = tpu.matmul %76, %78, %cst_62 {dimension_numbers = #tpu.dot_dimension_numbers<[1], [0], [0], [1], [0, 0, 1, 1], [], []>} : vector<12x128xf32>, vector<128x128xf32>, vector<12x128xf32> -> vector<12x128xf32>
      %80 = arith.addf %71, %79 : vector<12x128xf32>
      %c1_i32_63 = arith.constant 1 : i32
      %81 = arith.muli %arg8, %c1_i32_63 : i32
      %c2_i32_64 = arith.constant 2 : i32
      %82 = arith.addi %81, %c2_i32_64 : i32
      %83 = arith.index_cast %82 : i32 to index
      %c1_65 = arith.constant 1 : index
      %c0_66 = arith.constant 0 : index
      %84 = vector.load %arg7[%83, %c1_65, %c0_66] : memref<14x14x128xf32, #tpu.memory_space<vmem>>, vector<1x12x128xf32>
      %85 = vector.shape_cast %84 : vector<1x12x128xf32> to vector<12x128xf32>
      %c7 = arith.constant 7 : index
      %c0_67 = arith.constant 0 : index
      %c0_68 = arith.constant 0 : index
      %86 = vector.load %arg4[%c7, %c0_67, %c0_68] : memref<9x128x128xf32, #tpu.memory_space<vmem>>, vector<1x128x128xf32>
      %87 = vector.shape_cast %86 : vector<1x128x128xf32> to vector<128x128xf32>
      %cst_69 = arith.constant dense<0.000000e+00> : vector<12x128xf32>
      %88 = tpu.matmul %85, %87, %cst_69 {dimension_numbers = #tpu.dot_dimension_numbers<[1], [0], [0], [1], [0, 0, 1, 1], [], []>} : vector<12x128xf32>, vector<128x128xf32>, vector<12x128xf32> -> vector<12x128xf32>
      %89 = arith.addf %80, %88 : vector<12x128xf32>
      %c1_i32_70 = arith.constant 1 : i32
      %90 = arith.muli %arg8, %c1_i32_70 : i32
      %c2_i32_71 = arith.constant 2 : i32
      %91 = arith.addi %90, %c2_i32_71 : i32
      %92 = arith.index_cast %91 : i32 to index
      %c2_72 = arith.constant 2 : index
      %c0_73 = arith.constant 0 : index
      %93 = vector.load %arg7[%92, %c2_72, %c0_73] : memref<14x14x128xf32, #tpu.memory_space<vmem>>, vector<1x12x128xf32>
      %94 = vector.shape_cast %93 : vector<1x12x128xf32> to vector<12x128xf32>
      %c8 = arith.constant 8 : index
      %c0_74 = arith.constant 0 : index
      %c0_75 = arith.constant 0 : index
      %95 = vector.load %arg4[%c8, %c0_74, %c0_75] : memref<9x128x128xf32, #tpu.memory_space<vmem>>, vector<1x128x128xf32>
      %96 = vector.shape_cast %95 : vector<1x128x128xf32> to vector<128x128xf32>
      %cst_76 = arith.constant dense<0.000000e+00> : vector<12x128xf32>
      %97 = tpu.matmul %94, %96, %cst_76 {dimension_numbers = #tpu.dot_dimension_numbers<[1], [0], [0], [1], [0, 0, 1, 1], [], []>} : vector<12x128xf32>, vector<128x128xf32>, vector<12x128xf32> -> vector<12x128xf32>
      %98 = arith.addf %89, %97 : vector<12x128xf32>
      %99 = vector.broadcast %15 : vector<1x128xf32> to vector<12x128xf32>
      %100 = arith.addf %98, %99 : vector<12x128xf32>
      %c0_77 = arith.constant 0 : index
      %101 = arith.index_cast %arg8 : i32 to index
      %c0_78 = arith.constant 0 : index
      %c0_79 = arith.constant 0 : index
      %102 = vector.load %arg6[%c0_77, %101, %c0_78, %c0_79] : memref<1x12x12x128xf32, #tpu.memory_space<vmem>>, vector<1x1x12x128xf32>
      %103 = vector.shape_cast %102 : vector<1x1x12x128xf32> to vector<12x128xf32>
      %104 = vector.shape_cast %100 : vector<12x128xf32> to vector<1x1x12x128xf32>
      tpu.vector_store %arg6[%c0_77, %101, %c0_78, %c0_79], %104 {strides = array<i32>} : memref<1x12x12x128xf32, #tpu.memory_space<vmem>>, vector<1x1x12x128xf32>,
    }
    %c12_i32_12 = arith.constant 12 : i32
    return
  }
  func.func @transform_0(%arg0: i32) -> (i32, i32, i32, i32) {
    %c0_i32 = arith.constant 0 : i32
    %c0_i32_0 = arith.constant 0 : i32
    %c0_i32_1 = arith.constant 0 : i32
    %c0_i32_2 = arith.constant 0 : i32
    return %arg0, %c0_i32, %c0_i32_0, %c0_i32_1 : i32, i32, i32, i32
  }
  func.func @transform_1(%arg0: i32) -> (i32, i32) {
    %c0_i32 = arith.constant 0 : i32
    %c0_i32_0 = arith.constant 0 : i32
    %c0_i32_1 = arith.constant 0 : i32
    return %c0_i32, %c0_i32_0 : i32, i32
  }
  func.func @transform_2(%arg0: i32) -> (i32, i32) {
    %c0_i32 = arith.constant 0 : i32
    %c0_i32_0 = arith.constant 0 : i32
    %c0_i32_1 = arith.constant 0 : i32
    return %c0_i32, %c0_i32_0 : i32, i32
  }
  func.func @transform_3(%arg0: i32) -> (i32, i32, i32) {
    %c0_i32 = arith.constant 0 : i32
    %c0_i32_0 = arith.constant 0 : i32
    %c0_i32_1 = arith.constant 0 : i32
    %c0_i32_2 = arith.constant 0 : i32
    return %c0_i32, %c0_i32_0, %c0_i32_1 : i32, i32, i32
  }
  func.func @transform_4(%arg0: i32) -> (i32, i32) {
    %c0_i32 = arith.constant 0 : i32
    %c0_i32_0 = arith.constant 0 : i32
    %c0_i32_1 = arith.constant 0 : i32
    return %c0_i32, %c0_i32_0 : i32, i32
  }
  func.func @transform_5(%arg0: i32) -> (i32, i32, i32, i32) {
    %c0_i32 = arith.constant 0 : i32
    %c0_i32_0 = arith.constant 0 : i32
    %c0_i32_1 = arith.constant 0 : i32
    %c0_i32_2 = arith.constant 0 : i32
    return %arg0, %c0_i32, %c0_i32_0, %c0_i32_1 : i32, i32, i32, i32
  }
}

</mosaic_0001>

<llo_original>
// kernel: rconv_forward.4
$region0: #{rconv_forward.4}
  #allocation0 [shape = 'u32[]', space=smem, size = 0x4, offset = 0x4, fixed_abs, tag = 'smem constant byte address 0x4 - core index']
  #allocation1 [shape = 'u32[144,128]{1,0:T(1,128)}', space=vmem, size = 0x12000, scoped, tag = 'internal scratch']
  %s0 = inlined_call_operand.vmem [shape: f32[512,128], index: 0, kind: input, shape index: {}]
  %s1 = inlined_call_operand.vmem [shape: f32[1,128], index: 1, kind: output, shape index: {0}]
  %s2 = inlined_call_operand.vmem [shape: f32[1,128], index: 2, kind: output, shape index: {1}]
  %3 = xla_tuple %s1, %s2
  %s4 = sld [smem:[#allocation0]]
  $region26: #{rconv_forward.4} parent=0
    _
  %s6 = ssub.s32 1, %s4
  %s7 = scalar_select 0, %s6, %s4
  // Predicated region
  $region2: #{rconv_forward.4} parent=0 // pred_check
    _
  $region3: #{rconv_forward.4} parent=0 // pred_check_branch
    %9 = sbr.rel (0) target = $region5
  $region4: #{rconv_forward.4} parent=0 // pred_region
    _
  $region5: #{rconv_forward.4} parent=0 // pred_fallthru
    _
  %p10 = scmp.eq.s32.totalorder 0, 0
  // Predicated region
  $region6: #{rconv_forward.4} parent=0 // pred_check
    %p11 = pneg %p10
  $region7: #{rconv_forward.4} parent=0 // pred_check_branch
    %13 = sbr.rel (%p11) target = $region9
  $region8: #{rconv_forward.4} parent=0 // pred_region
    %14 = vst [vmem:[%s1] sm:$0x1] 0.0
    %15 = vst [vmem:[%s2] sm:$0x1] 0.0
  $region9: #{rconv_forward.4} parent=0 // pred_fallthru
    _
  %v16 = vld [vmem:[%s0] sm:$0xff]
  %v17 = vld [vmem:[%s0 + $0x8] sm:$0xff]
  %v18 = vld [vmem:[%s0 + $0x10] sm:$0xff]
  %v19 = vld [vmem:[%s0 + $0x18] sm:$0xff]
  %v20 = vld [vmem:[%s0 + $0x20] sm:$0xff]
  %v21 = vld [vmem:[%s0 + $0x28] sm:$0xff]
  %v22 = vld [vmem:[%s0 + $0x30] sm:$0xff]
  %v23 = vld [vmem:[%s0 + $0x38] sm:$0xff]
  %v24 = vld [vmem:[%s0 + $0x40] sm:$0xff]
  %v25 = vld [vmem:[%s0 + $0x48] sm:$0xff]
  %v26 = vld [vmem:[%s0 + $0x50] sm:$0xff]
  %v27 = vld [vmem:[%s0 + $0x58] sm:$0xff]
  %v28 = vld [vmem:[%s0 + $0x60] sm:$0xff]
  %v29 = vld [vmem:[%s0 + $0x68] sm:$0xff]
  %v30 = vld [vmem:[%s0 + $0x70] sm:$0xff]
  %v31 = vld [vmem:[%s0 + $0x78] sm:$0xff]
  %v32 = vld [vmem:[%s0 + $0x80] sm:$0xff]
  %v33 = vld [vmem:[%s0 + $0x88] sm:$0xff]
  %v34 = vld [vmem:[%s0 + $0x90] sm:$0xff]
  %v35 = vld [vmem:[%s0 + $0x98] sm:$0xff]
  %v36 = vld [vmem:[%s0 + $0xa0] sm:$0xff]
  %v37 = vld [vmem:[%s0 + $0xa8] sm:$0xff]
  %v38 = vld [vmem:[%s0 + $0xb0] sm:$0xff]
  %v39 = vld [vmem:[%s0 + $0xb8] sm:$0xff]
  %v40 = vld [vmem:[%s0 + $0xc0] sm:$0xff]
  %v41 = vld [vmem:[%s0 + $0xc8] sm:$0xff]
  %v42 = vld [vmem:[%s0 + $0xd0] sm:$0xff]
  %v43 = vld [vmem:[%s0 + $0xd8] sm:$0xff]
  %v44 = vld [vmem:[%s0 + $0xe0] sm:$0xff]
  %v45 = vld [vmem:[%s0 + $0xe8] sm:$0xff]
  %v46 = vld [vmem:[%s0 + $0xf0] sm:$0xff]
  %v47 = vld [vmem:[%s0 + $0xf8] sm:$0xff]
  %v48 = vld [vmem:[%s0 + $0x100] sm:$0xff]
  %v49 = vld [vmem:[%s0 + $0x108] sm:$0xff]
  %v50 = vld [vmem:[%s0 + $0x110] sm:$0xff]
  %v51 = vld [vmem:[%s0 + $0x118] sm:$0xff]
  %v52 = vld [vmem:[%s0 + $0x120] sm:$0xff]
  %v53 = vld [vmem:[%s0 + $0x128] sm:$0xff]
  %v54 = vld [vmem:[%s0 + $0x130] sm:$0xff]
  %v55 = vld [vmem:[%s0 + $0x138] sm:$0xff]
  %v56 = vld [vmem:[%s0 + $0x140] sm:$0xff]
  %v57 = vld [vmem:[%s0 + $0x148] sm:$0xff]
  %v58 = vld [vmem:[%s0 + $0x150] sm:$0xff]
  %v59 = vld [vmem:[%s0 + $0x158] sm:$0xff]
  %v60 = vld [vmem:[%s0 + $0x160] sm:$0xff]
  %v61 = vld [vmem:[%s0 + $0x168] sm:$0xff]
  %v62 = vld [vmem:[%s0 + $0x170] sm:$0xff]
  %v63 = vld [vmem:[%s0 + $0x178] sm:$0xff]
  %v64 = vld [vmem:[%s0 + $0x180] sm:$0xff]
  %v65 = vld [vmem:[%s0 + $0x188] sm:$0xff]
  %v66 = vld [vmem:[%s0 + $0x190] sm:$0xff]
  %v67 = vld [vmem:[%s0 + $0x198] sm:$0xff]
  %v68 = vld [vmem:[%s0 + $0x1a0] sm:$0xff]
  %v69 = vld [vmem:[%s0 + $0x1a8] sm:$0xff]
  %v70 = vld [vmem:[%s0 + $0x1b0] sm:$0xff]
  %v71 = vld [vmem:[%s0 + $0x1b8] sm:$0xff]
  %v72 = vld [vmem:[%s0 + $0x1c0] sm:$0xff]
  %v73 = vld [vmem:[%s0 + $0x1c8] sm:$0xff]
  %v74 = vld [vmem:[%s0 + $0x1d0] sm:$0xff]
  %v75 = vld [vmem:[%s0 + $0x1d8] sm:$0xff]
  %v76 = vld [vmem:[%s0 + $0x1e0] sm:$0xff]
  %v77 = vld [vmem:[%s0 + $0x1e8] sm:$0xff]
  %v78 = vld [vmem:[%s0 + $0x1f0] sm:$0xff]
  %v79 = vld [vmem:[%s0 + $0x1f8] sm:$0xff]
  %v80 = vld [vmem:[%s1] sm:$0x1]
  %v81 = vadd.f32 %v16, %v17
  %v82 = vadd.f32 %v81, %v18
  %v83 = vadd.f32 %v82, %v19
  %v84 = vadd.f32 %v83, %v20
  %v85 = vadd.f32 %v84, %v21
  %v86 = vadd.f32 %v85, %v22
  %v87 = vadd.f32 %v86, %v23
  %v88 = vadd.f32 %v87, %v24
  %v89 = vadd.f32 %v88, %v25
  %v90 = vadd.f32 %v89, %v26
  %v91 = vadd.f32 %v90, %v27
  %v92 = vadd.f32 %v91, %v28
  %v93 = vadd.f32 %v92, %v29
  %v94 = vadd.f32 %v93, %v30
  %v95 = vadd.f32 %v94, %v31
  %v96 = vadd.f32 %v95, %v32
  %v97 = vadd.f32 %v96, %v33
  %v98 = vadd.f32 %v97, %v34
  %v99 = vadd.f32 %v98, %v35
  %v100 = vadd.f32 %v99, %v36
  %v101 = vadd.f32 %v100, %v37
  %v102 = vadd.f32 %v101, %v38
  %v103 = vadd.f32 %v102, %v39
  %v104 = vadd.f32 %v103, %v40
  %v105 = vadd.f32 %v104, %v41
  %v106 = vadd.f32 %v105, %v42
  %v107 = vadd.f32 %v106, %v43
  %v108 = vadd.f32 %v107, %v44
  %v109 = vadd.f32 %v108, %v45
  %v110 = vadd.f32 %v109, %v46
  %v111 = vadd.f32 %v110, %v47
  %v112 = vadd.f32 %v111, %v48
  %v113 = vadd.f32 %v112, %v49
  %v114 = vadd.f32 %v113, %v50
  %v115 = vadd.f32 %v114, %v51
  %v116 = vadd.f32 %v115, %v52
  %v117 = vadd.f32 %v116, %v53
  %v118 = vadd.f32 %v117, %v54
  %v119 = vadd.f32 %v118, %v55
  %v120 = vadd.f32 %v119, %v56
  %v121 = vadd.f32 %v120, %v57
  %v122 = vadd.f32 %v121, %v58
  %v123 = vadd.f32 %v122, %v59
  %v124 = vadd.f32 %v123, %v60
  %v125 = vadd.f32 %v124, %v61
  %v126 = vadd.f32 %v125, %v62
  %v127 = vadd.f32 %v126, %v63
  %v128 = vadd.f32 %v127, %v64
  %v129 = vadd.f32 %v128, %v65
  %v130 = vadd.f32 %v129, %v66
  %v131 = vadd.f32 %v130, %v67
  %v132 = vadd.f32 %v131, %v68
  %v133 = vadd.f32 %v132, %v69
  %v134 = vadd.f32 %v133, %v70
  %v135 = vadd.f32 %v134, %v71
  %v136 = vadd.f32 %v135, %v72
  %v137 = vadd.f32 %v136, %v73
  %v138 = vadd.f32 %v137, %v74
  %v139 = vadd.f32 %v138, %v75
  %v140 = vadd.f32 %v139, %v76
  %v141 = vadd.f32 %v140, %v77
  %v142 = vadd.f32 %v141, %v78
  %v143 = vadd.f32 %v142, %v79
  %v144 = vrot.slane %v143, 4
  %v145 = vadd.f32 %v143, %v144
  %v146 = vrot.slane %v145, 2
  %v147 = vadd.f32 %v145, %v146
  %v148 = vrot.slane %v147, 1
  %v149 = vadd.f32 %v147, %v148
  %v150 = vadd.f32 %v80, %v149
  %151 = vst [vmem:[%s1] sm:$0x1] %v150
  %v152 = vld [vmem:[%s2] sm:$0x1]
  %v153 = vmul.f32 %v16, %v16
  %v154 = vmul.f32 %v17, %v17
  %v155 = vmul.f32 %v18, %v18
  %v156 = vmul.f32 %v19, %v19
  %v157 = vmul.f32 %v20, %v20
  %v158 = vmul.f32 %v21, %v21
  %v159 = vmul.f32 %v22, %v22
  %v160 = vmul.f32 %v23, %v23
  %v161 = vmul.f32 %v24, %v24
  %v162 = vmul.f32 %v25, %v25
  %v163 = vmul.f32 %v26, %v26
  %v164 = vmul.f32 %v27, %v27
  %v165 = vmul.f32 %v28, %v28
  %v166 = vmul.f32 %v29, %v29
  %v167 = vmul.f32 %v30, %v30
  %v168 = vmul.f32 %v31, %v31
  %v169 = vmul.f32 %v32, %v32
  %v170 = vmul.f32 %v33, %v33
  %v171 = vmul.f32 %v34, %v34
  %v172 = vmul.f32 %v35, %v35
  %v173 = vmul.f32 %v36, %v36
  %v174 = vmul.f32 %v37, %v37
  %v175 = vmul.f32 %v38, %v38
  %v176 = vmul.f32 %v39, %v39
  %v177 = vmul.f32 %v40, %v40
  %v178 = vmul.f32 %v41, %v41
  %v179 = vmul.f32 %v42, %v42
  %v180 = vmul.f32 %v43, %v43
  %v181 = vmul.f32 %v44, %v44
  %v182 = vmul.f32 %v45, %v45
  %v183 = vmul.f32 %v46, %v46
  %v184 = vmul.f32 %v47, %v47
  %v185 = vmul.f32 %v48, %v48
  %v186 = vmul.f32 %v49, %v49
  %v187 = vmul.f32 %v50, %v50
  %v188 = vmul.f32 %v51, %v51
  %v189 = vmul.f32 %v52, %v52
  %v190 = vmul.f32 %v53, %v53
  %v191 = vmul.f32 %v54, %v54
  %v192 = vmul.f32 %v55, %v55
  %v193 = vmul.f32 %v56, %v56
  %v194 = vmul.f32 %v57, %v57
  %v195 = vmul.f32 %v58, %v58
  %v196 = vmul.f32 %v59, %v59
  %v197 = vmul.f32 %v60, %v60
  %v198 = vmul.f32 %v61, %v61
  %v199 = vmul.f32 %v62, %v62
  %v200 = vmul.f32 %v63, %v63
  %v201 = vmul.f32 %v64, %v64
  %v202 = vmul.f32 %v65, %v65
  %v203 = vmul.f32 %v66, %v66
  %v204 = vmul.f32 %v67, %v67
  %v205 = vmul.f32 %v68, %v68
  %v206 = vmul.f32 %v69, %v69
  %v207 = vmul.f32 %v70, %v70
  %v208 = vmul.f32 %v71, %v71
  %v209 = vmul.f32 %v72, %v72
  %v210 = vmul.f32 %v73, %v73
  %v211 = vmul.f32 %v74, %v74
  %v212 = vmul.f32 %v75, %v75
  %v213 = vmul.f32 %v76, %v76
  %v214 = vmul.f32 %v77, %v77
  %v215 = vmul.f32 %v78, %v78
  %v216 = vmul.f32 %v79, %v79
  %v217 = vadd.f32 %v153, %v154
  %v218 = vadd.f32 %v217, %v155
  %v219 = vadd.f32 %v218, %v156
  %v220 = vadd.f32 %v219, %v157
  %v221 = vadd.f32 %v220, %v158
  %v222 = vadd.f32 %v221, %v159
  %v223 = vadd.f32 %v222, %v160
  %v224 = vadd.f32 %v223, %v161
  %v225 = vadd.f32 %v224, %v162
  %v226 = vadd.f32 %v225, %v163
  %v227 = vadd.f32 %v226, %v164
  %v228 = vadd.f32 %v227, %v165
  %v229 = vadd.f32 %v228, %v166
  %v230 = vadd.f32 %v229, %v167
  %v231 = vadd.f32 %v230, %v168
  %v232 = vadd.f32 %v231, %v169
  %v233 = vadd.f32 %v232, %v170
  %v234 = vadd.f32 %v233, %v171
  %v235 = vadd.f32 %v234, %v172
  %v236 = vadd.f32 %v235, %v173
  %v237 = vadd.f32 %v236, %v174
  %v238 = vadd.f32 %v237, %v175
  %v239 = vadd.f32 %v238, %v176
  %v240 = vadd.f32 %v239, %v177
  %v241 = vadd.f32 %v240, %v178
  %v242 = vadd.f32 %v241, %v179
  %v243 = vadd.f32 %v242, %v180
  %v244 = vadd.f32 %v243, %v181
  %v245 = vadd.f32 %v244, %v182
  %v246 = vadd.f32 %v245, %v183
  %v247 = vadd.f32 %v246, %v184
  %v248 = vadd.f32 %v247, %v185
  %v249 = vadd.f32 %v248, %v186
  %v250 = vadd.f32 %v249, %v187
  %v251 = vadd.f32 %v250, %v188
  %v252 = vadd.f32 %v251, %v189
  %v253 = vadd.f32 %v252, %v190
  %v254 = vadd.f32 %v253, %v191
  %v255 = vadd.f32 %v254, %v192
  %v256 = vadd.f32 %v255, %v193
  %v257 = vadd.f32 %v256, %v194
  %v258 = vadd.f32 %v257, %v195
  %v259 = vadd.f32 %v258, %v196
  %v260 = vadd.f32 %v259, %v197
  %v261 = vadd.f32 %v260, %v198
  %v262 = vadd.f32 %v261, %v199
  %v263 = vadd.f32 %v262, %v200
  %v264 = vadd.f32 %v263, %v201
  %v265 = vadd.f32 %v264, %v202
  %v266 = vadd.f32 %v265, %v203
  %v267 = vadd.f32 %v266, %v204
  %v268 = vadd.f32 %v267, %v205
  %v269 = vadd.f32 %v268, %v206
  %v270 = vadd.f32 %v269, %v207
  %v271 = vadd.f32 %v270, %v208
  %v272 = vadd.f32 %v271, %v209
  %v273 = vadd.f32 %v272, %v210
  %v274 = vadd.f32 %v273, %v211
  %v275 = vadd.f32 %v274, %v212
  %v276 = vadd.f32 %v275, %v213
  %v277 = vadd.f32 %v276, %v214
  %v278 = vadd.f32 %v277, %v215
  %v279 = vadd.f32 %v278, %v216
  %v280 = vrot.slane %v279, 4
  %v281 = vadd.f32 %v279, %v280
  %v282 = vrot.slane %v281, 2
  %v283 = vadd.f32 %v281, %v282
  %v284 = vrot.slane %v283, 1
  %v285 = vadd.f32 %v283, %v284
  %v286 = vadd.f32 %v152, %v285
  %287 = vst [vmem:[%s2] sm:$0x1] %v286
  // Predicated region
  $region10: #{rconv_forward.4} parent=0 // pred_check
    _
  $region11: #{rconv_forward.4} parent=0 // pred_check_branch
    %289 = sbr.rel (0) target = $region13
  $region12: #{rconv_forward.4} parent=0 // pred_region
    _
  $region13: #{rconv_forward.4} parent=0 // pred_fallthru
    _
  // Predicated region
  $region14: #{rconv_forward.4} parent=0 // pred_check
    _
  $region15: #{rconv_forward.4} parent=0 // pred_check_branch
    %291 = sbr.rel (0) target = $region17
  $region16: #{rconv_forward.4} parent=0 // pred_region
    _
  $region17: #{rconv_forward.4} parent=0 // pred_fallthru
    _
  // Predicated region
  $region18: #{rconv_forward.4} parent=0 // pred_check
    _
  $region19: #{rconv_forward.4} parent=0 // pred_check_branch
    %293 = sbr.rel (0) target = $region21
  $region20: #{rconv_forward.4} parent=0 // pred_region
    _
  $region21: #{rconv_forward.4} parent=0 // pred_fallthru
    _
  // Predicated region
  $region22: #{rconv_forward.4} parent=0 // pred_check
    _
  $region23: #{rconv_forward.4} parent=0 // pred_check_branch
    %295 = sbr.rel (0) target = $region25
  $region24: #{rconv_forward.4} parent=0 // pred_region
    _
  $region25: #{rconv_forward.4} parent=0 // pred_fallthru
    _

// kernel: rconv_forward.6
$region0: #{rconv_forward.6}
  #allocation0 [shape = 'u32[]', space=smem, size = 0x4, offset = 0x4, fixed_abs, tag = 'smem constant byte address 0x4 - core index']
  #allocation1 [shape = 'u32[144,128]{1,0:T(1,128)}', space=vmem, size = 0x12000, scoped, tag = 'internal scratch']
  %s0 = inlined_call_operand.vmem [shape: f32[392,128], index: 0, kind: input, shape index: {}]
  %s1 = inlined_call_operand.vmem [shape: f32[1,128], index: 1, kind: output, shape index: {0}]
  %s2 = inlined_call_operand.vmem [shape: f32[1,128], index: 2, kind: output, shape index: {1}]
  %3 = xla_tuple %s1, %s2
  %s4 = sld [smem:[#allocation0]]
  $region26: #{rconv_forward.6} parent=0
    _
  %s6 = ssub.s32 1, %s4
  %s7 = scalar_select 0, %s6, %s4
  // Predicated region
  $region2: #{rconv_forward.6} parent=0 // pred_check
    _
  $region3: #{rconv_forward.6} parent=0 // pred_check_branch
    %9 = sbr.rel (0) target = $region5
  $region4: #{rconv_forward.6} parent=0 // pred_region
    _
  $region5: #{rconv_forward.6} parent=0 // pred_fallthru
    _
  %p10 = scmp.eq.s32.totalorder 0, 0
  // Predicated region
  $region6: #{rconv_forward.6} parent=0 // pred_check
    %p11 = pneg %p10
  $region7: #{rconv_forward.6} parent=0 // pred_check_branch
    %13 = sbr.rel (%p11) target = $region9
  $region8: #{rconv_forward.6} parent=0 // pred_region
    %14 = vst [vmem:[%s1] sm:$0x1] 0.0
    %15 = vst [vmem:[%s2] sm:$0x1] 0.0
  $region9: #{rconv_forward.6} parent=0 // pred_fallthru
    _
  %v16 = vld [vmem:[%s0] sm:$0xff]
  %v17 = vld [vmem:[%s0 + $0x8] sm:$0xff]
  %v18 = vld [vmem:[%s0 + $0x10] sm:$0xff]
  %v19 = vld [vmem:[%s0 + $0x18] sm:$0xff]
  %v20 = vld [vmem:[%s0 + $0x20] sm:$0xff]
  %v21 = vld [vmem:[%s0 + $0x28] sm:$0xff]
  %v22 = vld [vmem:[%s0 + $0x30] sm:$0xff]
  %v23 = vld [vmem:[%s0 + $0x38] sm:$0xff]
  %v24 = vld [vmem:[%s0 + $0x40] sm:$0xff]
  %v25 = vld [vmem:[%s0 + $0x48] sm:$0xff]
  %v26 = vld [vmem:[%s0 + $0x50] sm:$0xff]
  %v27 = vld [vmem:[%s0 + $0x58] sm:$0xff]
  %v28 = vld [vmem:[%s0 + $0x60] sm:$0xff]
  %v29 = vld [vmem:[%s0 + $0x68] sm:$0xff]
  %v30 = vld [vmem:[%s0 + $0x70] sm:$0xff]
  %v31 = vld [vmem:[%s0 + $0x78] sm:$0xff]
  %v32 = vld [vmem:[%s0 + $0x80] sm:$0xff]
  %v33 = vld [vmem:[%s0 + $0x88] sm:$0xff]
  %v34 = vld [vmem:[%s0 + $0x90] sm:$0xff]
  %v35 = vld [vmem:[%s0 + $0x98] sm:$0xff]
  %v36 = vld [vmem:[%s0 + $0xa0] sm:$0xff]
  %v37 = vld [vmem:[%s0 + $0xa8] sm:$0xff]
  %v38 = vld [vmem:[%s0 + $0xb0] sm:$0xff]
  %v39 = vld [vmem:[%s0 + $0xb8] sm:$0xff]
  %v40 = vld [vmem:[%s0 + $0xc0] sm:$0xff]
  %v41 = vld [vmem:[%s0 + $0xc8] sm:$0xff]
  %v42 = vld [vmem:[%s0 + $0xd0] sm:$0xff]
  %v43 = vld [vmem:[%s0 + $0xd8] sm:$0xff]
  %v44 = vld [vmem:[%s0 + $0xe0] sm:$0xff]
  %v45 = vld [vmem:[%s0 + $0xe8] sm:$0xff]
  %v46 = vld [vmem:[%s0 + $0xf0] sm:$0xff]
  %v47 = vld [vmem:[%s0 + $0xf8] sm:$0xff]
  %v48 = vld [vmem:[%s0 + $0x100] sm:$0xff]
  %v49 = vld [vmem:[%s0 + $0x108] sm:$0xff]
  %v50 = vld [vmem:[%s0 + $0x110] sm:$0xff]
  %v51 = vld [vmem:[%s0 + $0x118] sm:$0xff]
  %v52 = vld [vmem:[%s0 + $0x120] sm:$0xff]
  %v53 = vld [vmem:[%s0 + $0x128] sm:$0xff]
  %v54 = vld [vmem:[%s0 + $0x130] sm:$0xff]
  %v55 = vld [vmem:[%s0 + $0x138] sm:$0xff]
  %v56 = vld [vmem:[%s0 + $0x140] sm:$0xff]
  %v57 = vld [vmem:[%s0 + $0x148] sm:$0xff]
  %v58 = vld [vmem:[%s0 + $0x150] sm:$0xff]
  %v59 = vld [vmem:[%s0 + $0x158] sm:$0xff]
  %v60 = vld [vmem:[%s0 + $0x160] sm:$0xff]
  %v61 = vld [vmem:[%s0 + $0x168] sm:$0xff]
  %v62 = vld [vmem:[%s0 + $0x170] sm:$0xff]
  %v63 = vld [vmem:[%s0 + $0x178] sm:$0xff]
  %v64 = vld [vmem:[%s0 + $0x180] sm:$0xff]
  %v65 = vld [vmem:[%s1] sm:$0x1]
  %v66 = vadd.f32 %v16, %v17
  %v67 = vadd.f32 %v66, %v18
  %v68 = vadd.f32 %v67, %v19
  %v69 = vadd.f32 %v68, %v20
  %v70 = vadd.f32 %v69, %v21
  %v71 = vadd.f32 %v70, %v22
  %v72 = vadd.f32 %v71, %v23
  %v73 = vadd.f32 %v72, %v24
  %v74 = vadd.f32 %v73, %v25
  %v75 = vadd.f32 %v74, %v26
  %v76 = vadd.f32 %v75, %v27
  %v77 = vadd.f32 %v76, %v28
  %v78 = vadd.f32 %v77, %v29
  %v79 = vadd.f32 %v78, %v30
  %v80 = vadd.f32 %v79, %v31
  %v81 = vadd.f32 %v80, %v32
  %v82 = vadd.f32 %v81, %v33
  %v83 = vadd.f32 %v82, %v34
  %v84 = vadd.f32 %v83, %v35
  %v85 = vadd.f32 %v84, %v36
  %v86 = vadd.f32 %v85, %v37
  %v87 = vadd.f32 %v86, %v38
  %v88 = vadd.f32 %v87, %v39
  %v89 = vadd.f32 %v88, %v40
  %v90 = vadd.f32 %v89, %v41
  %v91 = vadd.f32 %v90, %v42
  %v92 = vadd.f32 %v91, %v43
  %v93 = vadd.f32 %v92, %v44
  %v94 = vadd.f32 %v93, %v45
  %v95 = vadd.f32 %v94, %v46
  %v96 = vadd.f32 %v95, %v47
  %v97 = vadd.f32 %v96, %v48
  %v98 = vadd.f32 %v97, %v49
  %v99 = vadd.f32 %v98, %v50
  %v100 = vadd.f32 %v99, %v51
  %v101 = vadd.f32 %v100, %v52
  %v102 = vadd.f32 %v101, %v53
  %v103 = vadd.f32 %v102, %v54
  %v104 = vadd.f32 %v103, %v55
  %v105 = vadd.f32 %v104, %v56
  %v106 = vadd.f32 %v105, %v57
  %v107 = vadd.f32 %v106, %v58
  %v108 = vadd.f32 %v107, %v59
  %v109 = vadd.f32 %v108, %v60
  %v110 = vadd.f32 %v109, %v61
  %v111 = vadd.f32 %v110, %v62
  %v112 = vadd.f32 %v111, %v63
  %v113 = vadd.f32 %v112, %v64
  %v114 = vrot.slane %v113, 4
  %v115 = vadd.f32 %v113, %v114
  %v116 = vrot.slane %v115, 2
  %v117 = vadd.f32 %v115, %v116
  %v118 = vrot.slane %v117, 1
  %v119 = vadd.f32 %v117, %v118
  %v120 = vadd.f32 %v65, %v119
  %121 = vst [vmem:[%s1] sm:$0x1] %v120
  %v122 = vld [vmem:[%s2] sm:$0x1]
  %v123 = vmul.f32 %v16, %v16
  %v124 = vmul.f32 %v17, %v17
  %v125 = vmul.f32 %v18, %v18
  %v126 = vmul.f32 %v19, %v19
  %v127 = vmul.f32 %v20, %v20
  %v128 = vmul.f32 %v21, %v21
  %v129 = vmul.f32 %v22, %v22
  %v130 = vmul.f32 %v23, %v23
  %v131 = vmul.f32 %v24, %v24
  %v132 = vmul.f32 %v25, %v25
  %v133 = vmul.f32 %v26, %v26
  %v134 = vmul.f32 %v27, %v27
  %v135 = vmul.f32 %v28, %v28
  %v136 = vmul.f32 %v29, %v29
  %v137 = vmul.f32 %v30, %v30
  %v138 = vmul.f32 %v31, %v31
  %v139 = vmul.f32 %v32, %v32
  %v140 = vmul.f32 %v33, %v33
  %v141 = vmul.f32 %v34, %v34
  %v142 = vmul.f32 %v35, %v35
  %v143 = vmul.f32 %v36, %v36
  %v144 = vmul.f32 %v37, %v37
  %v145 = vmul.f32 %v38, %v38
  %v146 = vmul.f32 %v39, %v39
  %v147 = vmul.f32 %v40, %v40
  %v148 = vmul.f32 %v41, %v41
  %v149 = vmul.f32 %v42, %v42
  %v150 = vmul.f32 %v43, %v43
  %v151 = vmul.f32 %v44, %v44
  %v152 = vmul.f32 %v45, %v45
  %v153 = vmul.f32 %v46, %v46
  %v154 = vmul.f32 %v47, %v47
  %v155 = vmul.f32 %v48, %v48
  %v156 = vmul.f32 %v49, %v49
  %v157 = vmul.f32 %v50, %v50
  %v158 = vmul.f32 %v51, %v51
  %v159 = vmul.f32 %v52, %v52
  %v160 = vmul.f32 %v53, %v53
  %v161 = vmul.f32 %v54, %v54
  %v162 = vmul.f32 %v55, %v55
  %v163 = vmul.f32 %v56, %v56
  %v164 = vmul.f32 %v57, %v57
  %v165 = vmul.f32 %v58, %v58
  %v166 = vmul.f32 %v59, %v59
  %v167 = vmul.f32 %v60, %v60
  %v168 = vmul.f32 %v61, %v61
  %v169 = vmul.f32 %v62, %v62
  %v170 = vmul.f32 %v63, %v63
  %v171 = vmul.f32 %v64, %v64
  %v172 = vadd.f32 %v123, %v124
  %v173 = vadd.f32 %v172, %v125
  %v174 = vadd.f32 %v173, %v126
  %v175 = vadd.f32 %v174, %v127
  %v176 = vadd.f32 %v175, %v128
  %v177 = vadd.f32 %v176, %v129
  %v178 = vadd.f32 %v177, %v130
  %v179 = vadd.f32 %v178, %v131
  %v180 = vadd.f32 %v179, %v132
  %v181 = vadd.f32 %v180, %v133
  %v182 = vadd.f32 %v181, %v134
  %v183 = vadd.f32 %v182, %v135
  %v184 = vadd.f32 %v183, %v136
  %v185 = vadd.f32 %v184, %v137
  %v186 = vadd.f32 %v185, %v138
  %v187 = vadd.f32 %v186, %v139
  %v188 = vadd.f32 %v187, %v140
  %v189 = vadd.f32 %v188, %v141
  %v190 = vadd.f32 %v189, %v142
  %v191 = vadd.f32 %v190, %v143
  %v192 = vadd.f32 %v191, %v144
  %v193 = vadd.f32 %v192, %v145
  %v194 = vadd.f32 %v193, %v146
  %v195 = vadd.f32 %v194, %v147
  %v196 = vadd.f32 %v195, %v148
  %v197 = vadd.f32 %v196, %v149
  %v198 = vadd.f32 %v197, %v150
  %v199 = vadd.f32 %v198, %v151
  %v200 = vadd.f32 %v199, %v152
  %v201 = vadd.f32 %v200, %v153
  %v202 = vadd.f32 %v201, %v154
  %v203 = vadd.f32 %v202, %v155
  %v204 = vadd.f32 %v203, %v156
  %v205 = vadd.f32 %v204, %v157
  %v206 = vadd.f32 %v205, %v158
  %v207 = vadd.f32 %v206, %v159
  %v208 = vadd.f32 %v207, %v160
  %v209 = vadd.f32 %v208, %v161
  %v210 = vadd.f32 %v209, %v162
  %v211 = vadd.f32 %v210, %v163
  %v212 = vadd.f32 %v211, %v164
  %v213 = vadd.f32 %v212, %v165
  %v214 = vadd.f32 %v213, %v166
  %v215 = vadd.f32 %v214, %v167
  %v216 = vadd.f32 %v215, %v168
  %v217 = vadd.f32 %v216, %v169
  %v218 = vadd.f32 %v217, %v170
  %v219 = vadd.f32 %v218, %v171
  %v220 = vrot.slane %v219, 4
  %v221 = vadd.f32 %v219, %v220
  %v222 = vrot.slane %v221, 2
  %v223 = vadd.f32 %v221, %v222
  %v224 = vrot.slane %v223, 1
  %v225 = vadd.f32 %v223, %v224
  %v226 = vadd.f32 %v122, %v225
  %227 = vst [vmem:[%s2] sm:$0x1] %v226
  // Predicated region
  $region10: #{rconv_forward.6} parent=0 // pred_check
    _
  $region11: #{rconv_forward.6} parent=0 // pred_check_branch
    %229 = sbr.rel (0) target = $region13
  $region12: #{rconv_forward.6} parent=0 // pred_region
    _
  $region13: #{rconv_forward.6} parent=0 // pred_fallthru
    _
  // Predicated region
  $region14: #{rconv_forward.6} parent=0 // pred_check
    _
  $region15: #{rconv_forward.6} parent=0 // pred_check_branch
    %231 = sbr.rel (0) target = $region17
  $region16: #{rconv_forward.6} parent=0 // pred_region
    _
  $region17: #{rconv_forward.6} parent=0 // pred_fallthru
    _
  // Predicated region
  $region18: #{rconv_forward.6} parent=0 // pred_check
    _
  $region19: #{rconv_forward.6} parent=0 // pred_check_branch
    %233 = sbr.rel (0) target = $region21
  $region20: #{rconv_forward.6} parent=0 // pred_region
    _
  $region21: #{rconv_forward.6} parent=0 // pred_fallthru
    _
  // Predicated region
  $region22: #{rconv_forward.6} parent=0 // pred_check
    _
  $region23: #{rconv_forward.6} parent=0 // pred_check_branch
    %235 = sbr.rel (0) target = $region25
  $region24: #{rconv_forward.6} parent=0 // pred_region
    _
  $region25: #{rconv_forward.6} parent=0 // pred_fallthru
    _

// kernel: rconv_forward.5
$region0: #{rconv_forward.5}
  #allocation0 [shape = 'u32[]', space=smem, size = 0x4, offset = 0x4, fixed_abs, tag = 'smem constant byte address 0x4 - core index']
  #allocation1 [shape = 'u32[144,128]{1,0:T(1,128)}', space=vmem, size = 0x12000, scoped, tag = 'internal scratch']
  #allocation2 [shape = 'f32[16,16,128]{2,1,0:T(8,128)}', space=vmem, size = 0x20000, scoped, tag = 'scratch operand']
  %s0 = inlined_call_operand.vmem [shape: f32[2,16,16,128], index: 0, kind: input, shape index: {}]
  %s1 = inlined_call_operand.vmem [shape: f32[1,128], index: 1, kind: input, shape index: {}]
  %s2 = inlined_call_operand.vmem [shape: f32[1,128], index: 2, kind: input, shape index: {}]
  %s3 = inlined_call_operand.vmem [shape: f32[9,128,128], index: 3, kind: input, shape index: {}]
  %s4 = inlined_call_operand.vmem [shape: f32[1,128], index: 4, kind: input, shape index: {}]
  %s5 = inlined_call_operand.vmem [shape: f32[2,14,14,128], index: 5, kind: output, shape index: {}]
  %s6 = sld [smem:[#allocation0]]
  $region60: #{rconv_forward.5} parent=0
    _
  %s8 = ssub.s32 1, %s6
  %s9 = scalar_select 0, %s8, %s6
  loop: start=0, step=1, limit=4
  $region2: #{rconv_forward.5} parent=0 // loop_pre_header
    _
  $region3: #{rconv_forward.5} parent=0 // loop_header
    %s11 = sphi 0, %s15
    %p12 = scmp.ge.s32.totalorder %s11, 4
    %s21 = sphi 0, %s23
    %s24 = sphi 0, %s21
    %s25 = sphi 0, %s24
    %s41 = sphi 0, %s25
    %s45 = sphi 0, %s45
    %s47 = sphi 0, %s45
    %s48 = sphi 0, %s47
    %s62 = sphi 0, %s48
    %s66 = sphi 0, %s66
    %s68 = sphi 0, %s66
    %s69 = sphi 0, %s68
    %s83 = sphi 0, %s69
    %s87 = sphi 0, %s87
    %s89 = sphi 0, %s87
    %s90 = sphi 0, %s89
    %s104 = sphi 0, %s90
    %s108 = sphi 0, %s108
    %s110 = sphi 0, %s108
    %s111 = sphi 0, %s110
    %s125 = sphi 0, %s111
    %s131 = sphi 0, %s133
    %s134 = sphi 0, %s131
    %s135 = sphi 0, %s134
    %s151 = sphi 0, %s135
  $region4: #{rconv_forward.5} parent=0 // loop_header_branch
    %14 = sbr.rel (%p12) target = $region8
  $region5: #{rconv_forward.5} parent=0 // loop_body
    %s16 = ssub.s32 %s11, 1
    %s17 = ssub.s32 %s11, 2
    %s18 = sadd.s32 %s11, 1
    %s19 = ssub.s32 %s11, %s18
    %p20 = scmp.eq.s32.totalorder %s19, 0
    %s22 = sadd.s32 %s21, 1
    %s23 = scalar_select %p20, %s21, %s22
    %p26 = pneg %p20
    %p27 = scmp.eq.s32.totalorder %s11, 1
    %p28 = por %p26, %p27
    %p29 = scmp.ne.s32.totalorder %s21, %s24
    %p30 = scmp.eq.s32.totalorder %s11, 0
    %p31 = por %p29, %p30
    %p32 = scmp.ne.s32.totalorder %s21, %s24
    %p33 = scmp.eq.s32.totalorder %s16, 1
    %p34 = por %p32, %p33
    %p35 = scmp.ne.s32.totalorder %s24, %s25
    %p36 = scmp.eq.s32.totalorder %s16, 0
    %p37 = por %p35, %p36
    %p38 = scmp.ne.s32.totalorder %s24, %s25
    %p39 = scmp.eq.s32.totalorder %s17, 1
    %p40 = por %p38, %p39
    %p42 = scmp.ne.s32.totalorder %s25, %s41
    %p43 = scmp.eq.s32.totalorder %s17, 0
    %p44 = por %p42, %p43
    %s46 = sadd.s32 %s45, 1
    %p49 = scmp.eq.s32.totalorder %s11, 1
    %p50 = scmp.ne.s32.totalorder %s45, %s47
    %p51 = scmp.eq.s32.totalorder %s11, 0
    %p52 = por %p50, %p51
    %p53 = scmp.ne.s32.totalorder %s45, %s47
    %p54 = scmp.eq.s32.totalorder %s16, 1
    %p55 = por %p53, %p54
    %p56 = scmp.ne.s32.totalorder %s47, %s48
    %p57 = scmp.eq.s32.totalorder %s16, 0
    %p58 = por %p56, %p57
    %p59 = scmp.ne.s32.totalorder %s47, %s48
    %p60 = scmp.eq.s32.totalorder %s17, 1
    %p61 = por %p59, %p60
    %p63 = scmp.ne.s32.totalorder %s48, %s62
    %p64 = scmp.eq.s32.totalorder %s17, 0
    %p65 = por %p63, %p64
    %s67 = sadd.s32 %s66, 1
    %p70 = scmp.eq.s32.totalorder %s11, 1
    %p71 = scmp.ne.s32.totalorder %s66, %s68
    %p72 = scmp.eq.s32.totalorder %s11, 0
    %p73 = por %p71, %p72
    %p74 = scmp.ne.s32.totalorder %s66, %s68
    %p75 = scmp.eq.s32.totalorder %s16, 1
    %p76 = por %p74, %p75
    %p77 = scmp.ne.s32.totalorder %s68, %s69
    %p78 = scmp.eq.s32.totalorder %s16, 0
    %p79 = por %p77, %p78
    %p80 = scmp.ne.s32.totalorder %s68, %s69
    %p81 = scmp.eq.s32.totalorder %s17, 1
    %p82 = por %p80, %p81
    %p84 = scmp.ne.s32.totalorder %s69, %s83
    %p85 = scmp.eq.s32.totalorder %s17, 0
    %p86 = por %p84, %p85
    %s88 = sadd.s32 %s87, 1
    %p91 = scmp.eq.s32.totalorder %s11, 1
    %p92 = scmp.ne.s32.totalorder %s87, %s89
    %p93 = scmp.eq.s32.totalorder %s11, 0
    %p94 = por %p92, %p93
    %p95 = scmp.ne.s32.totalorder %s87, %s89
    %p96 = scmp.eq.s32.totalorder %s16, 1
    %p97 = por %p95, %p96
    %p98 = scmp.ne.s32.totalorder %s89, %s90
    %p99 = scmp.eq.s32.totalorder %s16, 0
    %p100 = por %p98, %p99
    %p101 = scmp.ne.s32.totalorder %s89, %s90
    %p102 = scmp.eq.s32.totalorder %s17, 1
    %p103 = por %p101, %p102
    %p105 = scmp.ne.s32.totalorder %s90, %s104
    %p106 = scmp.eq.s32.totalorder %s17, 0
    %p107 = por %p105, %p106
    %s109 = sadd.s32 %s108, 1
    %p112 = scmp.eq.s32.totalorder %s11, 1
    %p113 = scmp.ne.s32.totalorder %s108, %s110
    %p114 = scmp.eq.s32.totalorder %s11, 0
    %p115 = por %p113, %p114
    %p116 = scmp.ne.s32.totalorder %s108, %s110
    %p117 = scmp.eq.s32.totalorder %s16, 1
    %p118 = por %p116, %p117
    %p119 = scmp.ne.s32.totalorder %s110, %s111
    %p120 = scmp.eq.s32.totalorder %s16, 0
    %p121 = por %p119, %p120
    %p122 = scmp.ne.s32.totalorder %s110, %s111
    %p123 = scmp.eq.s32.totalorder %s17, 1
    %p124 = por %p122, %p123
    %p126 = scmp.ne.s32.totalorder %s111, %s125
    %p127 = scmp.eq.s32.totalorder %s17, 0
    %p128 = por %p126, %p127
    %s129 = ssub.s32 %s11, %s18
    %p130 = scmp.eq.s32.totalorder %s129, 0
    %s132 = sadd.s32 %s131, 1
    %s133 = scalar_select %p130, %s131, %s132
    %p136 = pneg %p130
    %p137 = scmp.eq.s32.totalorder %s11, 1
    %p138 = por %p136, %p137
    %p139 = scmp.ne.s32.totalorder %s131, %s134
    %p140 = scmp.eq.s32.totalorder %s11, 0
    %p141 = por %p139, %p140
    %p142 = scmp.ne.s32.totalorder %s131, %s134
    %p143 = scmp.eq.s32.totalorder %s16, 1
    %p144 = por %p142, %p143
    %p145 = scmp.ne.s32.totalorder %s134, %s135
    %p146 = scmp.eq.s32.totalorder %s16, 0
    %p147 = por %p145, %p146
    %p148 = scmp.ne.s32.totalorder %s134, %s135
    %p149 = scmp.eq.s32.totalorder %s17, 1
    %p150 = por %p148, %p149
    %p152 = scmp.ne.s32.totalorder %s135, %s151
    %p153 = scmp.eq.s32.totalorder %s17, 0
    %p154 = por %p152, %p153
    %p155 = scmp.le.s32.totalorder 1, %s11
    %p156 = scmp.lt.s32.totalorder %s11, 3
    %p157 = pnand %p155, %p156
    %p158 = pneg %p157
    // Predicated region
    $region9: #{rconv_forward.5} parent=5 // pred_check
      _
    $region10: #{rconv_forward.5} parent=5 // pred_check_branch
      %160 = sbr.rel (%p157) target = $region12
    $region11: #{rconv_forward.5} parent=5 // pred_region
      %s161 = ssub.s32 %s11, 1
      // Predicated region
      $region13: #{rconv_forward.5} parent=11 // pred_check
        %p162 = pneg %p58
      $region14: #{rconv_forward.5} parent=11 // pred_check_branch
        %164 = sbr.rel (%p162) target = $region16
      $region15: #{rconv_forward.5} parent=11 // pred_region
        _
      $region16: #{rconv_forward.5} parent=11 // pred_fallthru
        _
      // Predicated region
      $region17: #{rconv_forward.5} parent=11 // pred_check
        %p165 = pneg %p79
      $region18: #{rconv_forward.5} parent=11 // pred_check_branch
        %167 = sbr.rel (%p165) target = $region20
      $region19: #{rconv_forward.5} parent=11 // pred_region
        _
      $region20: #{rconv_forward.5} parent=11 // pred_fallthru
        _
      // Predicated region
      $region21: #{rconv_forward.5} parent=11 // pred_check
        %p168 = pneg %p100
      $region22: #{rconv_forward.5} parent=11 // pred_check_branch
        %170 = sbr.rel (%p168) target = $region24
      $region23: #{rconv_forward.5} parent=11 // pred_region
        _
      $region24: #{rconv_forward.5} parent=11 // pred_fallthru
        _
      // Predicated region
      $region25: #{rconv_forward.5} parent=11 // pred_check
        %p171 = pneg %p121
      $region26: #{rconv_forward.5} parent=11 // pred_check_branch
        %173 = sbr.rel (%p171) target = $region28
      $region27: #{rconv_forward.5} parent=11 // pred_region
        _
      $region28: #{rconv_forward.5} parent=11 // pred_fallthru
        _
    $region12: #{rconv_forward.5} parent=5 // pred_fallthru
      _
    %p174 = scmp.lt.s32.totalorder %s11, 2
    // Predicated region
    $region29: #{rconv_forward.5} parent=5 // pred_check
      %p175 = pneg %p174
    $region30: #{rconv_forward.5} parent=5 // pred_check_branch
      %177 = sbr.rel (%p175) target = $region32
    $region31: #{rconv_forward.5} parent=5 // pred_region
      // Predicated region
      $region33: #{rconv_forward.5} parent=31 // pred_check
        %p178 = pneg %p31
      $region34: #{rconv_forward.5} parent=31 // pred_check_branch
        %180 = sbr.rel (%p178) target = $region36
      $region35: #{rconv_forward.5} parent=31 // pred_region
        %p181 = scmp.lt.s32.totalorder %s11, 1
        %s182 = scalar_select %p181, %s11, 1
        %s183 = smul.addr %s182, 32
        %s184 = smul.addr %s183, 8
        %s185 = scalar_lea.vmem %s0, %s184
      $region36: #{rconv_forward.5} parent=31 // pred_fallthru
        _
    $region32: #{rconv_forward.5} parent=5 // pred_fallthru
      _
    %p186 = scmp.le.s32.totalorder 1, %s11
    %p187 = scmp.lt.s32.totalorder %s11, 3
    %p188 = pnand %p186, %p187
    %p189 = pneg %p188
    // Predicated region
    $region37: #{rconv_forward.5} parent=5 // pred_check
      _
    $region38: #{rconv_forward.5} parent=5 // pred_check_branch
      %191 = sbr.rel (%p188) target = $region40
    $region39: #{rconv_forward.5} parent=5 // pred_region
      %s192 = ssub.s32 %s11, 1
      %p193 = scmp.lt.s32.totalorder %s16, 1
      %s194 = scalar_select %p193, %s16, 1
      %s195 = smul.addr %s194, 32
      %s196 = smul.addr %s195, 8
      %s197 = scalar_lea.vmem %s0, %s196
      %p198 = pneg %p37
      %p199 = pneg %p34
      %p200 = pneg %p58
      %p201 = pneg %p55
      %p202 = pneg %p79
      %p203 = pneg %p76
      %p204 = pneg %p100
      %p205 = pneg %p97
      %p206 = pneg %p121
      %p207 = pneg %p118
      %p208 = pneg %p147
      %p209 = pneg %p144
      %p210 = scmp.lt.s32.totalorder %s16, 1
      %s211 = scalar_select %p210, %s16, 1
      %s212 = smul.addr %s211, 28
      %s213 = smul.addr %s212, 8
      %s214 = scalar_lea.vmem %s5, %s213
      %p215 = scmp.lt.s32.totalorder %s16, 1
      %s216 = scalar_select %p215, %s16, 1
      %s217 = smul.addr %s216, 32
      %s218 = smul.addr %s217, 8
      %s219 = scalar_lea.vmem %s0, %s218
      %p220 = scmp.lt.s32.totalorder %s16, 1
      %s221 = scalar_select %p220, %s16, 1
      %s222 = smul.addr %s221, 28
      %s223 = smul.addr %s222, 8
      %s224 = scalar_lea.vmem %s5, %s223
      %v225 = vld [vmem:[%s219] sm:$0xff]
      %v226 = vld [vmem:[%s219 + $0x8] sm:$0xff]
      %v227 = vld [vmem:[%s219 + $0x10] sm:$0xff]
      %v228 = vld [vmem:[%s219 + $0x18] sm:$0xff]
      %v229 = vld [vmem:[%s219 + $0x20] sm:$0xff]
      %v230 = vld [vmem:[%s219 + $0x28] sm:$0xff]
      %v231 = vld [vmem:[%s219 + $0x30] sm:$0xff]
      %v232 = vld [vmem:[%s219 + $0x38] sm:$0xff]
      %v233 = vld [vmem:[%s219 + $0x40] sm:$0xff]
      %v234 = vld [vmem:[%s219 + $0x48] sm:$0xff]
      %v235 = vld [vmem:[%s219 + $0x50] sm:$0xff]
      %v236 = vld [vmem:[%s219 + $0x58] sm:$0xff]
      %v237 = vld [vmem:[%s219 + $0x60] sm:$0xff]
      %v238 = vld [vmem:[%s219 + $0x68] sm:$0xff]
      %v239 = vld [vmem:[%s219 + $0x70] sm:$0xff]
      %v240 = vld [vmem:[%s219 + $0x78] sm:$0xff]
      %v241 = vld [vmem:[%s219 + $0x80] sm:$0xff]
      %v242 = vld [vmem:[%s219 + $0x88] sm:$0xff]
      %v243 = vld [vmem:[%s219 + $0x90] sm:$0xff]
      %v244 = vld [vmem:[%s219 + $0x98] sm:$0xff]
      %v245 = vld [vmem:[%s219 + $0xa0] sm:$0xff]
      %v246 = vld [vmem:[%s219 + $0xa8] sm:$0xff]
      %v247 = vld [vmem:[%s219 + $0xb0] sm:$0xff]
      %v248 = vld [vmem:[%s219 + $0xb8] sm:$0xff]
      %v249 = vld [vmem:[%s219 + $0xc0] sm:$0xff]
      %v250 = vld [vmem:[%s219 + $0xc8] sm:$0xff]
      %v251 = vld [vmem:[%s219 + $0xd0] sm:$0xff]
      %v252 = vld [vmem:[%s219 + $0xd8] sm:$0xff]
      %v253 = vld [vmem:[%s219 + $0xe0] sm:$0xff]
      %v254 = vld [vmem:[%s219 + $0xe8] sm:$0xff]
      %v255 = vld [vmem:[%s219 + $0xf0] sm:$0xff]
      %v256 = vld [vmem:[%s219 + $0xf8] sm:$0xff]
      %v257 = vld [vmem:[%s1] sm:$0x1]
      %v259 = vlaneseq
      %v260 = vshrl.u32 %v259, 7
      %v261 = vsub.s32 0, %v260
      %v262 = vrot.slane %v257, %v261
      %v264 = vmul.f32 %v225, %v262
      %v265 = vmul.f32 %v226, %v262
      %v266 = vmul.f32 %v227, %v262
      %v267 = vmul.f32 %v228, %v262
      %v268 = vmul.f32 %v229, %v262
      %v269 = vmul.f32 %v230, %v262
      %v270 = vmul.f32 %v231, %v262
      %v271 = vmul.f32 %v232, %v262
      %v272 = vmul.f32 %v233, %v262
      %v273 = vmul.f32 %v234, %v262
      %v274 = vmul.f32 %v235, %v262
      %v275 = vmul.f32 %v236, %v262
      %v276 = vmul.f32 %v237, %v262
      %v277 = vmul.f32 %v238, %v262
      %v278 = vmul.f32 %v239, %v262
      %v279 = vmul.f32 %v240, %v262
      %v280 = vmul.f32 %v241, %v262
      %v281 = vmul.f32 %v242, %v262
      %v282 = vmul.f32 %v243, %v262
      %v283 = vmul.f32 %v244, %v262
      %v284 = vmul.f32 %v245, %v262
      %v285 = vmul.f32 %v246, %v262
      %v286 = vmul.f32 %v247, %v262
      %v287 = vmul.f32 %v248, %v262
      %v288 = vmul.f32 %v249, %v262
      %v289 = vmul.f32 %v250, %v262
      %v290 = vmul.f32 %v251, %v262
      %v291 = vmul.f32 %v252, %v262
      %v292 = vmul.f32 %v253, %v262
      %v293 = vmul.f32 %v254, %v262
      %v294 = vmul.f32 %v255, %v262
      %v295 = vmul.f32 %v256, %v262
      %v296 = vld [vmem:[%s2] sm:$0x1]
      %v298 = vlaneseq
      %v299 = vshrl.u32 %v298, 7
      %v300 = vsub.s32 0, %v299
      %v301 = vrot.slane %v296, %v300
      %v303 = vadd.f32 %v264, %v301
      %v304 = vadd.f32 %v265, %v301
      %v305 = vadd.f32 %v266, %v301
      %v306 = vadd.f32 %v267, %v301
      %v307 = vadd.f32 %v268, %v301
      %v308 = vadd.f32 %v269, %v301
      %v309 = vadd.f32 %v270, %v301
      %v310 = vadd.f32 %v271, %v301
      %v311 = vadd.f32 %v272, %v301
      %v312 = vadd.f32 %v273, %v301
      %v313 = vadd.f32 %v274, %v301
      %v314 = vadd.f32 %v275, %v301
      %v315 = vadd.f32 %v276, %v301
      %v316 = vadd.f32 %v277, %v301
      %v317 = vadd.f32 %v278, %v301
      %v318 = vadd.f32 %v279, %v301
      %v319 = vadd.f32 %v280, %v301
      %v320 = vadd.f32 %v281, %v301
      %v321 = vadd.f32 %v282, %v301
      %v322 = vadd.f32 %v283, %v301
      %v323 = vadd.f32 %v284, %v301
      %v324 = vadd.f32 %v285, %v301
      %v325 = vadd.f32 %v286, %v301
      %v326 = vadd.f32 %v287, %v301
      %v327 = vadd.f32 %v288, %v301
      %v328 = vadd.f32 %v289, %v301
      %v329 = vadd.f32 %v290, %v301
      %v330 = vadd.f32 %v291, %v301
      %v331 = vadd.f32 %v292, %v301
      %v332 = vadd.f32 %v293, %v301
      %v333 = vadd.f32 %v294, %v301
      %v334 = vadd.f32 %v295, %v301
      %v335 = vmax.f32 %v303, 0.0
      %v336 = vmax.f32 %v304, 0.0
      %v337 = vmax.f32 %v305, 0.0
      %v338 = vmax.f32 %v306, 0.0
      %v339 = vmax.f32 %v307, 0.0
      %v340 = vmax.f32 %v308, 0.0
      %v341 = vmax.f32 %v309, 0.0
      %v342 = vmax.f32 %v310, 0.0
      %v343 = vmax.f32 %v311, 0.0
      %v344 = vmax.f32 %v312, 0.0
      %v345 = vmax.f32 %v313, 0.0
      %v346 = vmax.f32 %v314, 0.0
      %v347 = vmax.f32 %v315, 0.0
      %v348 = vmax.f32 %v316, 0.0
      %v349 = vmax.f32 %v317, 0.0
      %v350 = vmax.f32 %v318, 0.0
      %v351 = vmax.f32 %v319, 0.0
      %v352 = vmax.f32 %v320, 0.0
      %v353 = vmax.f32 %v321, 0.0
      %v354 = vmax.f32 %v322, 0.0
      %v355 = vmax.f32 %v323, 0.0
      %v356 = vmax.f32 %v324, 0.0
      %v357 = vmax.f32 %v325, 0.0
      %v358 = vmax.f32 %v326, 0.0
      %v359 = vmax.f32 %v327, 0.0
      %v360 = vmax.f32 %v328, 0.0
      %v361 = vmax.f32 %v329, 0.0
      %v362 = vmax.f32 %v330, 0.0
      %v363 = vmax.f32 %v331, 0.0
      %v364 = vmax.f32 %v332, 0.0
      %v365 = vmax.f32 %v333, 0.0
      %v366 = vmax.f32 %v334, 0.0
      %367 = vst [vmem:[#allocation2] sm:$0xff] %v335
      %368 = vst [vmem:[#allocation2 + $0x8] sm:$0xff] %v336
      %369 = vst [vmem:[#allocation2 + $0x10] sm:$0xff] %v337
      %370 = vst [vmem:[#allocation2 + $0x18] sm:$0xff] %v338
      %371 = vst [vmem:[#allocation2 + $0x20] sm:$0xff] %v339
      %372 = vst [vmem:[#allocation2 + $0x28] sm:$0xff] %v340
      %373 = vst [vmem:[#allocation2 + $0x30] sm:$0xff] %v341
      %374 = vst [vmem:[#allocation2 + $0x38] sm:$0xff] %v342
      %375 = vst [vmem:[#allocation2 + $0x40] sm:$0xff] %v343
      %376 = vst [vmem:[#allocation2 + $0x48] sm:$0xff] %v344
      %377 = vst [vmem:[#allocation2 + $0x50] sm:$0xff] %v345
      %378 = vst [vmem:[#allocation2 + $0x58] sm:$0xff] %v346
      %379 = vst [vmem:[#allocation2 + $0x60] sm:$0xff] %v347
      %380 = vst [vmem:[#allocation2 + $0x68] sm:$0xff] %v348
      %381 = vst [vmem:[#allocation2 + $0x70] sm:$0xff] %v349
      %382 = vst [vmem:[#allocation2 + $0x78] sm:$0xff] %v350
      %383 = vst [vmem:[#allocation2 + $0x80] sm:$0xff] %v351
      %384 = vst [vmem:[#allocation2 + $0x88] sm:$0xff] %v352
      %385 = vst [vmem:[#allocation2 + $0x90] sm:$0xff] %v353
      %386 = vst [vmem:[#allocation2 + $0x98] sm:$0xff] %v354
      %387 = vst [vmem:[#allocation2 + $0xa0] sm:$0xff] %v355
      %388 = vst [vmem:[#allocation2 + $0xa8] sm:$0xff] %v356
      %389 = vst [vmem:[#allocation2 + $0xb0] sm:$0xff] %v357
      %390 = vst [vmem:[#allocation2 + $0xb8] sm:$0xff] %v358
      %391 = vst [vmem:[#allocation2 + $0xc0] sm:$0xff] %v359
      %392 = vst [vmem:[#allocation2 + $0xc8] sm:$0xff] %v360
      %393 = vst [vmem:[#allocation2 + $0xd0] sm:$0xff] %v361
      %394 = vst [vmem:[#allocation2 + $0xd8] sm:$0xff] %v362
      %395 = vst [vmem:[#allocation2 + $0xe0] sm:$0xff] %v363
      %396 = vst [vmem:[#allocation2 + $0xe8] sm:$0xff] %v364
      %397 = vst [vmem:[#allocation2 + $0xf0] sm:$0xff] %v365
      %398 = vst [vmem:[#allocation2 + $0xf8] sm:$0xff] %v366
      %v399 = vld [vmem:[%s4] sm:$0x1]
      loop: start=0, step=1, limit=14
      $region41: #{rconv_forward.5} parent=39 // loop_pre_header
        _
      $region42: #{rconv_forward.5} parent=39 // loop_header
        %s401 = sphi 0, %s405
        %p402 = scmp.ge.s32.totalorder %s401, 14
      $region43: #{rconv_forward.5} parent=39 // loop_header_branch
        %404 = sbr.rel (%p402) target = $region47
      $region44: #{rconv_forward.5} parent=39 // loop_body
        %s406 = smul.u32 %s401, 16
        %s407 = scalar_lea.vmem [#allocation2], %s406
        %v408 = vld [vmem:[%s407] sm:$0xff]
        %v409 = vld [vmem:[%s407 + $0x8] sm:$0x3f]
        %v410 = vld [vmem:[%s3] sm:$0xff]
        %v411 = vld [vmem:[%s3 + $0x8] sm:$0xff]
        %v412 = vld [vmem:[%s3 + $0x10] sm:$0xff]
        %v413 = vld [vmem:[%s3 + $0x18] sm:$0xff]
        %v414 = vld [vmem:[%s3 + $0x20] sm:$0xff]
        %v415 = vld [vmem:[%s3 + $0x28] sm:$0xff]
        %v416 = vld [vmem:[%s3 + $0x30] sm:$0xff]
        %v417 = vld [vmem:[%s3 + $0x38] sm:$0xff]
        %v418 = vld [vmem:[%s3 + $0x40] sm:$0xff]
        %v419 = vld [vmem:[%s3 + $0x48] sm:$0xff]
        %v420 = vld [vmem:[%s3 + $0x50] sm:$0xff]
        %v421 = vld [vmem:[%s3 + $0x58] sm:$0xff]
        %v422 = vld [vmem:[%s3 + $0x60] sm:$0xff]
        %v423 = vld [vmem:[%s3 + $0x68] sm:$0xff]
        %v424 = vld [vmem:[%s3 + $0x70] sm:$0xff]
        %v425 = vld [vmem:[%s3 + $0x78] sm:$0xff]
        %v426 = vld [vmem:[%s407 + $0x1] sm:$0xff]
        %v427 = vld [vmem:[%s407 + $0x9] sm:$0x3f]
        %s428 = scalar_lea.vmem %s3, 128
        %v429 = vld [vmem:[%s428] sm:$0xff]
        %v430 = vld [vmem:[%s428 + $0x8] sm:$0xff]
        %v431 = vld [vmem:[%s428 + $0x10] sm:$0xff]
        %v432 = vld [vmem:[%s428 + $0x18] sm:$0xff]
        %v433 = vld [vmem:[%s428 + $0x20] sm:$0xff]
        %v434 = vld [vmem:[%s428 + $0x28] sm:$0xff]
        %v435 = vld [vmem:[%s428 + $0x30] sm:$0xff]
        %v436 = vld [vmem:[%s428 + $0x38] sm:$0xff]
        %v437 = vld [vmem:[%s428 + $0x40] sm:$0xff]
        %v438 = vld [vmem:[%s428 + $0x48] sm:$0xff]
        %v439 = vld [vmem:[%s428 + $0x50] sm:$0xff]
        %v440 = vld [vmem:[%s428 + $0x58] sm:$0xff]
        %v441 = vld [vmem:[%s428 + $0x60] sm:$0xff]
        %v442 = vld [vmem:[%s428 + $0x68] sm:$0xff]
        %v443 = vld [vmem:[%s428 + $0x70] sm:$0xff]
        %v444 = vld [vmem:[%s428 + $0x78] sm:$0xff]
        %445 = vmatprep.subr.mxu0 0.0
        %446 = vmatpush1.msra.mxu0 %v429
        %447 = vmatprep.subr.mxu0 0.0
        %448 = vmatpush1.msra.mxu0 %v430
        %449 = vmatprep.subr.mxu0 0.0
        %450 = vmatpush1.msra.mxu0 %v431
        %451 = vmatprep.subr.mxu0 0.0
        %452 = vmatpush1.msra.mxu0 %v432
        %453 = vmatprep.subr.mxu0 0.0
        %454 = vmatpush1.msra.mxu0 %v433
        %455 = vmatprep.subr.mxu0 0.0
        %456 = vmatpush1.msra.mxu0 %v434
        %457 = vmatprep.subr.mxu0 0.0
        %458 = vmatpush1.msra.mxu0 %v435
        %459 = vmatprep.subr.mxu0 0.0
        %460 = vmatpush1.msra.mxu0 %v436
        %461 = vmatprep.subr.mxu0 0.0
        %462 = vmatpush1.msra.mxu0 %v437
        %463 = vmatprep.subr.mxu0 0.0
        %464 = vmatpush1.msra.mxu0 %v438
        %465 = vmatprep.subr.mxu0 0.0
        %466 = vmatpush1.msra.mxu0 %v439
        %467 = vmatprep.subr.mxu0 0.0
        %468 = vmatpush1.msra.mxu0 %v440
        %469 = vmatprep.subr.mxu0 0.0
        %470 = vmatpush1.msra.mxu0 %v441
        %471 = vmatprep.subr.mxu0 0.0
        %472 = vmatpush1.msra.mxu0 %v442
        %473 = vmatprep.subr.mxu0 0.0
        %474 = vmatpush1.msra.mxu0 %v443
        %475 = vmatprep.subr.mxu0 0.0
        %476 = vmatpush1.msra.mxu0 %v444
        %477 = vmatprep.subr.mxu0 0.0
        %478 = vmatpush1.msra.mxu0 0.0
        %479 = vmatprep.subr.mxu0 0.0
        %480 = vmatpush1.msra.mxu0 0.0
        %481 = vmatprep.subr.mxu0 0.0
        %482 = vmatpush1.msra.mxu0 0.0
        %483 = vmatprep.subr.mxu0 0.0
        %484 = vmatpush1.msra.mxu0 0.0
        %485 = vmatprep.subr.mxu0 0.0
        %486 = vmatpush1.msra.mxu0 0.0
        %487 = vmatprep.subr.mxu0 0.0
        %488 = vmatpush1.msra.mxu0 0.0
        %489 = vmatprep.subr.mxu0 0.0
        %490 = vmatpush1.msra.mxu0 0.0
        %491 = vmatprep.subr.mxu0 0.0
        %492 = vmatpush1.msra.mxu0 0.0
        %493 = vmatprep.subr.mxu0 0.0
        %494 = vmatpush1.msra.mxu0 0.0
        %495 = vmatprep.subr.mxu0 0.0
        %496 = vmatpush1.msra.mxu0 0.0
        %497 = vmatprep.subr.mxu0 0.0
        %498 = vmatpush1.msra.mxu0 0.0
        %499 = vmatprep.subr.mxu0 0.0
        %500 = vmatpush1.msra.mxu0 0.0
        %501 = vmatprep.subr.mxu0 0.0
        %502 = vmatpush1.msra.mxu0 0.0
        %503 = vmatprep.subr.mxu0 0.0
        %504 = vmatpush1.msra.mxu0 0.0
        %505 = vmatprep.subr.mxu0 0.0
        %506 = vmatpush1.msra.mxu0 0.0
        %507 = vmatprep.subr.mxu0 0.0
        %508 = vmatpush1.msra.mxu0 0.0
        %509 = vmatprep.mubr.f32.mxu0 0.0
        %510 = vmatmul.mubr.f32.gmra.mrb[0].mxu0 %v426
        %v511 = vpop.f32.mrb[0].mxu0
        %v512 = vadd.f32 0.0, %v511
        %v513 = vpop.f32.mrb[0].mxu0
        %514 = vmatprep.mubr.f32.mxu0 0.0
        %515 = vmatmul.mubr.f32.gmra.mrb[0].mxu0 %v427
        %v516 = vpop.f32.mrb[0].mxu0
        %v517 = vadd.f32 0.0, %v516
        %v518 = vpop.f32.mrb[0].mxu0
        %519 = vdwg.mxu0
        %520 = vmatprep.subr.mxu0 0.0
        %521 = vmatpush1.msra.mxu0 %v410
        %522 = vmatprep.subr.mxu0 0.0
        %523 = vmatpush1.msra.mxu0 %v411
        %524 = vmatprep.subr.mxu0 0.0
        %525 = vmatpush1.msra.mxu0 %v412
        %526 = vmatprep.subr.mxu0 0.0
        %527 = vmatpush1.msra.mxu0 %v413
        %528 = vmatprep.subr.mxu0 0.0
        %529 = vmatpush1.msra.mxu0 %v414
        %530 = vmatprep.subr.mxu0 0.0
        %531 = vmatpush1.msra.mxu0 %v415
        %532 = vmatprep.subr.mxu0 0.0
        %533 = vmatpush1.msra.mxu0 %v416
        %534 = vmatprep.subr.mxu0 0.0
        %535 = vmatpush1.msra.mxu0 %v417
        %536 = vmatprep.subr.mxu0 0.0
        %537 = vmatpush1.msra.mxu0 %v418
        %538 = vmatprep.subr.mxu0 0.0
        %539 = vmatpush1.msra.mxu0 %v419
        %540 = vmatprep.subr.mxu0 0.0
        %541 = vmatpush1.msra.mxu0 %v420
        %542 = vmatprep.subr.mxu0 0.0
        %543 = vmatpush1.msra.mxu0 %v421
        %544 = vmatprep.subr.mxu0 0.0
        %545 = vmatpush1.msra.mxu0 %v422
        %546 = vmatprep.subr.mxu0 0.0
        %547 = vmatpush1.msra.mxu0 %v423
        %548 = vmatprep.subr.mxu0 0.0
        %549 = vmatpush1.msra.mxu0 %v424
        %550 = vmatprep.subr.mxu0 0.0
        %551 = vmatpush1.msra.mxu0 %v425
        %552 = vmatprep.subr.mxu0 0.0
        %553 = vmatpush1.msra.mxu0 0.0
        %554 = vmatprep.subr.mxu0 0.0
        %555 = vmatpush1.msra.mxu0 0.0
        %556 = vmatprep.subr.mxu0 0.0
        %557 = vmatpush1.msra.mxu0 0.0
        %558 = vmatprep.subr.mxu0 0.0
        %559 = vmatpush1.msra.mxu0 0.0
        %560 = vmatprep.subr.mxu0 0.0
        %561 = vmatpush1.msra.mxu0 0.0
        %562 = vmatprep.subr.mxu0 0.0
        %563 = vmatpush1.msra.mxu0 0.0
        %564 = vmatprep.subr.mxu0 0.0
        %565 = vmatpush1.msra.mxu0 0.0
        %566 = vmatprep.subr.mxu0 0.0
        %567 = vmatpush1.msra.mxu0 0.0
        %568 = vmatprep.subr.mxu0 0.0
        %569 = vmatpush1.msra.mxu0 0.0
        %570 = vmatprep.subr.mxu0 0.0
        %571 = vmatpush1.msra.mxu0 0.0
        %572 = vmatprep.subr.mxu0 0.0
        %573 = vmatpush1.msra.mxu0 0.0
        %574 = vmatprep.subr.mxu0 0.0
        %575 = vmatpush1.msra.mxu0 0.0
        %576 = vmatprep.subr.mxu0 0.0
        %577 = vmatpush1.msra.mxu0 0.0
        %578 = vmatprep.subr.mxu0 0.0
        %579 = vmatpush1.msra.mxu0 0.0
        %580 = vmatprep.subr.mxu0 0.0
        %581 = vmatpush1.msra.mxu0 0.0
        %582 = vmatprep.subr.mxu0 0.0
        %583 = vmatpush1.msra.mxu0 0.0
        %584 = vmatprep.mubr.f32.mxu0 0.0
        %585 = vmatmul.mubr.f32.gmra.mrb[0].mxu0 %v408
        %v586 = vpop.f32.mrb[0].mxu0
        %v587 = vadd.f32 %v512, %v586
        %v588 = vpop.f32.mrb[0].mxu0
        %589 = vmatprep.mubr.f32.mxu0 0.0
        %590 = vmatmul.mubr.f32.gmra.mrb[0].mxu0 %v409
        %v591 = vpop.f32.mrb[0].mxu0
        %v592 = vadd.f32 %v517, %v591
        %v593 = vpop.f32.mrb[0].mxu0
        %594 = vdwg.mxu0
        %v595 = vld [vmem:[%s407 + $0x2] sm:$0xff]
        %v596 = vld [vmem:[%s407 + $0xa] sm:$0x3f]
        %s597 = scalar_lea.vmem %s3, 256
        %v598 = vld [vmem:[%s597] sm:$0xff]
        %v599 = vld [vmem:[%s597 + $0x8] sm:$0xff]
        %v600 = vld [vmem:[%s597 + $0x10] sm:$0xff]
        %v601 = vld [vmem:[%s597 + $0x18] sm:$0xff]
        %v602 = vld [vmem:[%s597 + $0x20] sm:$0xff]
        %v603 = vld [vmem:[%s597 + $0x28] sm:$0xff]
        %v604 = vld [vmem:[%s597 + $0x30] sm:$0xff]
        %v605 = vld [vmem:[%s597 + $0x38] sm:$0xff]
        %v606 = vld [vmem:[%s597 + $0x40] sm:$0xff]
        %v607 = vld [vmem:[%s597 + $0x48] sm:$0xff]
        %v608 = vld [vmem:[%s597 + $0x50] sm:$0xff]
        %v609 = vld [vmem:[%s597 + $0x58] sm:$0xff]
        %v610 = vld [vmem:[%s597 + $0x60] sm:$0xff]
        %v611 = vld [vmem:[%s597 + $0x68] sm:$0xff]
        %v612 = vld [vmem:[%s597 + $0x70] sm:$0xff]
        %v613 = vld [vmem:[%s597 + $0x78] sm:$0xff]
        %614 = vmatprep.subr.mxu0 0.0
        %615 = vmatpush1.msra.mxu0 %v598
        %616 = vmatprep.subr.mxu0 0.0
        %617 = vmatpush1.msra.mxu0 %v599
        %618 = vmatprep.subr.mxu0 0.0
        %619 = vmatpush1.msra.mxu0 %v600
        %620 = vmatprep.subr.mxu0 0.0
        %621 = vmatpush1.msra.mxu0 %v601
        %622 = vmatprep.subr.mxu0 0.0
        %623 = vmatpush1.msra.mxu0 %v602
        %624 = vmatprep.subr.mxu0 0.0
        %625 = vmatpush1.msra.mxu0 %v603
        %626 = vmatprep.subr.mxu0 0.0
        %627 = vmatpush1.msra.mxu0 %v604
        %628 = vmatprep.subr.mxu0 0.0
        %629 = vmatpush1.msra.mxu0 %v605
        %630 = vmatprep.subr.mxu0 0.0
        %631 = vmatpush1.msra.mxu0 %v606
        %632 = vmatprep.subr.mxu0 0.0
        %633 = vmatpush1.msra.mxu0 %v607
        %634 = vmatprep.subr.mxu0 0.0
        %635 = vmatpush1.msra.mxu0 %v608
        %636 = vmatprep.subr.mxu0 0.0
        %637 = vmatpush1.msra.mxu0 %v609
        %638 = vmatprep.subr.mxu0 0.0
        %639 = vmatpush1.msra.mxu0 %v610
        %640 = vmatprep.subr.mxu0 0.0
        %641 = vmatpush1.msra.mxu0 %v611
        %642 = vmatprep.subr.mxu0 0.0
        %643 = vmatpush1.msra.mxu0 %v612
        %644 = vmatprep.subr.mxu0 0.0
        %645 = vmatpush1.msra.mxu0 %v613
        %646 = vmatprep.subr.mxu0 0.0
        %647 = vmatpush1.msra.mxu0 0.0
        %648 = vmatprep.subr.mxu0 0.0
        %649 = vmatpush1.msra.mxu0 0.0
        %650 = vmatprep.subr.mxu0 0.0
        %651 = vmatpush1.msra.mxu0 0.0
        %652 = vmatprep.subr.mxu0 0.0
        %653 = vmatpush1.msra.mxu0 0.0
        %654 = vmatprep.subr.mxu0 0.0
        %655 = vmatpush1.msra.mxu0 0.0
        %656 = vmatprep.subr.mxu0 0.0
        %657 = vmatpush1.msra.mxu0 0.0
        %658 = vmatprep.subr.mxu0 0.0
        %659 = vmatpush1.msra.mxu0 0.0
        %660 = vmatprep.subr.mxu0 0.0
        %661 = vmatpush1.msra.mxu0 0.0
        %662 = vmatprep.subr.mxu0 0.0
        %663 = vmatpush1.msra.mxu0 0.0
        %664 = vmatprep.subr.mxu0 0.0
        %665 = vmatpush1.msra.mxu0 0.0
        %666 = vmatprep.subr.mxu0 0.0
        %667 = vmatpush1.msra.mxu0 0.0
        %668 = vmatprep.subr.mxu0 0.0
        %669 = vmatpush1.msra.mxu0 0.0
        %670 = vmatprep.subr.mxu0 0.0
        %671 = vmatpush1.msra.mxu0 0.0
        %672 = vmatprep.subr.mxu0 0.0
        %673 = vmatpush1.msra.mxu0 0.0
        %674 = vmatprep.subr.mxu0 0.0
        %675 = vmatpush1.msra.mxu0 0.0
        %676 = vmatprep.subr.mxu0 0.0
        %677 = vmatpush1.msra.mxu0 0.0
        %678 = vmatprep.mubr.f32.mxu0 0.0
        %679 = vmatmul.mubr.f32.gmra.mrb[0].mxu0 %v595
        %v680 = vpop.f32.mrb[0].mxu0
        %v681 = vadd.f32 0.0, %v680
        %v682 = vpop.f32.mrb[0].mxu0
        %683 = vmatprep.mubr.f32.mxu0 0.0
        %684 = vmatmul.mubr.f32.gmra.mrb[0].mxu0 %v596
        %v685 = vpop.f32.mrb[0].mxu0
        %v686 = vadd.f32 0.0, %v685
        %v687 = vpop.f32.mrb[0].mxu0
        %688 = vdwg.mxu0
        %v689 = vadd.f32 %v587, %v681
        %v690 = vadd.f32 %v592, %v686
        %s691 = sadd.s32 %s401, 1
        %s692 = smul.u32 %s691, 16
        %s693 = scalar_lea.vmem [#allocation2], %s692
        %v694 = vld [vmem:[%s693] sm:$0xff]
        %v695 = vld [vmem:[%s693 + $0x8] sm:$0x3f]
        %s696 = scalar_lea.vmem %s3, 384
        %v697 = vld [vmem:[%s696] sm:$0xff]
        %v698 = vld [vmem:[%s696 + $0x8] sm:$0xff]
        %v699 = vld [vmem:[%s696 + $0x10] sm:$0xff]
        %v700 = vld [vmem:[%s696 + $0x18] sm:$0xff]
        %v701 = vld [vmem:[%s696 + $0x20] sm:$0xff]
        %v702 = vld [vmem:[%s696 + $0x28] sm:$0xff]
        %v703 = vld [vmem:[%s696 + $0x30] sm:$0xff]
        %v704 = vld [vmem:[%s696 + $0x38] sm:$0xff]
        %v705 = vld [vmem:[%s696 + $0x40] sm:$0xff]
        %v706 = vld [vmem:[%s696 + $0x48] sm:$0xff]
        %v707 = vld [vmem:[%s696 + $0x50] sm:$0xff]
        %v708 = vld [vmem:[%s696 + $0x58] sm:$0xff]
        %v709 = vld [vmem:[%s696 + $0x60] sm:$0xff]
        %v710 = vld [vmem:[%s696 + $0x68] sm:$0xff]
        %v711 = vld [vmem:[%s696 + $0x70] sm:$0xff]
        %v712 = vld [vmem:[%s696 + $0x78] sm:$0xff]
        %713 = vmatprep.subr.mxu0 0.0
        %714 = vmatpush1.msra.mxu0 %v697
        %715 = vmatprep.subr.mxu0 0.0
        %716 = vmatpush1.msra.mxu0 %v698
        %717 = vmatprep.subr.mxu0 0.0
        %718 = vmatpush1.msra.mxu0 %v699
        %719 = vmatprep.subr.mxu0 0.0
        %720 = vmatpush1.msra.mxu0 %v700
        %721 = vmatprep.subr.mxu0 0.0
        %722 = vmatpush1.msra.mxu0 %v701
        %723 = vmatprep.subr.mxu0 0.0
        %724 = vmatpush1.msra.mxu0 %v702
        %725 = vmatprep.subr.mxu0 0.0
        %726 = vmatpush1.msra.mxu0 %v703
        %727 = vmatprep.subr.mxu0 0.0
        %728 = vmatpush1.msra.mxu0 %v704
        %729 = vmatprep.subr.mxu0 0.0
        %730 = vmatpush1.msra.mxu0 %v705
        %731 = vmatprep.subr.mxu0 0.0
        %732 = vmatpush1.msra.mxu0 %v706
        %733 = vmatprep.subr.mxu0 0.0
        %734 = vmatpush1.msra.mxu0 %v707
        %735 = vmatprep.subr.mxu0 0.0
        %736 = vmatpush1.msra.mxu0 %v708
        %737 = vmatprep.subr.mxu0 0.0
        %738 = vmatpush1.msra.mxu0 %v709
        %739 = vmatprep.subr.mxu0 0.0
        %740 = vmatpush1.msra.mxu0 %v710
        %741 = vmatprep.subr.mxu0 0.0
        %742 = vmatpush1.msra.mxu0 %v711
        %743 = vmatprep.subr.mxu0 0.0
        %744 = vmatpush1.msra.mxu0 %v712
        %745 = vmatprep.subr.mxu0 0.0
        %746 = vmatpush1.msra.mxu0 0.0
        %747 = vmatprep.subr.mxu0 0.0
        %748 = vmatpush1.msra.mxu0 0.0
        %749 = vmatprep.subr.mxu0 0.0
        %750 = vmatpush1.msra.mxu0 0.0
        %751 = vmatprep.subr.mxu0 0.0
        %752 = vmatpush1.msra.mxu0 0.0
        %753 = vmatprep.subr.mxu0 0.0
        %754 = vmatpush1.msra.mxu0 0.0
        %755 = vmatprep.subr.mxu0 0.0
        %756 = vmatpush1.msra.mxu0 0.0
        %757 = vmatprep.subr.mxu0 0.0
        %758 = vmatpush1.msra.mxu0 0.0
        %759 = vmatprep.subr.mxu0 0.0
        %760 = vmatpush1.msra.mxu0 0.0
        %761 = vmatprep.subr.mxu0 0.0
        %762 = vmatpush1.msra.mxu0 0.0
        %763 = vmatprep.subr.mxu0 0.0
        %764 = vmatpush1.msra.mxu0 0.0
        %765 = vmatprep.subr.mxu0 0.0
        %766 = vmatpush1.msra.mxu0 0.0
        %767 = vmatprep.subr.mxu0 0.0
        %768 = vmatpush1.msra.mxu0 0.0
        %769 = vmatprep.subr.mxu0 0.0
        %770 = vmatpush1.msra.mxu0 0.0
        %771 = vmatprep.subr.mxu0 0.0
        %772 = vmatpush1.msra.mxu0 0.0
        %773 = vmatprep.subr.mxu0 0.0
        %774 = vmatpush1.msra.mxu0 0.0
        %775 = vmatprep.subr.mxu0 0.0
        %776 = vmatpush1.msra.mxu0 0.0
        %777 = vmatprep.mubr.f32.mxu0 0.0
        %778 = vmatmul.mubr.f32.gmra.mrb[0].mxu0 %v694
        %v779 = vpop.f32.mrb[0].mxu0
        %v780 = vadd.f32 0.0, %v779
        %v781 = vpop.f32.mrb[0].mxu0
        %782 = vmatprep.mubr.f32.mxu0 0.0
        %783 = vmatmul.mubr.f32.gmra.mrb[0].mxu0 %v695
        %v784 = vpop.f32.mrb[0].mxu0
        %v785 = vadd.f32 0.0, %v784
        %v786 = vpop.f32.mrb[0].mxu0
        %787 = vdwg.mxu0
        %v788 = vadd.f32 %v689, %v780
        %v789 = vadd.f32 %v690, %v785
        %v790 = vld [vmem:[%s693 + $0x1] sm:$0xff]
        %v791 = vld [vmem:[%s693 + $0x9] sm:$0x3f]
        %s792 = scalar_lea.vmem %s3, 512
        %v793 = vld [vmem:[%s792] sm:$0xff]
        %v794 = vld [vmem:[%s792 + $0x8] sm:$0xff]
        %v795 = vld [vmem:[%s792 + $0x10] sm:$0xff]
        %v796 = vld [vmem:[%s792 + $0x18] sm:$0xff]
        %v797 = vld [vmem:[%s792 + $0x20] sm:$0xff]
        %v798 = vld [vmem:[%s792 + $0x28] sm:$0xff]
        %v799 = vld [vmem:[%s792 + $0x30] sm:$0xff]
        %v800 = vld [vmem:[%s792 + $0x38] sm:$0xff]
        %v801 = vld [vmem:[%s792 + $0x40] sm:$0xff]
        %v802 = vld [vmem:[%s792 + $0x48] sm:$0xff]
        %v803 = vld [vmem:[%s792 + $0x50] sm:$0xff]
        %v804 = vld [vmem:[%s792 + $0x58] sm:$0xff]
        %v805 = vld [vmem:[%s792 + $0x60] sm:$0xff]
        %v806 = vld [vmem:[%s792 + $0x68] sm:$0xff]
        %v807 = vld [vmem:[%s792 + $0x70] sm:$0xff]
        %v808 = vld [vmem:[%s792 + $0x78] sm:$0xff]
        %809 = vmatprep.subr.mxu0 0.0
        %810 = vmatpush1.msra.mxu0 %v793
        %811 = vmatprep.subr.mxu0 0.0
        %812 = vmatpush1.msra.mxu0 %v794
        %813 = vmatprep.subr.mxu0 0.0
        %814 = vmatpush1.msra.mxu0 %v795
        %815 = vmatprep.subr.mxu0 0.0
        %816 = vmatpush1.msra.mxu0 %v796
        %817 = vmatprep.subr.mxu0 0.0
        %818 = vmatpush1.msra.mxu0 %v797
        %819 = vmatprep.subr.mxu0 0.0
        %820 = vmatpush1.msra.mxu0 %v798
        %821 = vmatprep.subr.mxu0 0.0
        %822 = vmatpush1.msra.mxu0 %v799
        %823 = vmatprep.subr.mxu0 0.0
        %824 = vmatpush1.msra.mxu0 %v800
        %825 = vmatprep.subr.mxu0 0.0
        %826 = vmatpush1.msra.mxu0 %v801
        %827 = vmatprep.subr.mxu0 0.0
        %828 = vmatpush1.msra.mxu0 %v802
        %829 = vmatprep.subr.mxu0 0.0
        %830 = vmatpush1.msra.mxu0 %v803
        %831 = vmatprep.subr.mxu0 0.0
        %832 = vmatpush1.msra.mxu0 %v804
        %833 = vmatprep.subr.mxu0 0.0
        %834 = vmatpush1.msra.mxu0 %v805
        %835 = vmatprep.subr.mxu0 0.0
        %836 = vmatpush1.msra.mxu0 %v806
        %837 = vmatprep.subr.mxu0 0.0
        %838 = vmatpush1.msra.mxu0 %v807
        %839 = vmatprep.subr.mxu0 0.0
        %840 = vmatpush1.msra.mxu0 %v808
        %841 = vmatprep.subr.mxu0 0.0
        %842 = vmatpush1.msra.mxu0 0.0
        %843 = vmatprep.subr.mxu0 0.0
        %844 = vmatpush1.msra.mxu0 0.0
        %845 = vmatprep.subr.mxu0 0.0
        %846 = vmatpush1.msra.mxu0 0.0
        %847 = vmatprep.subr.mxu0 0.0
        %848 = vmatpush1.msra.mxu0 0.0
        %849 = vmatprep.subr.mxu0 0.0
        %850 = vmatpush1.msra.mxu0 0.0
        %851 = vmatprep.subr.mxu0 0.0
        %852 = vmatpush1.msra.mxu0 0.0
        %853 = vmatprep.subr.mxu0 0.0
        %854 = vmatpush1.msra.mxu0 0.0
        %855 = vmatprep.subr.mxu0 0.0
        %856 = vmatpush1.msra.mxu0 0.0
        %857 = vmatprep.subr.mxu0 0.0
        %858 = vmatpush1.msra.mxu0 0.0
        %859 = vmatprep.subr.mxu0 0.0
        %860 = vmatpush1.msra.mxu0 0.0
        %861 = vmatprep.subr.mxu0 0.0
        %862 = vmatpush1.msra.mxu0 0.0
        %863 = vmatprep.subr.mxu0 0.0
        %864 = vmatpush1.msra.mxu0 0.0
        %865 = vmatprep.subr.mxu0 0.0
        %866 = vmatpush1.msra.mxu0 0.0
        %867 = vmatprep.subr.mxu0 0.0
        %868 = vmatpush1.msra.mxu0 0.0
        %869 = vmatprep.subr.mxu0 0.0
        %870 = vmatpush1.msra.mxu0 0.0
        %871 = vmatprep.subr.mxu0 0.0
        %872 = vmatpush1.msra.mxu0 0.0
        %873 = vmatprep.mubr.f32.mxu0 0.0
        %874 = vmatmul.mubr.f32.gmra.mrb[0].mxu0 %v790
        %v875 = vpop.f32.mrb[0].mxu0
        %v876 = vadd.f32 0.0, %v875
        %v877 = vpop.f32.mrb[0].mxu0
        %878 = vmatprep.mubr.f32.mxu0 0.0
        %879 = vmatmul.mubr.f32.gmra.mrb[0].mxu0 %v791
        %v880 = vpop.f32.mrb[0].mxu0
        %v881 = vadd.f32 0.0, %v880
        %v882 = vpop.f32.mrb[0].mxu0
        %883 = vdwg.mxu0
        %v884 = vadd.f32 %v788, %v876
        %v885 = vadd.f32 %v789, %v881
        %v886 = vld [vmem:[%s693 + $0x2] sm:$0xff]
        %v887 = vld [vmem:[%s693 + $0xa] sm:$0x3f]
        %s888 = scalar_lea.vmem %s3, 640
        %v889 = vld [vmem:[%s888] sm:$0xff]
        %v890 = vld [vmem:[%s888 + $0x8] sm:$0xff]
        %v891 = vld [vmem:[%s888 + $0x10] sm:$0xff]
        %v892 = vld [vmem:[%s888 + $0x18] sm:$0xff]
        %v893 = vld [vmem:[%s888 + $0x20] sm:$0xff]
        %v894 = vld [vmem:[%s888 + $0x28] sm:$0xff]
        %v895 = vld [vmem:[%s888 + $0x30] sm:$0xff]
        %v896 = vld [vmem:[%s888 + $0x38] sm:$0xff]
        %v897 = vld [vmem:[%s888 + $0x40] sm:$0xff]
        %v898 = vld [vmem:[%s888 + $0x48] sm:$0xff]
        %v899 = vld [vmem:[%s888 + $0x50] sm:$0xff]
        %v900 = vld [vmem:[%s888 + $0x58] sm:$0xff]
        %v901 = vld [vmem:[%s888 + $0x60] sm:$0xff]
        %v902 = vld [vmem:[%s888 + $0x68] sm:$0xff]
        %v903 = vld [vmem:[%s888 + $0x70] sm:$0xff]
        %v904 = vld [vmem:[%s888 + $0x78] sm:$0xff]
        %905 = vmatprep.subr.mxu0 0.0
        %906 = vmatpush1.msra.mxu0 %v889
        %907 = vmatprep.subr.mxu0 0.0
        %908 = vmatpush1.msra.mxu0 %v890
        %909 = vmatprep.subr.mxu0 0.0
        %910 = vmatpush1.msra.mxu0 %v891
        %911 = vmatprep.subr.mxu0 0.0
        %912 = vmatpush1.msra.mxu0 %v892
        %913 = vmatprep.subr.mxu0 0.0
        %914 = vmatpush1.msra.mxu0 %v893
        %915 = vmatprep.subr.mxu0 0.0
        %916 = vmatpush1.msra.mxu0 %v894
        %917 = vmatprep.subr.mxu0 0.0
        %918 = vmatpush1.msra.mxu0 %v895
        %919 = vmatprep.subr.mxu0 0.0
        %920 = vmatpush1.msra.mxu0 %v896
        %921 = vmatprep.subr.mxu0 0.0
        %922 = vmatpush1.msra.mxu0 %v897
        %923 = vmatprep.subr.mxu0 0.0
        %924 = vmatpush1.msra.mxu0 %v898
        %925 = vmatprep.subr.mxu0 0.0
        %926 = vmatpush1.msra.mxu0 %v899
        %927 = vmatprep.subr.mxu0 0.0
        %928 = vmatpush1.msra.mxu0 %v900
        %929 = vmatprep.subr.mxu0 0.0
        %930 = vmatpush1.msra.mxu0 %v901
        %931 = vmatprep.subr.mxu0 0.0
        %932 = vmatpush1.msra.mxu0 %v902
        %933 = vmatprep.subr.mxu0 0.0
        %934 = vmatpush1.msra.mxu0 %v903
        %935 = vmatprep.subr.mxu0 0.0
        %936 = vmatpush1.msra.mxu0 %v904
        %937 = vmatprep.subr.mxu0 0.0
        %938 = vmatpush1.msra.mxu0 0.0
        %939 = vmatprep.subr.mxu0 0.0
        %940 = vmatpush1.msra.mxu0 0.0
        %941 = vmatprep.subr.mxu0 0.0
        %942 = vmatpush1.msra.mxu0 0.0
        %943 = vmatprep.subr.mxu0 0.0
        %944 = vmatpush1.msra.mxu0 0.0
        %945 = vmatprep.subr.mxu0 0.0
        %946 = vmatpush1.msra.mxu0 0.0
        %947 = vmatprep.subr.mxu0 0.0
        %948 = vmatpush1.msra.mxu0 0.0
        %949 = vmatprep.subr.mxu0 0.0
        %950 = vmatpush1.msra.mxu0 0.0
        %951 = vmatprep.subr.mxu0 0.0
        %952 = vmatpush1.msra.mxu0 0.0
        %953 = vmatprep.subr.mxu0 0.0
        %954 = vmatpush1.msra.mxu0 0.0
        %955 = vmatprep.subr.mxu0 0.0
        %956 = vmatpush1.msra.mxu0 0.0
        %957 = vmatprep.subr.mxu0 0.0
        %958 = vmatpush1.msra.mxu0 0.0
        %959 = vmatprep.subr.mxu0 0.0
        %960 = vmatpush1.msra.mxu0 0.0
        %961 = vmatprep.subr.mxu0 0.0
        %962 = vmatpush1.msra.mxu0 0.0
        %963 = vmatprep.subr.mxu0 0.0
        %964 = vmatpush1.msra.mxu0 0.0
        %965 = vmatprep.subr.mxu0 0.0
        %966 = vmatpush1.msra.mxu0 0.0
        %967 = vmatprep.subr.mxu0 0.0
        %968 = vmatpush1.msra.mxu0 0.0
        %969 = vmatprep.mubr.f32.mxu0 0.0
        %970 = vmatmul.mubr.f32.gmra.mrb[0].mxu0 %v886
        %v971 = vpop.f32.mrb[0].mxu0
        %v972 = vadd.f32 0.0, %v971
        %v973 = vpop.f32.mrb[0].mxu0
        %974 = vmatprep.mubr.f32.mxu0 0.0
        %975 = vmatmul.mubr.f32.gmra.mrb[0].mxu0 %v887
        %v976 = vpop.f32.mrb[0].mxu0
        %v977 = vadd.f32 0.0, %v976
        %v978 = vpop.f32.mrb[0].mxu0
        %979 = vdwg.mxu0
        %v980 = vadd.f32 %v884, %v972
        %v981 = vadd.f32 %v885, %v977
        %s982 = sadd.s32 %s401, 2
        %s983 = smul.u32 %s982, 16
        %s984 = scalar_lea.vmem [#allocation2], %s983
        %v985 = vld [vmem:[%s984] sm:$0xff]
        %v986 = vld [vmem:[%s984 + $0x8] sm:$0x3f]
        %s987 = scalar_lea.vmem %s3, 768
        %v988 = vld [vmem:[%s987] sm:$0xff]
        %v989 = vld [vmem:[%s987 + $0x8] sm:$0xff]
        %v990 = vld [vmem:[%s987 + $0x10] sm:$0xff]
        %v991 = vld [vmem:[%s987 + $0x18] sm:$0xff]
        %v992 = vld [vmem:[%s987 + $0x20] sm:$0xff]
        %v993 = vld [vmem:[%s987 + $0x28] sm:$0xff]
        %v994 = vld [vmem:[%s987 + $0x30] sm:$0xff]
        %v995 = vld [vmem:[%s987 + $0x38] sm:$0xff]
        %v996 = vld [vmem:[%s987 + $0x40] sm:$0xff]
        %v997 = vld [vmem:[%s987 + $0x48] sm:$0xff]
        %v998 = vld [vmem:[%s987 + $0x50] sm:$0xff]
        %v999 = vld [vmem:[%s987 + $0x58] sm:$0xff]
        %v1000 = vld [vmem:[%s987 + $0x60] sm:$0xff]
        %v1001 = vld [vmem:[%s987 + $0x68] sm:$0xff]
        %v1002 = vld [vmem:[%s987 + $0x70] sm:$0xff]
        %v1003 = vld [vmem:[%s987 + $0x78] sm:$0xff]
        %1004 = vmatprep.subr.mxu0 0.0
        %1005 = vmatpush1.msra.mxu0 %v988
        %1006 = vmatprep.subr.mxu0 0.0
        %1007 = vmatpush1.msra.mxu0 %v989
        %1008 = vmatprep.subr.mxu0 0.0
        %1009 = vmatpush1.msra.mxu0 %v990
        %1010 = vmatprep.subr.mxu0 0.0
        %1011 = vmatpush1.msra.mxu0 %v991
        %1012 = vmatprep.subr.mxu0 0.0
        %1013 = vmatpush1.msra.mxu0 %v992
        %1014 = vmatprep.subr.mxu0 0.0
        %1015 = vmatpush1.msra.mxu0 %v993
        %1016 = vmatprep.subr.mxu0 0.0
        %1017 = vmatpush1.msra.mxu0 %v994
        %1018 = vmatprep.subr.mxu0 0.0
        %1019 = vmatpush1.msra.mxu0 %v995
        %1020 = vmatprep.subr.mxu0 0.0
        %1021 = vmatpush1.msra.mxu0 %v996
        %1022 = vmatprep.subr.mxu0 0.0
        %1023 = vmatpush1.msra.mxu0 %v997
        %1024 = vmatprep.subr.mxu0 0.0
        %1025 = vmatpush1.msra.mxu0 %v998
        %1026 = vmatprep.subr.mxu0 0.0
        %1027 = vmatpush1.msra.mxu0 %v999
        %1028 = vmatprep.subr.mxu0 0.0
        %1029 = vmatpush1.msra.mxu0 %v1000
        %1030 = vmatprep.subr.mxu0 0.0
        %1031 = vmatpush1.msra.mxu0 %v1001
        %1032 = vmatprep.subr.mxu0 0.0
        %1033 = vmatpush1.msra.mxu0 %v1002
        %1034 = vmatprep.subr.mxu0 0.0
        %1035 = vmatpush1.msra.mxu0 %v1003
        %1036 = vmatprep.subr.mxu0 0.0
        %1037 = vmatpush1.msra.mxu0 0.0
        %1038 = vmatprep.subr.mxu0 0.0
        %1039 = vmatpush1.msra.mxu0 0.0
        %1040 = vmatprep.subr.mxu0 0.0
        %1041 = vmatpush1.msra.mxu0 0.0
        %1042 = vmatprep.subr.mxu0 0.0
        %1043 = vmatpush1.msra.mxu0 0.0
        %1044 = vmatprep.subr.mxu0 0.0
        %1045 = vmatpush1.msra.mxu0 0.0
        %1046 = vmatprep.subr.mxu0 0.0
        %1047 = vmatpush1.msra.mxu0 0.0
        %1048 = vmatprep.subr.mxu0 0.0
        %1049 = vmatpush1.msra.mxu0 0.0
        %1050 = vmatprep.subr.mxu0 0.0
        %1051 = vmatpush1.msra.mxu0 0.0
        %1052 = vmatprep.subr.mxu0 0.0
        %1053 = vmatpush1.msra.mxu0 0.0
        %1054 = vmatprep.subr.mxu0 0.0
        %1055 = vmatpush1.msra.mxu0 0.0
        %1056 = vmatprep.subr.mxu0 0.0
        %1057 = vmatpush1.msra.mxu0 0.0
        %1058 = vmatprep.subr.mxu0 0.0
        %1059 = vmatpush1.msra.mxu0 0.0
        %1060 = vmatprep.subr.mxu0 0.0
        %1061 = vmatpush1.msra.mxu0 0.0
        %1062 = vmatprep.subr.mxu0 0.0
        %1063 = vmatpush1.msra.mxu0 0.0
        %1064 = vmatprep.subr.mxu0 0.0
        %1065 = vmatpush1.msra.mxu0 0.0
        %1066 = vmatprep.subr.mxu0 0.0
        %1067 = vmatpush1.msra.mxu0 0.0
        %1068 = vmatprep.mubr.f32.mxu0 0.0
        %1069 = vmatmul.mubr.f32.gmra.mrb[0].mxu0 %v985
        %v1070 = vpop.f32.mrb[0].mxu0
        %v1071 = vadd.f32 0.0, %v1070
        %v1072 = vpop.f32.mrb[0].mxu0
        %1073 = vmatprep.mubr.f32.mxu0 0.0
        %1074 = vmatmul.mubr.f32.gmra.mrb[0].mxu0 %v986
        %v1075 = vpop.f32.mrb[0].mxu0
        %v1076 = vadd.f32 0.0, %v1075
        %v1077 = vpop.f32.mrb[0].mxu0
        %1078 = vdwg.mxu0
        %v1079 = vadd.f32 %v980, %v1071
        %v1080 = vadd.f32 %v981, %v1076
        %v1081 = vld [vmem:[%s984 + $0x1] sm:$0xff]
        %v1082 = vld [vmem:[%s984 + $0x9] sm:$0x3f]
        %s1083 = scalar_lea.vmem %s3, 896
        %v1084 = vld [vmem:[%s1083] sm:$0xff]
        %v1085 = vld [vmem:[%s1083 + $0x8] sm:$0xff]
        %v1086 = vld [vmem:[%s1083 + $0x10] sm:$0xff]
        %v1087 = vld [vmem:[%s1083 + $0x18] sm:$0xff]
        %v1088 = vld [vmem:[%s1083 + $0x20] sm:$0xff]
        %v1089 = vld [vmem:[%s1083 + $0x28] sm:$0xff]
        %v1090 = vld [vmem:[%s1083 + $0x30] sm:$0xff]
        %v1091 = vld [vmem:[%s1083 + $0x38] sm:$0xff]
        %v1092 = vld [vmem:[%s1083 + $0x40] sm:$0xff]
        %v1093 = vld [vmem:[%s1083 + $0x48] sm:$0xff]
        %v1094 = vld [vmem:[%s1083 + $0x50] sm:$0xff]
        %v1095 = vld [vmem:[%s1083 + $0x58] sm:$0xff]
        %v1096 = vld [vmem:[%s1083 + $0x60] sm:$0xff]
        %v1097 = vld [vmem:[%s1083 + $0x68] sm:$0xff]
        %v1098 = vld [vmem:[%s1083 + $0x70] sm:$0xff]
        %v1099 = vld [vmem:[%s1083 + $0x78] sm:$0xff]
        %1100 = vmatprep.subr.mxu0 0.0
        %1101 = vmatpush1.msra.mxu0 %v1084
        %1102 = vmatprep.subr.mxu0 0.0
        %1103 = vmatpush1.msra.mxu0 %v1085
        %1104 = vmatprep.subr.mxu0 0.0
        %1105 = vmatpush1.msra.mxu0 %v1086
        %1106 = vmatprep.subr.mxu0 0.0
        %1107 = vmatpush1.msra.mxu0 %v1087
        %1108 = vmatprep.subr.mxu0 0.0
        %1109 = vmatpush1.msra.mxu0 %v1088
        %1110 = vmatprep.subr.mxu0 0.0
        %1111 = vmatpush1.msra.mxu0 %v1089
        %1112 = vmatprep.subr.mxu0 0.0
        %1113 = vmatpush1.msra.mxu0 %v1090
        %1114 = vmatprep.subr.mxu0 0.0
        %1115 = vmatpush1.msra.mxu0 %v1091
        %1116 = vmatprep.subr.mxu0 0.0
        %1117 = vmatpush1.msra.mxu0 %v1092
        %1118 = vmatprep.subr.mxu0 0.0
        %1119 = vmatpush1.msra.mxu0 %v1093
        %1120 = vmatprep.subr.mxu0 0.0
        %1121 = vmatpush1.msra.mxu0 %v1094
        %1122 = vmatprep.subr.mxu0 0.0
        %1123 = vmatpush1.msra.mxu0 %v1095
        %1124 = vmatprep.subr.mxu0 0.0
        %1125 = vmatpush1.msra.mxu0 %v1096
        %1126 = vmatprep.subr.mxu0 0.0
        %1127 = vmatpush1.msra.mxu0 %v1097
        %1128 = vmatprep.subr.mxu0 0.0
        %1129 = vmatpush1.msra.mxu0 %v1098
        %1130 = vmatprep.subr.mxu0 0.0
        %1131 = vmatpush1.msra.mxu0 %v1099
        %1132 = vmatprep.subr.mxu0 0.0
        %1133 = vmatpush1.msra.mxu0 0.0
        %1134 = vmatprep.subr.mxu0 0.0
        %1135 = vmatpush1.msra.mxu0 0.0
        %1136 = vmatprep.subr.mxu0 0.0
        %1137 = vmatpush1.msra.mxu0 0.0
        %1138 = vmatprep.subr.mxu0 0.0
        %1139 = vmatpush1.msra.mxu0 0.0
        %1140 = vmatprep.subr.mxu0 0.0
        %1141 = vmatpush1.msra.mxu0 0.0
        %1142 = vmatprep.subr.mxu0 0.0
        %1143 = vmatpush1.msra.mxu0 0.0
        %1144 = vmatprep.subr.mxu0 0.0
        %1145 = vmatpush1.msra.mxu0 0.0
        %1146 = vmatprep.subr.mxu0 0.0
        %1147 = vmatpush1.msra.mxu0 0.0
        %1148 = vmatprep.subr.mxu0 0.0
        %1149 = vmatpush1.msra.mxu0 0.0
        %1150 = vmatprep.subr.mxu0 0.0
        %1151 = vmatpush1.msra.mxu0 0.0
        %1152 = vmatprep.subr.mxu0 0.0
        %1153 = vmatpush1.msra.mxu0 0.0
        %1154 = vmatprep.subr.mxu0 0.0
        %1155 = vmatpush1.msra.mxu0 0.0
        %1156 = vmatprep.subr.mxu0 0.0
        %1157 = vmatpush1.msra.mxu0 0.0
        %1158 = vmatprep.subr.mxu0 0.0
        %1159 = vmatpush1.msra.mxu0 0.0
        %1160 = vmatprep.subr.mxu0 0.0
        %1161 = vmatpush1.msra.mxu0 0.0
        %1162 = vmatprep.subr.mxu0 0.0
        %1163 = vmatpush1.msra.mxu0 0.0
        %1164 = vmatprep.mubr.f32.mxu0 0.0
        %1165 = vmatmul.mubr.f32.gmra.mrb[0].mxu0 %v1081
        %v1166 = vpop.f32.mrb[0].mxu0
        %v1167 = vadd.f32 0.0, %v1166
        %v1168 = vpop.f32.mrb[0].mxu0
        %1169 = vmatprep.mubr.f32.mxu0 0.0
        %1170 = vmatmul.mubr.f32.gmra.mrb[0].mxu0 %v1082
        %v1171 = vpop.f32.mrb[0].mxu0
        %v1172 = vadd.f32 0.0, %v1171
        %v1173 = vpop.f32.mrb[0].mxu0
        %1174 = vdwg.mxu0
        %v1175 = vadd.f32 %v1079, %v1167
        %v1176 = vadd.f32 %v1080, %v1172
        %v1177 = vld [vmem:[%s984 + $0x2] sm:$0xff]
        %v1178 = vld [vmem:[%s984 + $0xa] sm:$0x3f]
        %s1179 = scalar_lea.vmem %s3, 1024
        %v1180 = vld [vmem:[%s1179] sm:$0xff]
        %v1181 = vld [vmem:[%s1179 + $0x8] sm:$0xff]
        %v1182 = vld [vmem:[%s1179 + $0x10] sm:$0xff]
        %v1183 = vld [vmem:[%s1179 + $0x18] sm:$0xff]
        %v1184 = vld [vmem:[%s1179 + $0x20] sm:$0xff]
        %v1185 = vld [vmem:[%s1179 + $0x28] sm:$0xff]
        %v1186 = vld [vmem:[%s1179 + $0x30] sm:$0xff]
        %v1187 = vld [vmem:[%s1179 + $0x38] sm:$0xff]
        %v1188 = vld [vmem:[%s1179 + $0x40] sm:$0xff]
        %v1189 = vld [vmem:[%s1179 + $0x48] sm:$0xff]
        %v1190 = vld [vmem:[%s1179 + $0x50] sm:$0xff]
        %v1191 = vld [vmem:[%s1179 + $0x58] sm:$0xff]
        %v1192 = vld [vmem:[%s1179 + $0x60] sm:$0xff]
        %v1193 = vld [vmem:[%s1179 + $0x68] sm:$0xff]
        %v1194 = vld [vmem:[%s1179 + $0x70] sm:$0xff]
        %v1195 = vld [vmem:[%s1179 + $0x78] sm:$0xff]
        %1196 = vmatprep.subr.mxu0 0.0
        %1197 = vmatpush1.msra.mxu0 %v1180
        %1198 = vmatprep.subr.mxu0 0.0
        %1199 = vmatpush1.msra.mxu0 %v1181
        %1200 = vmatprep.subr.mxu0 0.0
        %1201 = vmatpush1.msra.mxu0 %v1182
        %1202 = vmatprep.subr.mxu0 0.0
        %1203 = vmatpush1.msra.mxu0 %v1183
        %1204 = vmatprep.subr.mxu0 0.0
        %1205 = vmatpush1.msra.mxu0 %v1184
        %1206 = vmatprep.subr.mxu0 0.0
        %1207 = vmatpush1.msra.mxu0 %v1185
        %1208 = vmatprep.subr.mxu0 0.0
        %1209 = vmatpush1.msra.mxu0 %v1186
        %1210 = vmatprep.subr.mxu0 0.0
        %1211 = vmatpush1.msra.mxu0 %v1187
        %1212 = vmatprep.subr.mxu0 0.0
        %1213 = vmatpush1.msra.mxu0 %v1188
        %1214 = vmatprep.subr.mxu0 0.0
        %1215 = vmatpush1.msra.mxu0 %v1189
        %1216 = vmatprep.subr.mxu0 0.0
        %1217 = vmatpush1.msra.mxu0 %v1190
        %1218 = vmatprep.subr.mxu0 0.0
        %1219 = vmatpush1.msra.mxu0 %v1191
        %1220 = vmatprep.subr.mxu0 0.0
        %1221 = vmatpush1.msra.mxu0 %v1192
        %1222 = vmatprep.subr.mxu0 0.0
        %1223 = vmatpush1.msra.mxu0 %v1193
        %1224 = vmatprep.subr.mxu0 0.0
        %1225 = vmatpush1.msra.mxu0 %v1194
        %1226 = vmatprep.subr.mxu0 0.0
        %1227 = vmatpush1.msra.mxu0 %v1195
        %1228 = vmatprep.subr.mxu0 0.0
        %1229 = vmatpush1.msra.mxu0 0.0
        %1230 = vmatprep.subr.mxu0 0.0
        %1231 = vmatpush1.msra.mxu0 0.0
        %1232 = vmatprep.subr.mxu0 0.0
        %1233 = vmatpush1.msra.mxu0 0.0
        %1234 = vmatprep.subr.mxu0 0.0
        %1235 = vmatpush1.msra.mxu0 0.0
        %1236 = vmatprep.subr.mxu0 0.0
        %1237 = vmatpush1.msra.mxu0 0.0
        %1238 = vmatprep.subr.mxu0 0.0
        %1239 = vmatpush1.msra.mxu0 0.0
        %1240 = vmatprep.subr.mxu0 0.0
        %1241 = vmatpush1.msra.mxu0 0.0
        %1242 = vmatprep.subr.mxu0 0.0
        %1243 = vmatpush1.msra.mxu0 0.0
        %1244 = vmatprep.subr.mxu0 0.0
        %1245 = vmatpush1.msra.mxu0 0.0
        %1246 = vmatprep.subr.mxu0 0.0
        %1247 = vmatpush1.msra.mxu0 0.0
        %1248 = vmatprep.subr.mxu0 0.0
        %1249 = vmatpush1.msra.mxu0 0.0
        %1250 = vmatprep.subr.mxu0 0.0
        %1251 = vmatpush1.msra.mxu0 0.0
        %1252 = vmatprep.subr.mxu0 0.0
        %1253 = vmatpush1.msra.mxu0 0.0
        %1254 = vmatprep.subr.mxu0 0.0
        %1255 = vmatpush1.msra.mxu0 0.0
        %1256 = vmatprep.subr.mxu0 0.0
        %1257 = vmatpush1.msra.mxu0 0.0
        %1258 = vmatprep.subr.mxu0 0.0
        %1259 = vmatpush1.msra.mxu0 0.0
        %1260 = vmatprep.mubr.f32.mxu0 0.0
        %1261 = vmatmul.mubr.f32.gmra.mrb[0].mxu0 %v1177
        %v1262 = vpop.f32.mrb[0].mxu0
        %v1263 = vadd.f32 0.0, %v1262
        %v1264 = vpop.f32.mrb[0].mxu0
        %1265 = vmatprep.mubr.f32.mxu0 0.0
        %1266 = vmatmul.mubr.f32.gmra.mrb[0].mxu0 %v1178
        %v1267 = vpop.f32.mrb[0].mxu0
        %v1268 = vadd.f32 0.0, %v1267
        %v1269 = vpop.f32.mrb[0].mxu0
        %1270 = vdwg.mxu0
        %v1271 = vadd.f32 %v1175, %v1263
        %v1272 = vadd.f32 %v1176, %v1268
        %v1274 = vlaneseq
        %v1275 = vshrl.u32 %v1274, 7
        %v1276 = vsub.s32 0, %v1275
        %v1277 = vrot.slane %v399, %v1276
        %v1279 = vadd.f32 %v1271, %v1277
        %v1280 = vadd.f32 %v1272, %v1277
        %s1281 = scalar_lea.vmem %s224, %s406
        %1282 = vst [vmem:[%s1281] sm:$0xff] %v1279
        %1283 = vst [vmem:[%s1281 + $0x8] sm:$0x3f] %v1280
      $region45: #{rconv_forward.5} parent=39 // loop_footer
        %s405 = sadd.s32 1, %s401
      $region46: #{rconv_forward.5} parent=39 // loop_footer_branch
        %400 = sbr.rel target = $region42
      $region47: #{rconv_forward.5} parent=39 // loop_exit
        _
      %p1284 = scmp.lt.s32.totalorder %s16, 1
      %s1285 = scalar_select %p1284, %s16, 1
      %s1286 = smul.addr %s1285, 28
      %s1287 = smul.addr %s1286, 8
      %s1288 = scalar_lea.vmem %s5, %s1287
      // Predicated region
      $region48: #{rconv_forward.5} parent=39 // pred_check
        %p1289 = pneg %p144
      $region49: #{rconv_forward.5} parent=39 // pred_check_branch
        %1291 = sbr.rel (%p1289) target = $region51
      $region50: #{rconv_forward.5} parent=39 // pred_region
        _
      $region51: #{rconv_forward.5} parent=39 // pred_fallthru
        _
    $region40: #{rconv_forward.5} parent=5 // pred_fallthru
      _
    %p1292 = scmp.le.s32.totalorder 2, %s11
    // Predicated region
    $region52: #{rconv_forward.5} parent=5 // pred_check
      %p1293 = pneg %p1292
    $region53: #{rconv_forward.5} parent=5 // pred_check_branch
      %1295 = sbr.rel (%p1293) target = $region55
    $region54: #{rconv_forward.5} parent=5 // pred_region
      %s1296 = ssub.s32 %s11, 2
      // Predicated region
      $region56: #{rconv_forward.5} parent=54 // pred_check
        %p1297 = pneg %p150
      $region57: #{rconv_forward.5} parent=54 // pred_check_branch
        %1299 = sbr.rel (%p1297) target = $region59
      $region58: #{rconv_forward.5} parent=54 // pred_region
        %p1300 = scmp.lt.s32.totalorder %s17, 1
        %s1301 = scalar_select %p1300, %s17, 1
        %s1302 = smul.addr %s1301, 28
        %s1303 = smul.addr %s1302, 8
        %s1304 = scalar_lea.vmem %s5, %s1303
      $region59: #{rconv_forward.5} parent=54 // pred_fallthru
        _
    $region55: #{rconv_forward.5} parent=5 // pred_fallthru
      _
  $region6: #{rconv_forward.5} parent=0 // loop_footer
    %s15 = sadd.s32 1, %s11
  $region7: #{rconv_forward.5} parent=0 // loop_footer_branch
    %10 = sbr.rel target = $region3
  $region8: #{rconv_forward.5} parent=0 // loop_exit
    _

// kernel: rconv_forward.7
$region0: #{rconv_forward.7}
  #allocation0 [shape = 'u32[]', space=smem, size = 0x4, offset = 0x4, fixed_abs, tag = 'smem constant byte address 0x4 - core index']
  #allocation1 [shape = 'u32[144,128]{1,0:T(1,128)}', space=vmem, size = 0x12000, scoped, tag = 'internal scratch']
  #allocation2 [shape = 'f32[14,14,128]{2,1,0:T(8,128)}', space=vmem, size = 0x1c000, scoped, tag = 'scratch operand']
  %s0 = inlined_call_operand.vmem [shape: f32[2,14,14,128], index: 0, kind: input, shape index: {}]
  %s1 = inlined_call_operand.vmem [shape: f32[1,128], index: 1, kind: input, shape index: {}]
  %s2 = inlined_call_operand.vmem [shape: f32[1,128], index: 2, kind: input, shape index: {}]
  %s3 = inlined_call_operand.vmem [shape: f32[9,128,128], index: 3, kind: input, shape index: {}]
  %s4 = inlined_call_operand.vmem [shape: f32[1,128], index: 4, kind: input, shape index: {}]
  %s5 = inlined_call_operand.vmem [shape: f32[2,12,12,128], index: 5, kind: output, shape index: {}]
  %s6 = sld [smem:[#allocation0]]
  $region60: #{rconv_forward.7} parent=0
    _
  %s8 = ssub.s32 1, %s6
  %s9 = scalar_select 0, %s8, %s6
  loop: start=0, step=1, limit=4
  $region2: #{rconv_forward.7} parent=0 // loop_pre_header
    _
  $region3: #{rconv_forward.7} parent=0 // loop_header
    %s11 = sphi 0, %s15
    %p12 = scmp.ge.s32.totalorder %s11, 4
    %s21 = sphi 0, %s23
    %s24 = sphi 0, %s21
    %s25 = sphi 0, %s24
    %s41 = sphi 0, %s25
    %s45 = sphi 0, %s45
    %s47 = sphi 0, %s45
    %s48 = sphi 0, %s47
    %s62 = sphi 0, %s48
    %s66 = sphi 0, %s66
    %s68 = sphi 0, %s66
    %s69 = sphi 0, %s68
    %s83 = sphi 0, %s69
    %s87 = sphi 0, %s87
    %s89 = sphi 0, %s87
    %s90 = sphi 0, %s89
    %s104 = sphi 0, %s90
    %s108 = sphi 0, %s108
    %s110 = sphi 0, %s108
    %s111 = sphi 0, %s110
    %s125 = sphi 0, %s111
    %s131 = sphi 0, %s133
    %s134 = sphi 0, %s131
    %s135 = sphi 0, %s134
    %s151 = sphi 0, %s135
  $region4: #{rconv_forward.7} parent=0 // loop_header_branch
    %14 = sbr.rel (%p12) target = $region8
  $region5: #{rconv_forward.7} parent=0 // loop_body
    %s16 = ssub.s32 %s11, 1
    %s17 = ssub.s32 %s11, 2
    %s18 = sadd.s32 %s11, 1
    %s19 = ssub.s32 %s11, %s18
    %p20 = scmp.eq.s32.totalorder %s19, 0
    %s22 = sadd.s32 %s21, 1
    %s23 = scalar_select %p20, %s21, %s22
    %p26 = pneg %p20
    %p27 = scmp.eq.s32.totalorder %s11, 1
    %p28 = por %p26, %p27
    %p29 = scmp.ne.s32.totalorder %s21, %s24
    %p30 = scmp.eq.s32.totalorder %s11, 0
    %p31 = por %p29, %p30
    %p32 = scmp.ne.s32.totalorder %s21, %s24
    %p33 = scmp.eq.s32.totalorder %s16, 1
    %p34 = por %p32, %p33
    %p35 = scmp.ne.s32.totalorder %s24, %s25
    %p36 = scmp.eq.s32.totalorder %s16, 0
    %p37 = por %p35, %p36
    %p38 = scmp.ne.s32.totalorder %s24, %s25
    %p39 = scmp.eq.s32.totalorder %s17, 1
    %p40 = por %p38, %p39
    %p42 = scmp.ne.s32.totalorder %s25, %s41
    %p43 = scmp.eq.s32.totalorder %s17, 0
    %p44 = por %p42, %p43
    %s46 = sadd.s32 %s45, 1
    %p49 = scmp.eq.s32.totalorder %s11, 1
    %p50 = scmp.ne.s32.totalorder %s45, %s47
    %p51 = scmp.eq.s32.totalorder %s11, 0
    %p52 = por %p50, %p51
    %p53 = scmp.ne.s32.totalorder %s45, %s47
    %p54 = scmp.eq.s32.totalorder %s16, 1
    %p55 = por %p53, %p54
    %p56 = scmp.ne.s32.totalorder %s47, %s48
    %p57 = scmp.eq.s32.totalorder %s16, 0
    %p58 = por %p56, %p57
    %p59 = scmp.ne.s32.totalorder %s47, %s48
    %p60 = scmp.eq.s32.totalorder %s17, 1
    %p61 = por %p59, %p60
    %p63 = scmp.ne.s32.totalorder %s48, %s62
    %p64 = scmp.eq.s32.totalorder %s17, 0
    %p65 = por %p63, %p64
    %s67 = sadd.s32 %s66, 1
    %p70 = scmp.eq.s32.totalorder %s11, 1
    %p71 = scmp.ne.s32.totalorder %s66, %s68
    %p72 = scmp.eq.s32.totalorder %s11, 0
    %p73 = por %p71, %p72
    %p74 = scmp.ne.s32.totalorder %s66, %s68
    %p75 = scmp.eq.s32.totalorder %s16, 1
    %p76 = por %p74, %p75
    %p77 = scmp.ne.s32.totalorder %s68, %s69
    %p78 = scmp.eq.s32.totalorder %s16, 0
    %p79 = por %p77, %p78
    %p80 = scmp.ne.s32.totalorder %s68, %s69
    %p81 = scmp.eq.s32.totalorder %s17, 1
    %p82 = por %p80, %p81
    %p84 = scmp.ne.s32.totalorder %s69, %s83
    %p85 = scmp.eq.s32.totalorder %s17, 0
    %p86 = por %p84, %p85
    %s88 = sadd.s32 %s87, 1
    %p91 = scmp.eq.s32.totalorder %s11, 1
    %p92 = scmp.ne.s32.totalorder %s87, %s89
    %p93 = scmp.eq.s32.totalorder %s11, 0
    %p94 = por %p92, %p93
    %p95 = scmp.ne.s32.totalorder %s87, %s89
    %p96 = scmp.eq.s32.totalorder %s16, 1
    %p97 = por %p95, %p96
    %p98 = scmp.ne.s32.totalorder %s89, %s90
    %p99 = scmp.eq.s32.totalorder %s16, 0
    %p100 = por %p98, %p99
    %p101 = scmp.ne.s32.totalorder %s89, %s90
    %p102 = scmp.eq.s32.totalorder %s17, 1
    %p103 = por %p101, %p102
    %p105 = scmp.ne.s32.totalorder %s90, %s104
    %p106 = scmp.eq.s32.totalorder %s17, 0
    %p107 = por %p105, %p106
    %s109 = sadd.s32 %s108, 1
    %p112 = scmp.eq.s32.totalorder %s11, 1
    %p113 = scmp.ne.s32.totalorder %s108, %s110
    %p114 = scmp.eq.s32.totalorder %s11, 0
    %p115 = por %p113, %p114
    %p116 = scmp.ne.s32.totalorder %s108, %s110
    %p117 = scmp.eq.s32.totalorder %s16, 1
    %p118 = por %p116, %p117
    %p119 = scmp.ne.s32.totalorder %s110, %s111
    %p120 = scmp.eq.s32.totalorder %s16, 0
    %p121 = por %p119, %p120
    %p122 = scmp.ne.s32.totalorder %s110, %s111
    %p123 = scmp.eq.s32.totalorder %s17, 1
    %p124 = por %p122, %p123
    %p126 = scmp.ne.s32.totalorder %s111, %s125
    %p127 = scmp.eq.s32.totalorder %s17, 0
    %p128 = por %p126, %p127
    %s129 = ssub.s32 %s11, %s18
    %p130 = scmp.eq.s32.totalorder %s129, 0
    %s132 = sadd.s32 %s131, 1
    %s133 = scalar_select %p130, %s131, %s132
    %p136 = pneg %p130
    %p137 = scmp.eq.s32.totalorder %s11, 1
    %p138 = por %p136, %p137
    %p139 = scmp.ne.s32.totalorder %s131, %s134
    %p140 = scmp.eq.s32.totalorder %s11, 0
    %p141 = por %p139, %p140
    %p142 = scmp.ne.s32.totalorder %s131, %s134
    %p143 = scmp.eq.s32.totalorder %s16, 1
    %p144 = por %p142, %p143
    %p145 = scmp.ne.s32.totalorder %s134, %s135
    %p146 = scmp.eq.s32.totalorder %s16, 0
    %p147 = por %p145, %p146
    %p148 = scmp.ne.s32.totalorder %s134, %s135
    %p149 = scmp.eq.s32.totalorder %s17, 1
    %p150 = por %p148, %p149
    %p152 = scmp.ne.s32.totalorder %s135, %s151
    %p153 = scmp.eq.s32.totalorder %s17, 0
    %p154 = por %p152, %p153
    %p155 = scmp.le.s32.totalorder 1, %s11
    %p156 = scmp.lt.s32.totalorder %s11, 3
    %p157 = pnand %p155, %p156
    %p158 = pneg %p157
    // Predicated region
    $region9: #{rconv_forward.7} parent=5 // pred_check
      _
    $region10: #{rconv_forward.7} parent=5 // pred_check_branch
      %160 = sbr.rel (%p157) target = $region12
    $region11: #{rconv_forward.7} parent=5 // pred_region
      %s161 = ssub.s32 %s11, 1
      // Predicated region
      $region13: #{rconv_forward.7} parent=11 // pred_check
        %p162 = pneg %p58
      $region14: #{rconv_forward.7} parent=11 // pred_check_branch
        %164 = sbr.rel (%p162) target = $region16
      $region15: #{rconv_forward.7} parent=11 // pred_region
        _
      $region16: #{rconv_forward.7} parent=11 // pred_fallthru
        _
      // Predicated region
      $region17: #{rconv_forward.7} parent=11 // pred_check
        %p165 = pneg %p79
      $region18: #{rconv_forward.7} parent=11 // pred_check_branch
        %167 = sbr.rel (%p165) target = $region20
      $region19: #{rconv_forward.7} parent=11 // pred_region
        _
      $region20: #{rconv_forward.7} parent=11 // pred_fallthru
        _
      // Predicated region
      $region21: #{rconv_forward.7} parent=11 // pred_check
        %p168 = pneg %p100
      $region22: #{rconv_forward.7} parent=11 // pred_check_branch
        %170 = sbr.rel (%p168) target = $region24
      $region23: #{rconv_forward.7} parent=11 // pred_region
        _
      $region24: #{rconv_forward.7} parent=11 // pred_fallthru
        _
      // Predicated region
      $region25: #{rconv_forward.7} parent=11 // pred_check
        %p171 = pneg %p121
      $region26: #{rconv_forward.7} parent=11 // pred_check_branch
        %173 = sbr.rel (%p171) target = $region28
      $region27: #{rconv_forward.7} parent=11 // pred_region
        _
      $region28: #{rconv_forward.7} parent=11 // pred_fallthru
        _
    $region12: #{rconv_forward.7} parent=5 // pred_fallthru
      _
    %p174 = scmp.lt.s32.totalorder %s11, 2
    // Predicated region
    $region29: #{rconv_forward.7} parent=5 // pred_check
      %p175 = pneg %p174
    $region30: #{rconv_forward.7} parent=5 // pred_check_branch
      %177 = sbr.rel (%p175) target = $region32
    $region31: #{rconv_forward.7} parent=5 // pred_region
      // Predicated region
      $region33: #{rconv_forward.7} parent=31 // pred_check
        %p178 = pneg %p31
      $region34: #{rconv_forward.7} parent=31 // pred_check_branch
        %180 = sbr.rel (%p178) target = $region36
      $region35: #{rconv_forward.7} parent=31 // pred_region
        %p181 = scmp.lt.s32.totalorder %s11, 1
        %s182 = scalar_select %p181, %s11, 1
        %s183 = smul.addr %s182, 28
        %s184 = smul.addr %s183, 8
        %s185 = scalar_lea.vmem %s0, %s184
      $region36: #{rconv_forward.7} parent=31 // pred_fallthru
        _
    $region32: #{rconv_forward.7} parent=5 // pred_fallthru
      _
    %p186 = scmp.le.s32.totalorder 1, %s11
    %p187 = scmp.lt.s32.totalorder %s11, 3
    %p188 = pnand %p186, %p187
    %p189 = pneg %p188
    // Predicated region
    $region37: #{rconv_forward.7} parent=5 // pred_check
      _
    $region38: #{rconv_forward.7} parent=5 // pred_check_branch
      %191 = sbr.rel (%p188) target = $region40
    $region39: #{rconv_forward.7} parent=5 // pred_region
      %s192 = ssub.s32 %s11, 1
      %p193 = scmp.lt.s32.totalorder %s16, 1
      %s194 = scalar_select %p193, %s16, 1
      %s195 = smul.addr %s194, 28
      %s196 = smul.addr %s195, 8
      %s197 = scalar_lea.vmem %s0, %s196
      %p198 = pneg %p37
      %p199 = pneg %p34
      %p200 = pneg %p58
      %p201 = pneg %p55
      %p202 = pneg %p79
      %p203 = pneg %p76
      %p204 = pneg %p100
      %p205 = pneg %p97
      %p206 = pneg %p121
      %p207 = pneg %p118
      %p208 = pneg %p147
      %p209 = pneg %p144
      %p210 = scmp.lt.s32.totalorder %s16, 1
      %s211 = scalar_select %p210, %s16, 1
      %s212 = smul.addr %s211, 24
      %s213 = smul.addr %s212, 8
      %s214 = scalar_lea.vmem %s5, %s213
      %p215 = scmp.lt.s32.totalorder %s16, 1
      %s216 = scalar_select %p215, %s16, 1
      %s217 = smul.addr %s216, 28
      %s218 = smul.addr %s217, 8
      %s219 = scalar_lea.vmem %s0, %s218
      %p220 = scmp.lt.s32.totalorder %s16, 1
      %s221 = scalar_select %p220, %s16, 1
      %s222 = smul.addr %s221, 24
      %s223 = smul.addr %s222, 8
      %s224 = scalar_lea.vmem %s5, %s223
      %v225 = vld [vmem:[%s219] sm:$0xff]
      %v226 = vld [vmem:[%s219 + $0x8] sm:$0x3f]
      %v227 = vld [vmem:[%s219 + $0x10] sm:$0xff]
      %v228 = vld [vmem:[%s219 + $0x18] sm:$0x3f]
      %v229 = vld [vmem:[%s219 + $0x20] sm:$0xff]
      %v230 = vld [vmem:[%s219 + $0x28] sm:$0x3f]
      %v231 = vld [vmem:[%s219 + $0x30] sm:$0xff]
      %v232 = vld [vmem:[%s219 + $0x38] sm:$0x3f]
      %v233 = vld [vmem:[%s219 + $0x40] sm:$0xff]
      %v234 = vld [vmem:[%s219 + $0x48] sm:$0x3f]
      %v235 = vld [vmem:[%s219 + $0x50] sm:$0xff]
      %v236 = vld [vmem:[%s219 + $0x58] sm:$0x3f]
      %v237 = vld [vmem:[%s219 + $0x60] sm:$0xff]
      %v238 = vld [vmem:[%s219 + $0x68] sm:$0x3f]
      %v239 = vld [vmem:[%s219 + $0x70] sm:$0xff]
      %v240 = vld [vmem:[%s219 + $0x78] sm:$0x3f]
      %v241 = vld [vmem:[%s219 + $0x80] sm:$0xff]
      %v242 = vld [vmem:[%s219 + $0x88] sm:$0x3f]
      %v243 = vld [vmem:[%s219 + $0x90] sm:$0xff]
      %v244 = vld [vmem:[%s219 + $0x98] sm:$0x3f]
      %v245 = vld [vmem:[%s219 + $0xa0] sm:$0xff]
      %v246 = vld [vmem:[%s219 + $0xa8] sm:$0x3f]
      %v247 = vld [vmem:[%s219 + $0xb0] sm:$0xff]
      %v248 = vld [vmem:[%s219 + $0xb8] sm:$0x3f]
      %v249 = vld [vmem:[%s219 + $0xc0] sm:$0xff]
      %v250 = vld [vmem:[%s219 + $0xc8] sm:$0x3f]
      %v251 = vld [vmem:[%s219 + $0xd0] sm:$0xff]
      %v252 = vld [vmem:[%s219 + $0xd8] sm:$0x3f]
      %v253 = vld [vmem:[%s1] sm:$0x1]
      %v255 = vlaneseq
      %v256 = vshrl.u32 %v255, 7
      %v257 = vsub.s32 0, %v256
      %v258 = vrot.slane %v253, %v257
      %v260 = vmul.f32 %v225, %v258
      %v261 = vmul.f32 %v226, %v258
      %v262 = vmul.f32 %v227, %v258
      %v263 = vmul.f32 %v228, %v258
      %v264 = vmul.f32 %v229, %v258
      %v265 = vmul.f32 %v230, %v258
      %v266 = vmul.f32 %v231, %v258
      %v267 = vmul.f32 %v232, %v258
      %v268 = vmul.f32 %v233, %v258
      %v269 = vmul.f32 %v234, %v258
      %v270 = vmul.f32 %v235, %v258
      %v271 = vmul.f32 %v236, %v258
      %v272 = vmul.f32 %v237, %v258
      %v273 = vmul.f32 %v238, %v258
      %v274 = vmul.f32 %v239, %v258
      %v275 = vmul.f32 %v240, %v258
      %v276 = vmul.f32 %v241, %v258
      %v277 = vmul.f32 %v242, %v258
      %v278 = vmul.f32 %v243, %v258
      %v279 = vmul.f32 %v244, %v258
      %v280 = vmul.f32 %v245, %v258
      %v281 = vmul.f32 %v246, %v258
      %v282 = vmul.f32 %v247, %v258
      %v283 = vmul.f32 %v248, %v258
      %v284 = vmul.f32 %v249, %v258
      %v285 = vmul.f32 %v250, %v258
      %v286 = vmul.f32 %v251, %v258
      %v287 = vmul.f32 %v252, %v258
      %v288 = vld [vmem:[%s2] sm:$0x1]
      %v290 = vlaneseq
      %v291 = vshrl.u32 %v290, 7
      %v292 = vsub.s32 0, %v291
      %v293 = vrot.slane %v288, %v292
      %v295 = vadd.f32 %v260, %v293
      %v296 = vadd.f32 %v261, %v293
      %v297 = vadd.f32 %v262, %v293
      %v298 = vadd.f32 %v263, %v293
      %v299 = vadd.f32 %v264, %v293
      %v300 = vadd.f32 %v265, %v293
      %v301 = vadd.f32 %v266, %v293
      %v302 = vadd.f32 %v267, %v293
      %v303 = vadd.f32 %v268, %v293
      %v304 = vadd.f32 %v269, %v293
      %v305 = vadd.f32 %v270, %v293
      %v306 = vadd.f32 %v271, %v293
      %v307 = vadd.f32 %v272, %v293
      %v308 = vadd.f32 %v273, %v293
      %v309 = vadd.f32 %v274, %v293
      %v310 = vadd.f32 %v275, %v293
      %v311 = vadd.f32 %v276, %v293
      %v312 = vadd.f32 %v277, %v293
      %v313 = vadd.f32 %v278, %v293
      %v314 = vadd.f32 %v279, %v293
      %v315 = vadd.f32 %v280, %v293
      %v316 = vadd.f32 %v281, %v293
      %v317 = vadd.f32 %v282, %v293
      %v318 = vadd.f32 %v283, %v293
      %v319 = vadd.f32 %v284, %v293
      %v320 = vadd.f32 %v285, %v293
      %v321 = vadd.f32 %v286, %v293
      %v322 = vadd.f32 %v287, %v293
      %v323 = vmax.f32 %v295, 0.0
      %v324 = vmax.f32 %v296, 0.0
      %v325 = vmax.f32 %v297, 0.0
      %v326 = vmax.f32 %v298, 0.0
      %v327 = vmax.f32 %v299, 0.0
      %v328 = vmax.f32 %v300, 0.0
      %v329 = vmax.f32 %v301, 0.0
      %v330 = vmax.f32 %v302, 0.0
      %v331 = vmax.f32 %v303, 0.0
      %v332 = vmax.f32 %v304, 0.0
      %v333 = vmax.f32 %v305, 0.0
      %v334 = vmax.f32 %v306, 0.0
      %v335 = vmax.f32 %v307, 0.0
      %v336 = vmax.f32 %v308, 0.0
      %v337 = vmax.f32 %v309, 0.0
      %v338 = vmax.f32 %v310, 0.0
      %v339 = vmax.f32 %v311, 0.0
      %v340 = vmax.f32 %v312, 0.0
      %v341 = vmax.f32 %v313, 0.0
      %v342 = vmax.f32 %v314, 0.0
      %v343 = vmax.f32 %v315, 0.0
      %v344 = vmax.f32 %v316, 0.0
      %v345 = vmax.f32 %v317, 0.0
      %v346 = vmax.f32 %v318, 0.0
      %v347 = vmax.f32 %v319, 0.0
      %v348 = vmax.f32 %v320, 0.0
      %v349 = vmax.f32 %v321, 0.0
      %v350 = vmax.f32 %v322, 0.0
      %351 = vst [vmem:[#allocation2] sm:$0xff] %v323
      %352 = vst [vmem:[#allocation2 + $0x8] sm:$0x3f] %v324
      %353 = vst [vmem:[#allocation2 + $0x10] sm:$0xff] %v325
      %354 = vst [vmem:[#allocation2 + $0x18] sm:$0x3f] %v326
      %355 = vst [vmem:[#allocation2 + $0x20] sm:$0xff] %v327
      %356 = vst [vmem:[#allocation2 + $0x28] sm:$0x3f] %v328
      %357 = vst [vmem:[#allocation2 + $0x30] sm:$0xff] %v329
      %358 = vst [vmem:[#allocation2 + $0x38] sm:$0x3f] %v330
      %359 = vst [vmem:[#allocation2 + $0x40] sm:$0xff] %v331
      %360 = vst [vmem:[#allocation2 + $0x48] sm:$0x3f] %v332
      %361 = vst [vmem:[#allocation2 + $0x50] sm:$0xff] %v333
      %362 = vst [vmem:[#allocation2 + $0x58] sm:$0x3f] %v334
      %363 = vst [vmem:[#allocation2 + $0x60] sm:$0xff] %v335
      %364 = vst [vmem:[#allocation2 + $0x68] sm:$0x3f] %v336
      %365 = vst [vmem:[#allocation2 + $0x70] sm:$0xff] %v337
      %366 = vst [vmem:[#allocation2 + $0x78] sm:$0x3f] %v338
      %367 = vst [vmem:[#allocation2 + $0x80] sm:$0xff] %v339
      %368 = vst [vmem:[#allocation2 + $0x88] sm:$0x3f] %v340
      %369 = vst [vmem:[#allocation2 + $0x90] sm:$0xff] %v341
      %370 = vst [vmem:[#allocation2 + $0x98] sm:$0x3f] %v342
      %371 = vst [vmem:[#allocation2 + $0xa0] sm:$0xff] %v343
      %372 = vst [vmem:[#allocation2 + $0xa8] sm:$0x3f] %v344
      %373 = vst [vmem:[#allocation2 + $0xb0] sm:$0xff] %v345
      %374 = vst [vmem:[#allocation2 + $0xb8] sm:$0x3f] %v346
      %375 = vst [vmem:[#allocation2 + $0xc0] sm:$0xff] %v347
      %376 = vst [vmem:[#allocation2 + $0xc8] sm:$0x3f] %v348
      %377 = vst [vmem:[#allocation2 + $0xd0] sm:$0xff] %v349
      %378 = vst [vmem:[#allocation2 + $0xd8] sm:$0x3f] %v350
      %v379 = vld [vmem:[%s4] sm:$0x1]
      loop: start=0, step=1, limit=12
      $region41: #{rconv_forward.7} parent=39 // loop_pre_header
        _
      $region42: #{rconv_forward.7} parent=39 // loop_header
        %s381 = sphi 0, %s385
        %p382 = scmp.ge.s32.totalorder %s381, 12
      $region43: #{rconv_forward.7} parent=39 // loop_header_branch
        %384 = sbr.rel (%p382) target = $region47
      $region44: #{rconv_forward.7} parent=39 // loop_body
        %s386 = smul.u32 %s381, 16
        %s387 = scalar_lea.vmem [#allocation2], %s386
        %v388 = vld [vmem:[%s387] sm:$0xff]
        %v389 = vld [vmem:[%s387 + $0x8] sm:$0xf]
        %v390 = vld [vmem:[%s3] sm:$0xff]
        %v391 = vld [vmem:[%s3 + $0x8] sm:$0xff]
        %v392 = vld [vmem:[%s3 + $0x10] sm:$0xff]
        %v393 = vld [vmem:[%s3 + $0x18] sm:$0xff]
        %v394 = vld [vmem:[%s3 + $0x20] sm:$0xff]
        %v395 = vld [vmem:[%s3 + $0x28] sm:$0xff]
        %v396 = vld [vmem:[%s3 + $0x30] sm:$0xff]
        %v397 = vld [vmem:[%s3 + $0x38] sm:$0xff]
        %v398 = vld [vmem:[%s3 + $0x40] sm:$0xff]
        %v399 = vld [vmem:[%s3 + $0x48] sm:$0xff]
        %v400 = vld [vmem:[%s3 + $0x50] sm:$0xff]
        %v401 = vld [vmem:[%s3 + $0x58] sm:$0xff]
        %v402 = vld [vmem:[%s3 + $0x60] sm:$0xff]
        %v403 = vld [vmem:[%s3 + $0x68] sm:$0xff]
        %v404 = vld [vmem:[%s3 + $0x70] sm:$0xff]
        %v405 = vld [vmem:[%s3 + $0x78] sm:$0xff]
        %v406 = vld [vmem:[%s387 + $0x1] sm:$0xff]
        %v407 = vld [vmem:[%s387 + $0x9] sm:$0xf]
        %s408 = scalar_lea.vmem %s3, 128
        %v409 = vld [vmem:[%s408] sm:$0xff]
        %v410 = vld [vmem:[%s408 + $0x8] sm:$0xff]
        %v411 = vld [vmem:[%s408 + $0x10] sm:$0xff]
        %v412 = vld [vmem:[%s408 + $0x18] sm:$0xff]
        %v413 = vld [vmem:[%s408 + $0x20] sm:$0xff]
        %v414 = vld [vmem:[%s408 + $0x28] sm:$0xff]
        %v415 = vld [vmem:[%s408 + $0x30] sm:$0xff]
        %v416 = vld [vmem:[%s408 + $0x38] sm:$0xff]
        %v417 = vld [vmem:[%s408 + $0x40] sm:$0xff]
        %v418 = vld [vmem:[%s408 + $0x48] sm:$0xff]
        %v419 = vld [vmem:[%s408 + $0x50] sm:$0xff]
        %v420 = vld [vmem:[%s408 + $0x58] sm:$0xff]
        %v421 = vld [vmem:[%s408 + $0x60] sm:$0xff]
        %v422 = vld [vmem:[%s408 + $0x68] sm:$0xff]
        %v423 = vld [vmem:[%s408 + $0x70] sm:$0xff]
        %v424 = vld [vmem:[%s408 + $0x78] sm:$0xff]
        %425 = vmatprep.subr.mxu0 0.0
        %426 = vmatpush1.msra.mxu0 %v409
        %427 = vmatprep.subr.mxu0 0.0
        %428 = vmatpush1.msra.mxu0 %v410
        %429 = vmatprep.subr.mxu0 0.0
        %430 = vmatpush1.msra.mxu0 %v411
        %431 = vmatprep.subr.mxu0 0.0
        %432 = vmatpush1.msra.mxu0 %v412
        %433 = vmatprep.subr.mxu0 0.0
        %434 = vmatpush1.msra.mxu0 %v413
        %435 = vmatprep.subr.mxu0 0.0
        %436 = vmatpush1.msra.mxu0 %v414
        %437 = vmatprep.subr.mxu0 0.0
        %438 = vmatpush1.msra.mxu0 %v415
        %439 = vmatprep.subr.mxu0 0.0
        %440 = vmatpush1.msra.mxu0 %v416
        %441 = vmatprep.subr.mxu0 0.0
        %442 = vmatpush1.msra.mxu0 %v417
        %443 = vmatprep.subr.mxu0 0.0
        %444 = vmatpush1.msra.mxu0 %v418
        %445 = vmatprep.subr.mxu0 0.0
        %446 = vmatpush1.msra.mxu0 %v419
        %447 = vmatprep.subr.mxu0 0.0
        %448 = vmatpush1.msra.mxu0 %v420
        %449 = vmatprep.subr.mxu0 0.0
        %450 = vmatpush1.msra.mxu0 %v421
        %451 = vmatprep.subr.mxu0 0.0
        %452 = vmatpush1.msra.mxu0 %v422
        %453 = vmatprep.subr.mxu0 0.0
        %454 = vmatpush1.msra.mxu0 %v423
        %455 = vmatprep.subr.mxu0 0.0
        %456 = vmatpush1.msra.mxu0 %v424
        %457 = vmatprep.subr.mxu0 0.0
        %458 = vmatpush1.msra.mxu0 0.0
        %459 = vmatprep.subr.mxu0 0.0
        %460 = vmatpush1.msra.mxu0 0.0
        %461 = vmatprep.subr.mxu0 0.0
        %462 = vmatpush1.msra.mxu0 0.0
        %463 = vmatprep.subr.mxu0 0.0
        %464 = vmatpush1.msra.mxu0 0.0
        %465 = vmatprep.subr.mxu0 0.0
        %466 = vmatpush1.msra.mxu0 0.0
        %467 = vmatprep.subr.mxu0 0.0
        %468 = vmatpush1.msra.mxu0 0.0
        %469 = vmatprep.subr.mxu0 0.0
        %470 = vmatpush1.msra.mxu0 0.0
        %471 = vmatprep.subr.mxu0 0.0
        %472 = vmatpush1.msra.mxu0 0.0
        %473 = vmatprep.subr.mxu0 0.0
        %474 = vmatpush1.msra.mxu0 0.0
        %475 = vmatprep.subr.mxu0 0.0
        %476 = vmatpush1.msra.mxu0 0.0
        %477 = vmatprep.subr.mxu0 0.0
        %478 = vmatpush1.msra.mxu0 0.0
        %479 = vmatprep.subr.mxu0 0.0
        %480 = vmatpush1.msra.mxu0 0.0
        %481 = vmatprep.subr.mxu0 0.0
        %482 = vmatpush1.msra.mxu0 0.0
        %483 = vmatprep.subr.mxu0 0.0
        %484 = vmatpush1.msra.mxu0 0.0
        %485 = vmatprep.subr.mxu0 0.0
        %486 = vmatpush1.msra.mxu0 0.0
        %487 = vmatprep.subr.mxu0 0.0
        %488 = vmatpush1.msra.mxu0 0.0
        %489 = vmatprep.mubr.f32.mxu0 0.0
        %490 = vmatmul.mubr.f32.gmra.mrb[0].mxu0 %v406
        %v491 = vpop.f32.mrb[0].mxu0
        %v492 = vadd.f32 0.0, %v491
        %v493 = vpop.f32.mrb[0].mxu0
        %494 = vmatprep.mubr.f32.mxu0 0.0
        %495 = vmatmul.mubr.f32.gmra.mrb[0].mxu0 %v407
        %v496 = vpop.f32.mrb[0].mxu0
        %v497 = vadd.f32 0.0, %v496
        %v498 = vpop.f32.mrb[0].mxu0
        %499 = vdwg.mxu0
        %500 = vmatprep.subr.mxu0 0.0
        %501 = vmatpush1.msra.mxu0 %v390
        %502 = vmatprep.subr.mxu0 0.0
        %503 = vmatpush1.msra.mxu0 %v391
        %504 = vmatprep.subr.mxu0 0.0
        %505 = vmatpush1.msra.mxu0 %v392
        %506 = vmatprep.subr.mxu0 0.0
        %507 = vmatpush1.msra.mxu0 %v393
        %508 = vmatprep.subr.mxu0 0.0
        %509 = vmatpush1.msra.mxu0 %v394
        %510 = vmatprep.subr.mxu0 0.0
        %511 = vmatpush1.msra.mxu0 %v395
        %512 = vmatprep.subr.mxu0 0.0
        %513 = vmatpush1.msra.mxu0 %v396
        %514 = vmatprep.subr.mxu0 0.0
        %515 = vmatpush1.msra.mxu0 %v397
        %516 = vmatprep.subr.mxu0 0.0
        %517 = vmatpush1.msra.mxu0 %v398
        %518 = vmatprep.subr.mxu0 0.0
        %519 = vmatpush1.msra.mxu0 %v399
        %520 = vmatprep.subr.mxu0 0.0
        %521 = vmatpush1.msra.mxu0 %v400
        %522 = vmatprep.subr.mxu0 0.0
        %523 = vmatpush1.msra.mxu0 %v401
        %524 = vmatprep.subr.mxu0 0.0
        %525 = vmatpush1.msra.mxu0 %v402
        %526 = vmatprep.subr.mxu0 0.0
        %527 = vmatpush1.msra.mxu0 %v403
        %528 = vmatprep.subr.mxu0 0.0
        %529 = vmatpush1.msra.mxu0 %v404
        %530 = vmatprep.subr.mxu0 0.0
        %531 = vmatpush1.msra.mxu0 %v405
        %532 = vmatprep.subr.mxu0 0.0
        %533 = vmatpush1.msra.mxu0 0.0
        %534 = vmatprep.subr.mxu0 0.0
        %535 = vmatpush1.msra.mxu0 0.0
        %536 = vmatprep.subr.mxu0 0.0
        %537 = vmatpush1.msra.mxu0 0.0
        %538 = vmatprep.subr.mxu0 0.0
        %539 = vmatpush1.msra.mxu0 0.0
        %540 = vmatprep.subr.mxu0 0.0
        %541 = vmatpush1.msra.mxu0 0.0
        %542 = vmatprep.subr.mxu0 0.0
        %543 = vmatpush1.msra.mxu0 0.0
        %544 = vmatprep.subr.mxu0 0.0
        %545 = vmatpush1.msra.mxu0 0.0
        %546 = vmatprep.subr.mxu0 0.0
        %547 = vmatpush1.msra.mxu0 0.0
        %548 = vmatprep.subr.mxu0 0.0
        %549 = vmatpush1.msra.mxu0 0.0
        %550 = vmatprep.subr.mxu0 0.0
        %551 = vmatpush1.msra.mxu0 0.0
        %552 = vmatprep.subr.mxu0 0.0
        %553 = vmatpush1.msra.mxu0 0.0
        %554 = vmatprep.subr.mxu0 0.0
        %555 = vmatpush1.msra.mxu0 0.0
        %556 = vmatprep.subr.mxu0 0.0
        %557 = vmatpush1.msra.mxu0 0.0
        %558 = vmatprep.subr.mxu0 0.0
        %559 = vmatpush1.msra.mxu0 0.0
        %560 = vmatprep.subr.mxu0 0.0
        %561 = vmatpush1.msra.mxu0 0.0
        %562 = vmatprep.subr.mxu0 0.0
        %563 = vmatpush1.msra.mxu0 0.0
        %564 = vmatprep.mubr.f32.mxu0 0.0
        %565 = vmatmul.mubr.f32.gmra.mrb[0].mxu0 %v388
        %v566 = vpop.f32.mrb[0].mxu0
        %v567 = vadd.f32 %v492, %v566
        %v568 = vpop.f32.mrb[0].mxu0
        %569 = vmatprep.mubr.f32.mxu0 0.0
        %570 = vmatmul.mubr.f32.gmra.mrb[0].mxu0 %v389
        %v571 = vpop.f32.mrb[0].mxu0
        %v572 = vadd.f32 %v497, %v571
        %v573 = vpop.f32.mrb[0].mxu0
        %574 = vdwg.mxu0
        %v575 = vld [vmem:[%s387 + $0x2] sm:$0xff]
        %v576 = vld [vmem:[%s387 + $0xa] sm:$0xf]
        %s577 = scalar_lea.vmem %s3, 256
        %v578 = vld [vmem:[%s577] sm:$0xff]
        %v579 = vld [vmem:[%s577 + $0x8] sm:$0xff]
        %v580 = vld [vmem:[%s577 + $0x10] sm:$0xff]
        %v581 = vld [vmem:[%s577 + $0x18] sm:$0xff]
        %v582 = vld [vmem:[%s577 + $0x20] sm:$0xff]
        %v583 = vld [vmem:[%s577 + $0x28] sm:$0xff]
        %v584 = vld [vmem:[%s577 + $0x30] sm:$0xff]
        %v585 = vld [vmem:[%s577 + $0x38] sm:$0xff]
        %v586 = vld [vmem:[%s577 + $0x40] sm:$0xff]
        %v587 = vld [vmem:[%s577 + $0x48] sm:$0xff]
        %v588 = vld [vmem:[%s577 + $0x50] sm:$0xff]
        %v589 = vld [vmem:[%s577 + $0x58] sm:$0xff]
        %v590 = vld [vmem:[%s577 + $0x60] sm:$0xff]
        %v591 = vld [vmem:[%s577 + $0x68] sm:$0xff]
        %v592 = vld [vmem:[%s577 + $0x70] sm:$0xff]
        %v593 = vld [vmem:[%s577 + $0x78] sm:$0xff]
        %594 = vmatprep.subr.mxu0 0.0
        %595 = vmatpush1.msra.mxu0 %v578
        %596 = vmatprep.subr.mxu0 0.0
        %597 = vmatpush1.msra.mxu0 %v579
        %598 = vmatprep.subr.mxu0 0.0
        %599 = vmatpush1.msra.mxu0 %v580
        %600 = vmatprep.subr.mxu0 0.0
        %601 = vmatpush1.msra.mxu0 %v581
        %602 = vmatprep.subr.mxu0 0.0
        %603 = vmatpush1.msra.mxu0 %v582
        %604 = vmatprep.subr.mxu0 0.0
        %605 = vmatpush1.msra.mxu0 %v583
        %606 = vmatprep.subr.mxu0 0.0
        %607 = vmatpush1.msra.mxu0 %v584
        %608 = vmatprep.subr.mxu0 0.0
        %609 = vmatpush1.msra.mxu0 %v585
        %610 = vmatprep.subr.mxu0 0.0
        %611 = vmatpush1.msra.mxu0 %v586
        %612 = vmatprep.subr.mxu0 0.0
        %613 = vmatpush1.msra.mxu0 %v587
        %614 = vmatprep.subr.mxu0 0.0
        %615 = vmatpush1.msra.mxu0 %v588
        %616 = vmatprep.subr.mxu0 0.0
        %617 = vmatpush1.msra.mxu0 %v589
        %618 = vmatprep.subr.mxu0 0.0
        %619 = vmatpush1.msra.mxu0 %v590
        %620 = vmatprep.subr.mxu0 0.0
        %621 = vmatpush1.msra.mxu0 %v591
        %622 = vmatprep.subr.mxu0 0.0
        %623 = vmatpush1.msra.mxu0 %v592
        %624 = vmatprep.subr.mxu0 0.0
        %625 = vmatpush1.msra.mxu0 %v593
        %626 = vmatprep.subr.mxu0 0.0
        %627 = vmatpush1.msra.mxu0 0.0
        %628 = vmatprep.subr.mxu0 0.0
        %629 = vmatpush1.msra.mxu0 0.0
        %630 = vmatprep.subr.mxu0 0.0
        %631 = vmatpush1.msra.mxu0 0.0
        %632 = vmatprep.subr.mxu0 0.0
        %633 = vmatpush1.msra.mxu0 0.0
        %634 = vmatprep.subr.mxu0 0.0
        %635 = vmatpush1.msra.mxu0 0.0
        %636 = vmatprep.subr.mxu0 0.0
        %637 = vmatpush1.msra.mxu0 0.0
        %638 = vmatprep.subr.mxu0 0.0
        %639 = vmatpush1.msra.mxu0 0.0
        %640 = vmatprep.subr.mxu0 0.0
        %641 = vmatpush1.msra.mxu0 0.0
        %642 = vmatprep.subr.mxu0 0.0
        %643 = vmatpush1.msra.mxu0 0.0
        %644 = vmatprep.subr.mxu0 0.0
        %645 = vmatpush1.msra.mxu0 0.0
        %646 = vmatprep.subr.mxu0 0.0
        %647 = vmatpush1.msra.mxu0 0.0
        %648 = vmatprep.subr.mxu0 0.0
        %649 = vmatpush1.msra.mxu0 0.0
        %650 = vmatprep.subr.mxu0 0.0
        %651 = vmatpush1.msra.mxu0 0.0
        %652 = vmatprep.subr.mxu0 0.0
        %653 = vmatpush1.msra.mxu0 0.0
        %654 = vmatprep.subr.mxu0 0.0
        %655 = vmatpush1.msra.mxu0 0.0
        %656 = vmatprep.subr.mxu0 0.0
        %657 = vmatpush1.msra.mxu0 0.0
        %658 = vmatprep.mubr.f32.mxu0 0.0
        %659 = vmatmul.mubr.f32.gmra.mrb[0].mxu0 %v575
        %v660 = vpop.f32.mrb[0].mxu0
        %v661 = vadd.f32 0.0, %v660
        %v662 = vpop.f32.mrb[0].mxu0
        %663 = vmatprep.mubr.f32.mxu0 0.0
        %664 = vmatmul.mubr.f32.gmra.mrb[0].mxu0 %v576
        %v665 = vpop.f32.mrb[0].mxu0
        %v666 = vadd.f32 0.0, %v665
        %v667 = vpop.f32.mrb[0].mxu0
        %668 = vdwg.mxu0
        %v669 = vadd.f32 %v567, %v661
        %v670 = vadd.f32 %v572, %v666
        %s671 = sadd.s32 %s381, 1
        %s672 = smul.u32 %s671, 16
        %s673 = scalar_lea.vmem [#allocation2], %s672
        %v674 = vld [vmem:[%s673] sm:$0xff]
        %v675 = vld [vmem:[%s673 + $0x8] sm:$0xf]
        %s676 = scalar_lea.vmem %s3, 384
        %v677 = vld [vmem:[%s676] sm:$0xff]
        %v678 = vld [vmem:[%s676 + $0x8] sm:$0xff]
        %v679 = vld [vmem:[%s676 + $0x10] sm:$0xff]
        %v680 = vld [vmem:[%s676 + $0x18] sm:$0xff]
        %v681 = vld [vmem:[%s676 + $0x20] sm:$0xff]
        %v682 = vld [vmem:[%s676 + $0x28] sm:$0xff]
        %v683 = vld [vmem:[%s676 + $0x30] sm:$0xff]
        %v684 = vld [vmem:[%s676 + $0x38] sm:$0xff]
        %v685 = vld [vmem:[%s676 + $0x40] sm:$0xff]
        %v686 = vld [vmem:[%s676 + $0x48] sm:$0xff]
        %v687 = vld [vmem:[%s676 + $0x50] sm:$0xff]
        %v688 = vld [vmem:[%s676 + $0x58] sm:$0xff]
        %v689 = vld [vmem:[%s676 + $0x60] sm:$0xff]
        %v690 = vld [vmem:[%s676 + $0x68] sm:$0xff]
        %v691 = vld [vmem:[%s676 + $0x70] sm:$0xff]
        %v692 = vld [vmem:[%s676 + $0x78] sm:$0xff]
        %693 = vmatprep.subr.mxu0 0.0
        %694 = vmatpush1.msra.mxu0 %v677
        %695 = vmatprep.subr.mxu0 0.0
        %696 = vmatpush1.msra.mxu0 %v678
        %697 = vmatprep.subr.mxu0 0.0
        %698 = vmatpush1.msra.mxu0 %v679
        %699 = vmatprep.subr.mxu0 0.0
        %700 = vmatpush1.msra.mxu0 %v680
        %701 = vmatprep.subr.mxu0 0.0
        %702 = vmatpush1.msra.mxu0 %v681
        %703 = vmatprep.subr.mxu0 0.0
        %704 = vmatpush1.msra.mxu0 %v682
        %705 = vmatprep.subr.mxu0 0.0
        %706 = vmatpush1.msra.mxu0 %v683
        %707 = vmatprep.subr.mxu0 0.0
        %708 = vmatpush1.msra.mxu0 %v684
        %709 = vmatprep.subr.mxu0 0.0
        %710 = vmatpush1.msra.mxu0 %v685
        %711 = vmatprep.subr.mxu0 0.0
        %712 = vmatpush1.msra.mxu0 %v686
        %713 = vmatprep.subr.mxu0 0.0
        %714 = vmatpush1.msra.mxu0 %v687
        %715 = vmatprep.subr.mxu0 0.0
        %716 = vmatpush1.msra.mxu0 %v688
        %717 = vmatprep.subr.mxu0 0.0
        %718 = vmatpush1.msra.mxu0 %v689
        %719 = vmatprep.subr.mxu0 0.0
        %720 = vmatpush1.msra.mxu0 %v690
        %721 = vmatprep.subr.mxu0 0.0
        %722 = vmatpush1.msra.mxu0 %v691
        %723 = vmatprep.subr.mxu0 0.0
        %724 = vmatpush1.msra.mxu0 %v692
        %725 = vmatprep.subr.mxu0 0.0
        %726 = vmatpush1.msra.mxu0 0.0
        %727 = vmatprep.subr.mxu0 0.0
        %728 = vmatpush1.msra.mxu0 0.0
        %729 = vmatprep.subr.mxu0 0.0
        %730 = vmatpush1.msra.mxu0 0.0
        %731 = vmatprep.subr.mxu0 0.0
        %732 = vmatpush1.msra.mxu0 0.0
        %733 = vmatprep.subr.mxu0 0.0
        %734 = vmatpush1.msra.mxu0 0.0
        %735 = vmatprep.subr.mxu0 0.0
        %736 = vmatpush1.msra.mxu0 0.0
        %737 = vmatprep.subr.mxu0 0.0
        %738 = vmatpush1.msra.mxu0 0.0
        %739 = vmatprep.subr.mxu0 0.0
        %740 = vmatpush1.msra.mxu0 0.0
        %741 = vmatprep.subr.mxu0 0.0
        %742 = vmatpush1.msra.mxu0 0.0
        %743 = vmatprep.subr.mxu0 0.0
        %744 = vmatpush1.msra.mxu0 0.0
        %745 = vmatprep.subr.mxu0 0.0
        %746 = vmatpush1.msra.mxu0 0.0
        %747 = vmatprep.subr.mxu0 0.0
        %748 = vmatpush1.msra.mxu0 0.0
        %749 = vmatprep.subr.mxu0 0.0
        %750 = vmatpush1.msra.mxu0 0.0
        %751 = vmatprep.subr.mxu0 0.0
        %752 = vmatpush1.msra.mxu0 0.0
        %753 = vmatprep.subr.mxu0 0.0
        %754 = vmatpush1.msra.mxu0 0.0
        %755 = vmatprep.subr.mxu0 0.0
        %756 = vmatpush1.msra.mxu0 0.0
        %757 = vmatprep.mubr.f32.mxu0 0.0
        %758 = vmatmul.mubr.f32.gmra.mrb[0].mxu0 %v674
        %v759 = vpop.f32.mrb[0].mxu0
        %v760 = vadd.f32 0.0, %v759
        %v761 = vpop.f32.mrb[0].mxu0
        %762 = vmatprep.mubr.f32.mxu0 0.0
        %763 = vmatmul.mubr.f32.gmra.mrb[0].mxu0 %v675
        %v764 = vpop.f32.mrb[0].mxu0
        %v765 = vadd.f32 0.0, %v764
        %v766 = vpop.f32.mrb[0].mxu0
        %767 = vdwg.mxu0
        %v768 = vadd.f32 %v669, %v760
        %v769 = vadd.f32 %v670, %v765
        %v770 = vld [vmem:[%s673 + $0x1] sm:$0xff]
        %v771 = vld [vmem:[%s673 + $0x9] sm:$0xf]
        %s772 = scalar_lea.vmem %s3, 512
        %v773 = vld [vmem:[%s772] sm:$0xff]
        %v774 = vld [vmem:[%s772 + $0x8] sm:$0xff]
        %v775 = vld [vmem:[%s772 + $0x10] sm:$0xff]
        %v776 = vld [vmem:[%s772 + $0x18] sm:$0xff]
        %v777 = vld [vmem:[%s772 + $0x20] sm:$0xff]
        %v778 = vld [vmem:[%s772 + $0x28] sm:$0xff]
        %v779 = vld [vmem:[%s772 + $0x30] sm:$0xff]
        %v780 = vld [vmem:[%s772 + $0x38] sm:$0xff]
        %v781 = vld [vmem:[%s772 + $0x40] sm:$0xff]
        %v782 = vld [vmem:[%s772 + $0x48] sm:$0xff]
        %v783 = vld [vmem:[%s772 + $0x50] sm:$0xff]
        %v784 = vld [vmem:[%s772 + $0x58] sm:$0xff]
        %v785 = vld [vmem:[%s772 + $0x60] sm:$0xff]
        %v786 = vld [vmem:[%s772 + $0x68] sm:$0xff]
        %v787 = vld [vmem:[%s772 + $0x70] sm:$0xff]
        %v788 = vld [vmem:[%s772 + $0x78] sm:$0xff]
        %789 = vmatprep.subr.mxu0 0.0
        %790 = vmatpush1.msra.mxu0 %v773
        %791 = vmatprep.subr.mxu0 0.0
        %792 = vmatpush1.msra.mxu0 %v774
        %793 = vmatprep.subr.mxu0 0.0
        %794 = vmatpush1.msra.mxu0 %v775
        %795 = vmatprep.subr.mxu0 0.0
        %796 = vmatpush1.msra.mxu0 %v776
        %797 = vmatprep.subr.mxu0 0.0
        %798 = vmatpush1.msra.mxu0 %v777
        %799 = vmatprep.subr.mxu0 0.0
        %800 = vmatpush1.msra.mxu0 %v778
        %801 = vmatprep.subr.mxu0 0.0
        %802 = vmatpush1.msra.mxu0 %v779
        %803 = vmatprep.subr.mxu0 0.0
        %804 = vmatpush1.msra.mxu0 %v780
        %805 = vmatprep.subr.mxu0 0.0
        %806 = vmatpush1.msra.mxu0 %v781
        %807 = vmatprep.subr.mxu0 0.0
        %808 = vmatpush1.msra.mxu0 %v782
        %809 = vmatprep.subr.mxu0 0.0
        %810 = vmatpush1.msra.mxu0 %v783
        %811 = vmatprep.subr.mxu0 0.0
        %812 = vmatpush1.msra.mxu0 %v784
        %813 = vmatprep.subr.mxu0 0.0
        %814 = vmatpush1.msra.mxu0 %v785
        %815 = vmatprep.subr.mxu0 0.0
        %816 = vmatpush1.msra.mxu0 %v786
        %817 = vmatprep.subr.mxu0 0.0
        %818 = vmatpush1.msra.mxu0 %v787
        %819 = vmatprep.subr.mxu0 0.0
        %820 = vmatpush1.msra.mxu0 %v788
        %821 = vmatprep.subr.mxu0 0.0
        %822 = vmatpush1.msra.mxu0 0.0
        %823 = vmatprep.subr.mxu0 0.0
        %824 = vmatpush1.msra.mxu0 0.0
        %825 = vmatprep.subr.mxu0 0.0
        %826 = vmatpush1.msra.mxu0 0.0
        %827 = vmatprep.subr.mxu0 0.0
        %828 = vmatpush1.msra.mxu0 0.0
        %829 = vmatprep.subr.mxu0 0.0
        %830 = vmatpush1.msra.mxu0 0.0
        %831 = vmatprep.subr.mxu0 0.0
        %832 = vmatpush1.msra.mxu0 0.0
        %833 = vmatprep.subr.mxu0 0.0
        %834 = vmatpush1.msra.mxu0 0.0
        %835 = vmatprep.subr.mxu0 0.0
        %836 = vmatpush1.msra.mxu0 0.0
        %837 = vmatprep.subr.mxu0 0.0
        %838 = vmatpush1.msra.mxu0 0.0
        %839 = vmatprep.subr.mxu0 0.0
        %840 = vmatpush1.msra.mxu0 0.0
        %841 = vmatprep.subr.mxu0 0.0
        %842 = vmatpush1.msra.mxu0 0.0
        %843 = vmatprep.subr.mxu0 0.0
        %844 = vmatpush1.msra.mxu0 0.0
        %845 = vmatprep.subr.mxu0 0.0
        %846 = vmatpush1.msra.mxu0 0.0
        %847 = vmatprep.subr.mxu0 0.0
        %848 = vmatpush1.msra.mxu0 0.0
        %849 = vmatprep.subr.mxu0 0.0
        %850 = vmatpush1.msra.mxu0 0.0
        %851 = vmatprep.subr.mxu0 0.0
        %852 = vmatpush1.msra.mxu0 0.0
        %853 = vmatprep.mubr.f32.mxu0 0.0
        %854 = vmatmul.mubr.f32.gmra.mrb[0].mxu0 %v770
        %v855 = vpop.f32.mrb[0].mxu0
        %v856 = vadd.f32 0.0, %v855
        %v857 = vpop.f32.mrb[0].mxu0
        %858 = vmatprep.mubr.f32.mxu0 0.0
        %859 = vmatmul.mubr.f32.gmra.mrb[0].mxu0 %v771
        %v860 = vpop.f32.mrb[0].mxu0
        %v861 = vadd.f32 0.0, %v860
        %v862 = vpop.f32.mrb[0].mxu0
        %863 = vdwg.mxu0
        %v864 = vadd.f32 %v768, %v856
        %v865 = vadd.f32 %v769, %v861
        %v866 = vld [vmem:[%s673 + $0x2] sm:$0xff]
        %v867 = vld [vmem:[%s673 + $0xa] sm:$0xf]
        %s868 = scalar_lea.vmem %s3, 640
        %v869 = vld [vmem:[%s868] sm:$0xff]
        %v870 = vld [vmem:[%s868 + $0x8] sm:$0xff]
        %v871 = vld [vmem:[%s868 + $0x10] sm:$0xff]
        %v872 = vld [vmem:[%s868 + $0x18] sm:$0xff]
        %v873 = vld [vmem:[%s868 + $0x20] sm:$0xff]
        %v874 = vld [vmem:[%s868 + $0x28] sm:$0xff]
        %v875 = vld [vmem:[%s868 + $0x30] sm:$0xff]
        %v876 = vld [vmem:[%s868 + $0x38] sm:$0xff]
        %v877 = vld [vmem:[%s868 + $0x40] sm:$0xff]
        %v878 = vld [vmem:[%s868 + $0x48] sm:$0xff]
        %v879 = vld [vmem:[%s868 + $0x50] sm:$0xff]
        %v880 = vld [vmem:[%s868 + $0x58] sm:$0xff]
        %v881 = vld [vmem:[%s868 + $0x60] sm:$0xff]
        %v882 = vld [vmem:[%s868 + $0x68] sm:$0xff]
        %v883 = vld [vmem:[%s868 + $0x70] sm:$0xff]
        %v884 = vld [vmem:[%s868 + $0x78] sm:$0xff]
        %885 = vmatprep.subr.mxu0 0.0
        %886 = vmatpush1.msra.mxu0 %v869
        %887 = vmatprep.subr.mxu0 0.0
        %888 = vmatpush1.msra.mxu0 %v870
        %889 = vmatprep.subr.mxu0 0.0
        %890 = vmatpush1.msra.mxu0 %v871
        %891 = vmatprep.subr.mxu0 0.0
        %892 = vmatpush1.msra.mxu0 %v872
        %893 = vmatprep.subr.mxu0 0.0
        %894 = vmatpush1.msra.mxu0 %v873
        %895 = vmatprep.subr.mxu0 0.0
        %896 = vmatpush1.msra.mxu0 %v874
        %897 = vmatprep.subr.mxu0 0.0
        %898 = vmatpush1.msra.mxu0 %v875
        %899 = vmatprep.subr.mxu0 0.0
        %900 = vmatpush1.msra.mxu0 %v876
        %901 = vmatprep.subr.mxu0 0.0
        %902 = vmatpush1.msra.mxu0 %v877
        %903 = vmatprep.subr.mxu0 0.0
        %904 = vmatpush1.msra.mxu0 %v878
        %905 = vmatprep.subr.mxu0 0.0
        %906 = vmatpush1.msra.mxu0 %v879
        %907 = vmatprep.subr.mxu0 0.0
        %908 = vmatpush1.msra.mxu0 %v880
        %909 = vmatprep.subr.mxu0 0.0
        %910 = vmatpush1.msra.mxu0 %v881
        %911 = vmatprep.subr.mxu0 0.0
        %912 = vmatpush1.msra.mxu0 %v882
        %913 = vmatprep.subr.mxu0 0.0
        %914 = vmatpush1.msra.mxu0 %v883
        %915 = vmatprep.subr.mxu0 0.0
        %916 = vmatpush1.msra.mxu0 %v884
        %917 = vmatprep.subr.mxu0 0.0
        %918 = vmatpush1.msra.mxu0 0.0
        %919 = vmatprep.subr.mxu0 0.0
        %920 = vmatpush1.msra.mxu0 0.0
        %921 = vmatprep.subr.mxu0 0.0
        %922 = vmatpush1.msra.mxu0 0.0
        %923 = vmatprep.subr.mxu0 0.0
        %924 = vmatpush1.msra.mxu0 0.0
        %925 = vmatprep.subr.mxu0 0.0
        %926 = vmatpush1.msra.mxu0 0.0
        %927 = vmatprep.subr.mxu0 0.0
        %928 = vmatpush1.msra.mxu0 0.0
        %929 = vmatprep.subr.mxu0 0.0
        %930 = vmatpush1.msra.mxu0 0.0
        %931 = vmatprep.subr.mxu0 0.0
        %932 = vmatpush1.msra.mxu0 0.0
        %933 = vmatprep.subr.mxu0 0.0
        %934 = vmatpush1.msra.mxu0 0.0
        %935 = vmatprep.subr.mxu0 0.0
        %936 = vmatpush1.msra.mxu0 0.0
        %937 = vmatprep.subr.mxu0 0.0
        %938 = vmatpush1.msra.mxu0 0.0
        %939 = vmatprep.subr.mxu0 0.0
        %940 = vmatpush1.msra.mxu0 0.0
        %941 = vmatprep.subr.mxu0 0.0
        %942 = vmatpush1.msra.mxu0 0.0
        %943 = vmatprep.subr.mxu0 0.0
        %944 = vmatpush1.msra.mxu0 0.0
        %945 = vmatprep.subr.mxu0 0.0
        %946 = vmatpush1.msra.mxu0 0.0
        %947 = vmatprep.subr.mxu0 0.0
        %948 = vmatpush1.msra.mxu0 0.0
        %949 = vmatprep.mubr.f32.mxu0 0.0
        %950 = vmatmul.mubr.f32.gmra.mrb[0].mxu0 %v866
        %v951 = vpop.f32.mrb[0].mxu0
        %v952 = vadd.f32 0.0, %v951
        %v953 = vpop.f32.mrb[0].mxu0
        %954 = vmatprep.mubr.f32.mxu0 0.0
        %955 = vmatmul.mubr.f32.gmra.mrb[0].mxu0 %v867
        %v956 = vpop.f32.mrb[0].mxu0
        %v957 = vadd.f32 0.0, %v956
        %v958 = vpop.f32.mrb[0].mxu0
        %959 = vdwg.mxu0
        %v960 = vadd.f32 %v864, %v952
        %v961 = vadd.f32 %v865, %v957
        %s962 = sadd.s32 %s381, 2
        %s963 = smul.u32 %s962, 16
        %s964 = scalar_lea.vmem [#allocation2], %s963
        %v965 = vld [vmem:[%s964] sm:$0xff]
        %v966 = vld [vmem:[%s964 + $0x8] sm:$0xf]
        %s967 = scalar_lea.vmem %s3, 768
        %v968 = vld [vmem:[%s967] sm:$0xff]
        %v969 = vld [vmem:[%s967 + $0x8] sm:$0xff]
        %v970 = vld [vmem:[%s967 + $0x10] sm:$0xff]
        %v971 = vld [vmem:[%s967 + $0x18] sm:$0xff]
        %v972 = vld [vmem:[%s967 + $0x20] sm:$0xff]
        %v973 = vld [vmem:[%s967 + $0x28] sm:$0xff]
        %v974 = vld [vmem:[%s967 + $0x30] sm:$0xff]
        %v975 = vld [vmem:[%s967 + $0x38] sm:$0xff]
        %v976 = vld [vmem:[%s967 + $0x40] sm:$0xff]
        %v977 = vld [vmem:[%s967 + $0x48] sm:$0xff]
        %v978 = vld [vmem:[%s967 + $0x50] sm:$0xff]
        %v979 = vld [vmem:[%s967 + $0x58] sm:$0xff]
        %v980 = vld [vmem:[%s967 + $0x60] sm:$0xff]
        %v981 = vld [vmem:[%s967 + $0x68] sm:$0xff]
        %v982 = vld [vmem:[%s967 + $0x70] sm:$0xff]
        %v983 = vld [vmem:[%s967 + $0x78] sm:$0xff]
        %984 = vmatprep.subr.mxu0 0.0
        %985 = vmatpush1.msra.mxu0 %v968
        %986 = vmatprep.subr.mxu0 0.0
        %987 = vmatpush1.msra.mxu0 %v969
        %988 = vmatprep.subr.mxu0 0.0
        %989 = vmatpush1.msra.mxu0 %v970
        %990 = vmatprep.subr.mxu0 0.0
        %991 = vmatpush1.msra.mxu0 %v971
        %992 = vmatprep.subr.mxu0 0.0
        %993 = vmatpush1.msra.mxu0 %v972
        %994 = vmatprep.subr.mxu0 0.0
        %995 = vmatpush1.msra.mxu0 %v973
        %996 = vmatprep.subr.mxu0 0.0
        %997 = vmatpush1.msra.mxu0 %v974
        %998 = vmatprep.subr.mxu0 0.0
        %999 = vmatpush1.msra.mxu0 %v975
        %1000 = vmatprep.subr.mxu0 0.0
        %1001 = vmatpush1.msra.mxu0 %v976
        %1002 = vmatprep.subr.mxu0 0.0
        %1003 = vmatpush1.msra.mxu0 %v977
        %1004 = vmatprep.subr.mxu0 0.0
        %1005 = vmatpush1.msra.mxu0 %v978
        %1006 = vmatprep.subr.mxu0 0.0
        %1007 = vmatpush1.msra.mxu0 %v979
        %1008 = vmatprep.subr.mxu0 0.0
        %1009 = vmatpush1.msra.mxu0 %v980
        %1010 = vmatprep.subr.mxu0 0.0
        %1011 = vmatpush1.msra.mxu0 %v981
        %1012 = vmatprep.subr.mxu0 0.0
        %1013 = vmatpush1.msra.mxu0 %v982
        %1014 = vmatprep.subr.mxu0 0.0
        %1015 = vmatpush1.msra.mxu0 %v983
        %1016 = vmatprep.subr.mxu0 0.0
        %1017 = vmatpush1.msra.mxu0 0.0
        %1018 = vmatprep.subr.mxu0 0.0
        %1019 = vmatpush1.msra.mxu0 0.0
        %1020 = vmatprep.subr.mxu0 0.0
        %1021 = vmatpush1.msra.mxu0 0.0
        %1022 = vmatprep.subr.mxu0 0.0
        %1023 = vmatpush1.msra.mxu0 0.0
        %1024 = vmatprep.subr.mxu0 0.0
        %1025 = vmatpush1.msra.mxu0 0.0
        %1026 = vmatprep.subr.mxu0 0.0
        %1027 = vmatpush1.msra.mxu0 0.0
        %1028 = vmatprep.subr.mxu0 0.0
        %1029 = vmatpush1.msra.mxu0 0.0
        %1030 = vmatprep.subr.mxu0 0.0
        %1031 = vmatpush1.msra.mxu0 0.0
        %1032 = vmatprep.subr.mxu0 0.0
        %1033 = vmatpush1.msra.mxu0 0.0
        %1034 = vmatprep.subr.mxu0 0.0
        %1035 = vmatpush1.msra.mxu0 0.0
        %1036 = vmatprep.subr.mxu0 0.0
        %1037 = vmatpush1.msra.mxu0 0.0
        %1038 = vmatprep.subr.mxu0 0.0
        %1039 = vmatpush1.msra.mxu0 0.0
        %1040 = vmatprep.subr.mxu0 0.0
        %1041 = vmatpush1.msra.mxu0 0.0
        %1042 = vmatprep.subr.mxu0 0.0
        %1043 = vmatpush1.msra.mxu0 0.0
        %1044 = vmatprep.subr.mxu0 0.0
        %1045 = vmatpush1.msra.mxu0 0.0
        %1046 = vmatprep.subr.mxu0 0.0
        %1047 = vmatpush1.msra.mxu0 0.0
        %1048 = vmatprep.mubr.f32.mxu0 0.0
        %1049 = vmatmul.mubr.f32.gmra.mrb[0].mxu0 %v965
        %v1050 = vpop.f32.mrb[0].mxu0
        %v1051 = vadd.f32 0.0, %v1050
        %v1052 = vpop.f32.mrb[0].mxu0
        %1053 = vmatprep.mubr.f32.mxu0 0.0
        %1054 = vmatmul.mubr.f32.gmra.mrb[0].mxu0 %v966
        %v1055 = vpop.f32.mrb[0].mxu0
        %v1056 = vadd.f32 0.0, %v1055
        %v1057 = vpop.f32.mrb[0].mxu0
        %1058 = vdwg.mxu0
        %v1059 = vadd.f32 %v960, %v1051
        %v1060 = vadd.f32 %v961, %v1056
        %v1061 = vld [vmem:[%s964 + $0x1] sm:$0xff]
        %v1062 = vld [vmem:[%s964 + $0x9] sm:$0xf]
        %s1063 = scalar_lea.vmem %s3, 896
        %v1064 = vld [vmem:[%s1063] sm:$0xff]
        %v1065 = vld [vmem:[%s1063 + $0x8] sm:$0xff]
        %v1066 = vld [vmem:[%s1063 + $0x10] sm:$0xff]
        %v1067 = vld [vmem:[%s1063 + $0x18] sm:$0xff]
        %v1068 = vld [vmem:[%s1063 + $0x20] sm:$0xff]
        %v1069 = vld [vmem:[%s1063 + $0x28] sm:$0xff]
        %v1070 = vld [vmem:[%s1063 + $0x30] sm:$0xff]
        %v1071 = vld [vmem:[%s1063 + $0x38] sm:$0xff]
        %v1072 = vld [vmem:[%s1063 + $0x40] sm:$0xff]
        %v1073 = vld [vmem:[%s1063 + $0x48] sm:$0xff]
        %v1074 = vld [vmem:[%s1063 + $0x50] sm:$0xff]
        %v1075 = vld [vmem:[%s1063 + $0x58] sm:$0xff]
        %v1076 = vld [vmem:[%s1063 + $0x60] sm:$0xff]
        %v1077 = vld [vmem:[%s1063 + $0x68] sm:$0xff]
        %v1078 = vld [vmem:[%s1063 + $0x70] sm:$0xff]
        %v1079 = vld [vmem:[%s1063 + $0x78] sm:$0xff]
        %1080 = vmatprep.subr.mxu0 0.0
        %1081 = vmatpush1.msra.mxu0 %v1064
        %1082 = vmatprep.subr.mxu0 0.0
        %1083 = vmatpush1.msra.mxu0 %v1065
        %1084 = vmatprep.subr.mxu0 0.0
        %1085 = vmatpush1.msra.mxu0 %v1066
        %1086 = vmatprep.subr.mxu0 0.0
        %1087 = vmatpush1.msra.mxu0 %v1067
        %1088 = vmatprep.subr.mxu0 0.0
        %1089 = vmatpush1.msra.mxu0 %v1068
        %1090 = vmatprep.subr.mxu0 0.0
        %1091 = vmatpush1.msra.mxu0 %v1069
        %1092 = vmatprep.subr.mxu0 0.0
        %1093 = vmatpush1.msra.mxu0 %v1070
        %1094 = vmatprep.subr.mxu0 0.0
        %1095 = vmatpush1.msra.mxu0 %v1071
        %1096 = vmatprep.subr.mxu0 0.0
        %1097 = vmatpush1.msra.mxu0 %v1072
        %1098 = vmatprep.subr.mxu0 0.0
        %1099 = vmatpush1.msra.mxu0 %v1073
        %1100 = vmatprep.subr.mxu0 0.0
        %1101 = vmatpush1.msra.mxu0 %v1074
        %1102 = vmatprep.subr.mxu0 0.0
        %1103 = vmatpush1.msra.mxu0 %v1075
        %1104 = vmatprep.subr.mxu0 0.0
        %1105 = vmatpush1.msra.mxu0 %v1076
        %1106 = vmatprep.subr.mxu0 0.0
        %1107 = vmatpush1.msra.mxu0 %v1077
        %1108 = vmatprep.subr.mxu0 0.0
        %1109 = vmatpush1.msra.mxu0 %v1078
        %1110 = vmatprep.subr.mxu0 0.0
        %1111 = vmatpush1.msra.mxu0 %v1079
        %1112 = vmatprep.subr.mxu0 0.0
        %1113 = vmatpush1.msra.mxu0 0.0
        %1114 = vmatprep.subr.mxu0 0.0
        %1115 = vmatpush1.msra.mxu0 0.0
        %1116 = vmatprep.subr.mxu0 0.0
        %1117 = vmatpush1.msra.mxu0 0.0
        %1118 = vmatprep.subr.mxu0 0.0
        %1119 = vmatpush1.msra.mxu0 0.0
        %1120 = vmatprep.subr.mxu0 0.0
        %1121 = vmatpush1.msra.mxu0 0.0
        %1122 = vmatprep.subr.mxu0 0.0
        %1123 = vmatpush1.msra.mxu0 0.0
        %1124 = vmatprep.subr.mxu0 0.0
        %1125 = vmatpush1.msra.mxu0 0.0
        %1126 = vmatprep.subr.mxu0 0.0
        %1127 = vmatpush1.msra.mxu0 0.0
        %1128 = vmatprep.subr.mxu0 0.0
        %1129 = vmatpush1.msra.mxu0 0.0
        %1130 = vmatprep.subr.mxu0 0.0
        %1131 = vmatpush1.msra.mxu0 0.0
        %1132 = vmatprep.subr.mxu0 0.0
        %1133 = vmatpush1.msra.mxu0 0.0
        %1134 = vmatprep.subr.mxu0 0.0
        %1135 = vmatpush1.msra.mxu0 0.0
        %1136 = vmatprep.subr.mxu0 0.0
        %1137 = vmatpush1.msra.mxu0 0.0
        %1138 = vmatprep.subr.mxu0 0.0
        %1139 = vmatpush1.msra.mxu0 0.0
        %1140 = vmatprep.subr.mxu0 0.0
        %1141 = vmatpush1.msra.mxu0 0.0
        %1142 = vmatprep.subr.mxu0 0.0
        %1143 = vmatpush1.msra.mxu0 0.0
        %1144 = vmatprep.mubr.f32.mxu0 0.0
        %1145 = vmatmul.mubr.f32.gmra.mrb[0].mxu0 %v1061
        %v1146 = vpop.f32.mrb[0].mxu0
        %v1147 = vadd.f32 0.0, %v1146
        %v1148 = vpop.f32.mrb[0].mxu0
        %1149 = vmatprep.mubr.f32.mxu0 0.0
        %1150 = vmatmul.mubr.f32.gmra.mrb[0].mxu0 %v1062
        %v1151 = vpop.f32.mrb[0].mxu0
        %v1152 = vadd.f32 0.0, %v1151
        %v1153 = vpop.f32.mrb[0].mxu0
        %1154 = vdwg.mxu0
        %v1155 = vadd.f32 %v1059, %v1147
        %v1156 = vadd.f32 %v1060, %v1152
        %v1157 = vld [vmem:[%s964 + $0x2] sm:$0xff]
        %v1158 = vld [vmem:[%s964 + $0xa] sm:$0xf]
        %s1159 = scalar_lea.vmem %s3, 1024
        %v1160 = vld [vmem:[%s1159] sm:$0xff]
        %v1161 = vld [vmem:[%s1159 + $0x8] sm:$0xff]
        %v1162 = vld [vmem:[%s1159 + $0x10] sm:$0xff]
        %v1163 = vld [vmem:[%s1159 + $0x18] sm:$0xff]
        %v1164 = vld [vmem:[%s1159 + $0x20] sm:$0xff]
        %v1165 = vld [vmem:[%s1159 + $0x28] sm:$0xff]
        %v1166 = vld [vmem:[%s1159 + $0x30] sm:$0xff]
        %v1167 = vld [vmem:[%s1159 + $0x38] sm:$0xff]
        %v1168 = vld [vmem:[%s1159 + $0x40] sm:$0xff]
        %v1169 = vld [vmem:[%s1159 + $0x48] sm:$0xff]
        %v1170 = vld [vmem:[%s1159 + $0x50] sm:$0xff]
        %v1171 = vld [vmem:[%s1159 + $0x58] sm:$0xff]
        %v1172 = vld [vmem:[%s1159 + $0x60] sm:$0xff]
        %v1173 = vld [vmem:[%s1159 + $0x68] sm:$0xff]
        %v1174 = vld [vmem:[%s1159 + $0x70] sm:$0xff]
        %v1175 = vld [vmem:[%s1159 + $0x78] sm:$0xff]
        %1176 = vmatprep.subr.mxu0 0.0
        %1177 = vmatpush1.msra.mxu0 %v1160
        %1178 = vmatprep.subr.mxu0 0.0
        %1179 = vmatpush1.msra.mxu0 %v1161
        %1180 = vmatprep.subr.mxu0 0.0
        %1181 = vmatpush1.msra.mxu0 %v1162
        %1182 = vmatprep.subr.mxu0 0.0
        %1183 = vmatpush1.msra.mxu0 %v1163
        %1184 = vmatprep.subr.mxu0 0.0
        %1185 = vmatpush1.msra.mxu0 %v1164
        %1186 = vmatprep.subr.mxu0 0.0
        %1187 = vmatpush1.msra.mxu0 %v1165
        %1188 = vmatprep.subr.mxu0 0.0
        %1189 = vmatpush1.msra.mxu0 %v1166
        %1190 = vmatprep.subr.mxu0 0.0
        %1191 = vmatpush1.msra.mxu0 %v1167
        %1192 = vmatprep.subr.mxu0 0.0
        %1193 = vmatpush1.msra.mxu0 %v1168
        %1194 = vmatprep.subr.mxu0 0.0
        %1195 = vmatpush1.msra.mxu0 %v1169
        %1196 = vmatprep.subr.mxu0 0.0
        %1197 = vmatpush1.msra.mxu0 %v1170
        %1198 = vmatprep.subr.mxu0 0.0
        %1199 = vmatpush1.msra.mxu0 %v1171
        %1200 = vmatprep.subr.mxu0 0.0
        %1201 = vmatpush1.msra.mxu0 %v1172
        %1202 = vmatprep.subr.mxu0 0.0
        %1203 = vmatpush1.msra.mxu0 %v1173
        %1204 = vmatprep.subr.mxu0 0.0
        %1205 = vmatpush1.msra.mxu0 %v1174
        %1206 = vmatprep.subr.mxu0 0.0
        %1207 = vmatpush1.msra.mxu0 %v1175
        %1208 = vmatprep.subr.mxu0 0.0
        %1209 = vmatpush1.msra.mxu0 0.0
        %1210 = vmatprep.subr.mxu0 0.0
        %1211 = vmatpush1.msra.mxu0 0.0
        %1212 = vmatprep.subr.mxu0 0.0
        %1213 = vmatpush1.msra.mxu0 0.0
        %1214 = vmatprep.subr.mxu0 0.0
        %1215 = vmatpush1.msra.mxu0 0.0
        %1216 = vmatprep.subr.mxu0 0.0
        %1217 = vmatpush1.msra.mxu0 0.0
        %1218 = vmatprep.subr.mxu0 0.0
        %1219 = vmatpush1.msra.mxu0 0.0
        %1220 = vmatprep.subr.mxu0 0.0
        %1221 = vmatpush1.msra.mxu0 0.0
        %1222 = vmatprep.subr.mxu0 0.0
        %1223 = vmatpush1.msra.mxu0 0.0
        %1224 = vmatprep.subr.mxu0 0.0
        %1225 = vmatpush1.msra.mxu0 0.0
        %1226 = vmatprep.subr.mxu0 0.0
        %1227 = vmatpush1.msra.mxu0 0.0
        %1228 = vmatprep.subr.mxu0 0.0
        %1229 = vmatpush1.msra.mxu0 0.0
        %1230 = vmatprep.subr.mxu0 0.0
        %1231 = vmatpush1.msra.mxu0 0.0
        %1232 = vmatprep.subr.mxu0 0.0
        %1233 = vmatpush1.msra.mxu0 0.0
        %1234 = vmatprep.subr.mxu0 0.0
        %1235 = vmatpush1.msra.mxu0 0.0
        %1236 = vmatprep.subr.mxu0 0.0
        %1237 = vmatpush1.msra.mxu0 0.0
        %1238 = vmatprep.subr.mxu0 0.0
        %1239 = vmatpush1.msra.mxu0 0.0
        %1240 = vmatprep.mubr.f32.mxu0 0.0
        %1241 = vmatmul.mubr.f32.gmra.mrb[0].mxu0 %v1157
        %v1242 = vpop.f32.mrb[0].mxu0
        %v1243 = vadd.f32 0.0, %v1242
        %v1244 = vpop.f32.mrb[0].mxu0
        %1245 = vmatprep.mubr.f32.mxu0 0.0
        %1246 = vmatmul.mubr.f32.gmra.mrb[0].mxu0 %v1158
        %v1247 = vpop.f32.mrb[0].mxu0
        %v1248 = vadd.f32 0.0, %v1247
        %v1249 = vpop.f32.mrb[0].mxu0
        %1250 = vdwg.mxu0
        %v1251 = vadd.f32 %v1155, %v1243
        %v1252 = vadd.f32 %v1156, %v1248
        %v1254 = vlaneseq
        %v1255 = vshrl.u32 %v1254, 7
        %v1256 = vsub.s32 0, %v1255
        %v1257 = vrot.slane %v379, %v1256
        %v1259 = vadd.f32 %v1251, %v1257
        %v1260 = vadd.f32 %v1252, %v1257
        %s1261 = scalar_lea.vmem %s224, %s386
        %1262 = vst [vmem:[%s1261] sm:$0xff] %v1259
        %1263 = vst [vmem:[%s1261 + $0x8] sm:$0xf] %v1260
      $region45: #{rconv_forward.7} parent=39 // loop_footer
        %s385 = sadd.s32 1, %s381
      $region46: #{rconv_forward.7} parent=39 // loop_footer_branch
        %380 = sbr.rel target = $region42
      $region47: #{rconv_forward.7} parent=39 // loop_exit
        _
      %p1264 = scmp.lt.s32.totalorder %s16, 1
      %s1265 = scalar_select %p1264, %s16, 1
      %s1266 = smul.addr %s1265, 24
      %s1267 = smul.addr %s1266, 8
      %s1268 = scalar_lea.vmem %s5, %s1267
      // Predicated region
      $region48: #{rconv_forward.7} parent=39 // pred_check
        %p1269 = pneg %p144
      $region49: #{rconv_forward.7} parent=39 // pred_check_branch
        %1271 = sbr.rel (%p1269) target = $region51
      $region50: #{rconv_forward.7} parent=39 // pred_region
        _
      $region51: #{rconv_forward.7} parent=39 // pred_fallthru
        _
    $region40: #{rconv_forward.7} parent=5 // pred_fallthru
      _
    %p1272 = scmp.le.s32.totalorder 2, %s11
    // Predicated region
    $region52: #{rconv_forward.7} parent=5 // pred_check
      %p1273 = pneg %p1272
    $region53: #{rconv_forward.7} parent=5 // pred_check_branch
      %1275 = sbr.rel (%p1273) target = $region55
    $region54: #{rconv_forward.7} parent=5 // pred_region
      %s1276 = ssub.s32 %s11, 2
      // Predicated region
      $region56: #{rconv_forward.7} parent=54 // pred_check
        %p1277 = pneg %p150
      $region57: #{rconv_forward.7} parent=54 // pred_check_branch
        %1279 = sbr.rel (%p1277) target = $region59
      $region58: #{rconv_forward.7} parent=54 // pred_region
        %p1280 = scmp.lt.s32.totalorder %s17, 1
        %s1281 = scalar_select %p1280, %s17, 1
        %s1282 = smul.addr %s1281, 24
        %s1283 = smul.addr %s1282, 8
        %s1284 = scalar_lea.vmem %s5, %s1283
      $region59: #{rconv_forward.7} parent=54 // pred_fallthru
        _
    $region55: #{rconv_forward.7} parent=5 // pred_fallthru
      _
  $region6: #{rconv_forward.7} parent=0 // loop_footer
    %s15 = sadd.s32 1, %s11
  $region7: #{rconv_forward.7} parent=0 // loop_footer_branch
    %10 = sbr.rel target = $region3
  $region8: #{rconv_forward.7} parent=0 // loop_exit
    _

</llo_original>
